<compile_context>
chip_gen: v7x
topology: tpu7x:2x2x1
jax: 0.10.0
libtpu: 0.0.40
codegen_flags: <defaults>
</compile_context>

<pallas_src>
import functools
import math

import jax
import jax.numpy as jnp
from jax.experimental import pallas as pl
from jax.experimental.pallas import tpu as pltpu


_COMPUTE_DTYPE = jnp.bfloat16          # MXU operand dtype (fp32 accumulation)
_VMEM_LIMIT_BYTES = 48 * 1024 * 1024   # with headroom on v5e/v6e (128 MiB) and v7x (64 MiB)
_SINGLE_BUFFER = [True]                # flipped off if pl.Buffered(1) is unsupported


def _pick_q_tile(t):
    """Largest lane/sublane friendly query tile that divides T (else full T)."""
    for tile in (512, 256, 128):
        if tile < t and t % tile == 0:
            return tile
    return t


def _const_spec(shape, single_buffer):
    """Full-array BlockSpec with a constant index map (weights).

    Single-buffered via pipeline_mode=pl.Buffered(1) when available, since the
    block never changes across the grid (halves weight VMEM footprint)."""
    zeros = (0,) * len(shape)
    index_map = lambda b, t, _z=zeros: _z
    if single_buffer:
        try:
            return pl.BlockSpec(shape, index_map, pipeline_mode=pl.Buffered(1))
        except Exception:  # pipeline_mode / Buffered not available in this jax
            pass
    return pl.BlockSpec(shape, index_map)


def _bytes_of(arrays):
    return int(sum(int(a.size) * a.dtype.itemsize for a in arrays))


# ----------------------------------------------------------------------------
# Kernel 1: LayerNorm over [x | extra] + Q/K/V projections (Q pre-scaled).
# ----------------------------------------------------------------------------
def _ln_qkv_kernel(*refs, ln_eps, scale, n_extra):
    if n_extra > 0:
        (x_ref, e_ref, ln_wx, ln_bx, ln_we, ln_be,
         wq_x, wk_x, wv_x, wq_e, wk_e, wv_e, bq, bk, bv,
         q_ref, k_ref, v_ref) = refs
    else:
        (x_ref, ln_wx, ln_bx, wq_x, wk_x, wv_x, bq, bk, bv,
         q_ref, k_ref, v_ref) = refs

    x = x_ref[0].astype(jnp.float32)                       # (tq, C)
    d = x.shape[-1] + n_extra
    s1 = jnp.sum(x, axis=-1, keepdims=True)
    s2 = jnp.sum(x * x, axis=-1, keepdims=True)
    if n_extra > 0:
        e = e_ref[0].astype(jnp.float32)                   # (tq, E)
        s1 = s1 + jnp.sum(e, axis=-1, keepdims=True)
        s2 = s2 + jnp.sum(e * e, axis=-1, keepdims=True)
    mu = s1 * (1.0 / d)
    var = s2 * (1.0 / d) - mu * mu                         # one-pass variance
    inv = jax.lax.rsqrt(var + ln_eps)
    hx = ((x - mu) * inv * ln_wx[0] + ln_bx[0]).astype(_COMPUTE_DTYPE)
    if n_extra > 0:
        he = ((e - mu) * inv * ln_we[0] + ln_be[0]).astype(_COMPUTE_DTYPE)

    def proj(w_x, w_e, b):
        out = jnp.dot(hx, w_x[...], preferred_element_type=jnp.float32)
        if n_extra > 0:
            out = out + jnp.dot(he, w_e[...], preferred_element_type=jnp.float32)
        return out + b[0]

    q = proj(wq_x, wq_e if n_extra > 0 else None, bq)
    k = proj(wk_x, wk_e if n_extra > 0 else None, bk)
    v = proj(wv_x, wv_e if n_extra > 0 else None, bv)
    q_ref[0] = (q * scale).astype(q_ref.dtype)             # fold 1/sqrt(hd) into Q
    k_ref[0] = k.astype(k_ref.dtype)
    v_ref[0] = v.astype(v_ref.dtype)


# ----------------------------------------------------------------------------
# Kernel 2: batched-head attention + out-proj + residual + LN2 + MLP + residual.
# ----------------------------------------------------------------------------
def _attn_mlp_kernel(q_ref, k_ref, v_ref, x_ref,
                     w_proj, b_proj, ln2_w, ln2_b,
                     w_fc, b_fc, w_fc2, b_fc2,
                     o_ref, *, ln_eps):
    q = q_ref[0]                                           # (H, tq, hd) bf16, pre-scaled
    k = k_ref[0]                                           # (H, T,  hd) bf16
    v = v_ref[0]                                           # (H, T,  hd) bf16

    # scores + softmax (fp32 statistics, EUP reciprocal for the denominator)
    s = jnp.einsum("hqd,hkd->hqk", q, k, preferred_element_type=jnp.float32)
    s = s - jnp.max(s, axis=-1, keepdims=True)
    p = jnp.exp(s)
    denom = jnp.sum(p, axis=-1, keepdims=True)
    p = (p * pl.reciprocal(denom, approx=True)).astype(_COMPUTE_DTYPE)

    attn = jnp.einsum("hqk,hkd->hqd", p, v, preferred_element_type=jnp.float32)

    # output projection: batched per-head matmul, then reduce over heads (VPU adds)
    per_head = jnp.einsum("hqd,hdc->hqc", attn.astype(_COMPUTE_DTYPE), w_proj[...],
                          preferred_element_type=jnp.float32)
    proj = jnp.sum(per_head, axis=0) + b_proj[0]           # (tq, C)

    x1 = x_ref[0].astype(jnp.float32) + proj               # residual 1

    # MLP (pre-LN), one-pass variance
    mu = jnp.mean(x1, axis=-1, keepdims=True)
    var = jnp.mean(x1 * x1, axis=-1, keepdims=True) - mu * mu
    xn = ((x1 - mu) * jax.lax.rsqrt(var + ln_eps) * ln2_w[0] + ln2_b[0]
          ).astype(_COMPUTE_DTYPE)
    h1 = jnp.dot(xn, w_fc[...], preferred_element_type=jnp.float32) + b_fc[0]
    # TODO(synk): activation comes from config (Callable); tanh-GELU assumed here.
    h1 = jax.nn.gelu(h1, approximate=True).astype(_COMPUTE_DTYPE)
    mlp = jnp.dot(h1, w_fc2[...], preferred_element_type=jnp.float32) + b_fc2[0]

    o_ref[0] = (x1 + mlp).astype(o_ref.dtype)              # residual 2


# ----------------------------------------------------------------------------
# Per-layer wrapper.
# ----------------------------------------------------------------------------
def _layer_impl(x, extra, p, *, n_heads, ln_eps, single_buffer):
    B, T, C = x.shape
    E = 0 if extra is None else extra.shape[-1]
    H = n_heads
    assert C % H == 0, "n_embed must be divisible by n_heads"
    hd = C // H
    tq = _pick_q_tile(T)
    nq = T // tq
    bf = _COMPUTE_DTYPE

    # --- host-side weight plumbing (layout only): split fused QKV, bf16-cast
    #     matmul weights, head-major output projection. ---
    w_qkv, b_qkv = p["w_qkv"], p["b_qkv"]
    wq, wk, wv = w_qkv[:, :C], w_qkv[:, C:2 * C], w_qkv[:, 2 * C:]
    bq, bk, bv = b_qkv[:, :C], b_qkv[:, C:2 * C], b_qkv[:, 2 * C:]
    wq_x, wk_x, wv_x = (w[:C].astype(bf) for w in (wq, wk, wv))
    ln_wx, ln_bx = p["ln1_w"][:, :C], p["ln1_b"][:, :C]
    if E > 0:
        wq_e, wk_e, wv_e = (w[C:].astype(bf) for w in (wq, wk, wv))
        ln_we, ln_be = p["ln1_w"][:, C:], p["ln1_b"][:, C:]
    w_proj = p["w_proj"].reshape(H, hd, C).astype(bf)      # (H, hd, C)
    w_fc, w_fc2 = p["w_fc"].astype(bf), p["w_fc2"].astype(bf)
    MC = w_fc.shape[-1]

    def tile_spec(last):
        return pl.BlockSpec((1, tq, last), lambda b, t: (b, t, 0))

    def wspec(a):
        return _const_spec(a.shape, single_buffer)

    # ---------- call 1: LN1 (+ concat extra) -> scaled Q, K, V (bf16) ----------
    if E > 0:
        weights1 = [ln_wx, ln_bx, ln_we, ln_be,
                    wq_x, wk_x, wv_x, wq_e, wk_e, wv_e, bq, bk, bv]
        inputs1 = [x, extra] + weights1
        in_specs1 = [tile_spec(C), tile_spec(E)] + [wspec(w) for w in weights1]
    else:
        weights1 = [ln_wx, ln_bx, wq_x, wk_x, wv_x, bq, bk, bv]
        inputs1 = [x] + weights1
        in_specs1 = [tile_spec(C)] + [wspec(w) for w in weights1]

    qkv_struct = jax.ShapeDtypeStruct((B, T, C), bf)
    cost1 = pl.CostEstimate(
        flops=2 * B * T * (C + E) * 3 * C,
        transcendentals=B * T,
        bytes_accessed=_bytes_of(inputs1) + 3 * B * T * C * 2)
    q, k, v = pl.pallas_call(
        functools.partial(_ln_qkv_kernel, ln_eps=ln_eps,
                          scale=1.0 / math.sqrt(hd), n_extra=E),
        out_shape=(qkv_struct, qkv_struct, qkv_struct),
        grid=(B, nq),
        in_specs=in_specs1,
        out_specs=(tile_spec(C), tile_spec(C), tile_spec(C)),
        compiler_params=pltpu.CompilerParams(
            dimension_semantics=("parallel", "parallel"),
            vmem_limit_bytes=_VMEM_LIMIT_BYTES),
        cost_estimate=cost1,
    )(*inputs1)

    # wrapper-side layout plumbing: (B, T, C) -> (B, H, T, hd) head-major,
    # so the attention kernel never slices/transposes along lanes in-kernel.
    def to_heads(a):
        return jnp.transpose(a.reshape(B, T, H, hd), (0, 2, 1, 3))

    qh, kh, vh = to_heads(q), to_heads(k), to_heads(v)

    # -------- call 2: attention + out-proj + residual + LN2 + MLP --------
    weights2 = [w_proj, p["b_proj"], p["ln2_w"], p["ln2_b"],
                w_fc, p["b_fc"], w_fc2, p["b_fc2"]]
    inputs2 = [qh, kh, vh, x] + weights2
    q_spec = pl.BlockSpec((1, H, tq, hd), lambda b, t: (b, 0, t, 0))
    kv_spec = pl.BlockSpec((1, H, T, hd), lambda b, t: (b, 0, 0, 0))
    in_specs2 = [q_spec, kv_spec, kv_spec, tile_spec(C)] + [wspec(w) for w in weights2]
    cost2 = pl.CostEstimate(
        flops=2 * B * (2 * H * T * T * hd + T * C * C + 2 * T * C * MC),
        transcendentals=B * (H * T * T + T * MC + T),
        bytes_accessed=_bytes_of(inputs2) + B * T * C * x.dtype.itemsize)
    return pl.pallas_call(
        functools.partial(_attn_mlp_kernel, ln_eps=ln_eps),
        out_shape=jax.ShapeDtypeStruct((B, T, C), x.dtype),
        grid=(B, nq),
        in_specs=in_specs2,
        out_specs=tile_spec(C),
        compiler_params=pltpu.CompilerParams(
            dimension_semantics=("parallel", "parallel"),
            vmem_limit_bytes=_VMEM_LIMIT_BYTES),
        cost_estimate=cost2,
    )(*inputs2)


def run_layer(x, extra, p, *, n_heads, ln_eps):
    if _SINGLE_BUFFER[0]:
        try:
            return _layer_impl(x, extra, p, n_heads=n_heads, ln_eps=ln_eps,
                               single_buffer=True)
        except Exception:
            # pl.Buffered(1) not supported by this jax/libtpu -> default buffering.
            _SINGLE_BUFFER[0] = False
    return _layer_impl(x, extra, p, n_heads=n_heads, ln_eps=ln_eps,
                       single_buffer=False)


def transformer_body(x, extra_embed, params, *, n_heads, ln_eps):
    x = run_layer(x, extra_embed, params[0], n_heads=n_heads, ln_eps=ln_eps)
    for p in params[1:]:
        x = run_layer(x, None, p, n_heads=n_heads, ln_eps=ln_eps)
    return x


def init_params(key, *, n_layers, n_embed, n_extra_embed, linear_size_multiplier,
                init_std):
    C, E, M = n_embed, n_extra_embed, linear_size_multiplier
    params = []
    for layer in range(n_layers):
        d_in = C + (E if layer == 0 else 0)
        key, k0, k1, k2, k3 = jax.random.split(key, 5)
        params.append({
            "ln1_w": jnp.ones((1, d_in), jnp.float32),
            "ln1_b": jnp.zeros((1, d_in), jnp.float32),
            "w_qkv": init_std * jax.random.normal(k0, (d_in, 3 * C), jnp.float32),
            "b_qkv": jnp.zeros((1, 3 * C), jnp.float32),
            "w_proj": init_std * jax.random.normal(k1, (C, C), jnp.float32),
            "b_proj": jnp.zeros((1, C), jnp.float32),
            "ln2_w": jnp.ones((1, C), jnp.float32),
            "ln2_b": jnp.zeros((1, C), jnp.float32),
            "w_fc": init_std * jax.random.normal(k2, (C, M * C), jnp.float32),
            "b_fc": jnp.zeros((1, M * C), jnp.float32),
            "w_fc2": init_std * jax.random.normal(k3, (M * C, C), jnp.float32),
            "b_fc2": jnp.zeros((1, C), jnp.float32),
        })
    return params


if __name__ == "__main__":
    # Small config consistent with TransformerBodyConfig.
    B, T = 2, 8
    n_layers, n_embed, n_extra_embed, n_heads = 3, 32, 16, 4
    linear_size_multiplier = 4
    init_std = 0.02
    ln_eps = 1e-5

    key = jax.random.PRNGKey(0)
    key, kx, ke, kp = jax.random.split(key, 4)
    x = jax.random.normal(kx, (B, T, n_embed), jnp.float32)
    extra_embed = jax.random.normal(ke, (B, T, n_extra_embed), jnp.float32)

    params = init_params(kp, n_layers=n_layers, n_embed=n_embed,
                         n_extra_embed=n_extra_embed,
                         linear_size_multiplier=linear_size_multiplier,
                         init_std=init_std)

    out = transformer_body(x, extra_embed, params, n_heads=n_heads, ln_eps=ln_eps)
    out = jax.block_until_ready(out)
    assert out.shape == (B, T, n_embed) and out.dtype == jnp.float32
    print("KERNEL_OK")
</pallas_src>

<mosaic_0001>
module attributes {stable_mosaic.version = 11 : i64} {
  func.func @_ln_qkv_kernel(%arg0: i32, %arg1: i32, %arg2: memref<1x8x32xf32, #tpu.memory_space<vmem>>, %arg3: memref<1x8x16xf32, #tpu.memory_space<vmem>>, %arg4: memref<1x32xf32, #tpu.memory_space<vmem>>, %arg5: memref<1x32xf32, #tpu.memory_space<vmem>>, %arg6: memref<1x16xf32, #tpu.memory_space<vmem>>, %arg7: memref<1x16xf32, #tpu.memory_space<vmem>>, %arg8: memref<32x32xbf16, #tpu.memory_space<vmem>>, %arg9: memref<32x32xbf16, #tpu.memory_space<vmem>>, %arg10: memref<32x32xbf16, #tpu.memory_space<vmem>>, %arg11: memref<16x32xbf16, #tpu.memory_space<vmem>>, %arg12: memref<16x32xbf16, #tpu.memory_space<vmem>>, %arg13: memref<16x32xbf16, #tpu.memory_space<vmem>>, %arg14: memref<1x32xf32, #tpu.memory_space<vmem>>, %arg15: memref<1x32xf32, #tpu.memory_space<vmem>>, %arg16: memref<1x32xf32, #tpu.memory_space<vmem>>, %arg17: memref<1x8x32xbf16, #tpu.memory_space<vmem>>, %arg18: memref<1x8x32xbf16, #tpu.memory_space<vmem>>, %arg19: memref<1x8x32xbf16, #tpu.memory_space<vmem>>) attributes {dimension_semantics = [#tpu.dimension_semantics<parallel>, #tpu.dimension_semantics<parallel>], iteration_bounds = array<i64: 2, 1>, scalar_prefetch = 0 : i64, scratch_operands = 0 : i64, tpu.core_type = #tpu.core_type<tc>, window_params = [{transform_indices = @transform_0, window_bounds = array<i64: 1, 8, 32>}, {transform_indices = @transform_1, window_bounds = array<i64: 1, 8, 16>}, {pipeline_mode = #tpu.pipeline_mode<synchronous>, transform_indices = @transform_2, window_bounds = array<i64: 1, 32>}, {pipeline_mode = #tpu.pipeline_mode<synchronous>, transform_indices = @transform_3, window_bounds = array<i64: 1, 32>}, {pipeline_mode = #tpu.pipeline_mode<synchronous>, transform_indices = @transform_4, window_bounds = array<i64: 1, 16>}, {pipeline_mode = #tpu.pipeline_mode<synchronous>, transform_indices = @transform_5, window_bounds = array<i64: 1, 16>}, {pipeline_mode = #tpu.pipeline_mode<synchronous>, transform_indices = @transform_6, window_bounds = array<i64: 32, 32>}, {pipeline_mode = #tpu.pipeline_mode<synchronous>, transform_indices = @transform_7, window_bounds = array<i64: 32, 32>}, {pipeline_mode = #tpu.pipeline_mode<synchronous>, transform_indices = @transform_8, window_bounds = array<i64: 32, 32>}, {pipeline_mode = #tpu.pipeline_mode<synchronous>, transform_indices = @transform_9, window_bounds = array<i64: 16, 32>}, {pipeline_mode = #tpu.pipeline_mode<synchronous>, transform_indices = @transform_10, window_bounds = array<i64: 16, 32>}, {pipeline_mode = #tpu.pipeline_mode<synchronous>, transform_indices = @transform_11, window_bounds = array<i64: 16, 32>}, {pipeline_mode = #tpu.pipeline_mode<synchronous>, transform_indices = @transform_12, window_bounds = array<i64: 1, 32>}, {pipeline_mode = #tpu.pipeline_mode<synchronous>, transform_indices = @transform_13, window_bounds = array<i64: 1, 32>}, {pipeline_mode = #tpu.pipeline_mode<synchronous>, transform_indices = @transform_14, window_bounds = array<i64: 1, 32>}, {transform_indices = @transform_15, window_bounds = array<i64: 1, 8, 32>}, {transform_indices = @transform_16, window_bounds = array<i64: 1, 8, 32>}, {transform_indices = @transform_17, window_bounds = array<i64: 1, 8, 32>}]} {
    %c0 = arith.constant 0 : index
    %c0_0 = arith.constant 0 : index
    %c0_1 = arith.constant 0 : index
    %0 = vector.load %arg2[%c0, %c0_0, %c0_1] : memref<1x8x32xf32, #tpu.memory_space<vmem>>, vector<1x8x32xf32>
    %1 = vector.shape_cast %0 : vector<1x8x32xf32> to vector<8x32xf32>
    %cst = arith.constant dense<0.000000e+00> : vector<8xf32>
    %2 = vector.multi_reduction <add>, %1, %cst [1] : vector<8x32xf32> to vector<8xf32>
    %3 = vector.shape_cast %2 : vector<8xf32> to vector<8x1xf32>
    %4 = arith.mulf %1, %1 : vector<8x32xf32>
    %cst_2 = arith.constant dense<0.000000e+00> : vector<8xf32>
    %5 = vector.multi_reduction <add>, %4, %cst_2 [1] : vector<8x32xf32> to vector<8xf32>
    %6 = vector.shape_cast %5 : vector<8xf32> to vector<8x1xf32>
    %c0_3 = arith.constant 0 : index
    %c0_4 = arith.constant 0 : index
    %c0_5 = arith.constant 0 : index
    %7 = vector.load %arg3[%c0_3, %c0_4, %c0_5] : memref<1x8x16xf32, #tpu.memory_space<vmem>>, vector<1x8x16xf32>
    %8 = vector.shape_cast %7 : vector<1x8x16xf32> to vector<8x16xf32>
    %cst_6 = arith.constant dense<0.000000e+00> : vector<8xf32>
    %9 = vector.multi_reduction <add>, %8, %cst_6 [1] : vector<8x16xf32> to vector<8xf32>
    %10 = vector.shape_cast %9 : vector<8xf32> to vector<8x1xf32>
    %11 = arith.addf %3, %10 : vector<8x1xf32>
    %12 = arith.mulf %8, %8 : vector<8x16xf32>
    %cst_7 = arith.constant dense<0.000000e+00> : vector<8xf32>
    %13 = vector.multi_reduction <add>, %12, %cst_7 [1] : vector<8x16xf32> to vector<8xf32>
    %14 = vector.shape_cast %13 : vector<8xf32> to vector<8x1xf32>
    %15 = arith.addf %6, %14 : vector<8x1xf32>
    %cst_8 = arith.constant 0.020833334 : f32
    %16 = vector.broadcast %cst_8 : f32 to vector<8x1xf32>
    %17 = arith.mulf %11, %16 : vector<8x1xf32>
    %cst_9 = arith.constant 0.020833334 : f32
    %18 = vector.broadcast %cst_9 : f32 to vector<8x1xf32>
    %19 = arith.mulf %15, %18 : vector<8x1xf32>
    %20 = arith.mulf %17, %17 : vector<8x1xf32>
    %21 = arith.subf %19, %20 : vector<8x1xf32>
    %cst_10 = arith.constant 9.99999974E-6 : f32
    %22 = vector.broadcast %cst_10 : f32 to vector<8x1xf32>
    %23 = arith.addf %21, %22 : vector<8x1xf32>
    %24 = math.rsqrt %23 : vector<8x1xf32>
    %25 = vector.broadcast %17 : vector<8x1xf32> to vector<8x32xf32>
    %26 = arith.subf %1, %25 : vector<8x32xf32>
    %27 = vector.broadcast %24 : vector<8x1xf32> to vector<8x32xf32>
    %28 = arith.mulf %26, %27 : vector<8x32xf32>
    %c0_11 = arith.constant 0 : index
    %c0_12 = arith.constant 0 : index
    %29 = vector.load %arg4[%c0_11, %c0_12] : memref<1x32xf32, #tpu.memory_space<vmem>>, vector<1x32xf32>
    %30 = vector.shape_cast %29 : vector<1x32xf32> to vector<32xf32>
    %31 = vector.shape_cast %30 : vector<32xf32> to vector<1x32xf32>
    %32 = vector.broadcast %31 : vector<1x32xf32> to vector<8x32xf32>
    %33 = arith.mulf %28, %32 : vector<8x32xf32>
    %c0_13 = arith.constant 0 : index
    %c0_14 = arith.constant 0 : index
    %34 = vector.load %arg5[%c0_13, %c0_14] : memref<1x32xf32, #tpu.memory_space<vmem>>, vector<1x32xf32>
    %35 = vector.shape_cast %34 : vector<1x32xf32> to vector<32xf32>
    %36 = vector.shape_cast %35 : vector<32xf32> to vector<1x32xf32>
    %37 = vector.broadcast %36 : vector<1x32xf32> to vector<8x32xf32>
    %38 = arith.addf %33, %37 : vector<8x32xf32>
    %39 = arith.truncf %38 : vector<8x32xf32> to vector<8x32xbf16>
    %40 = vector.broadcast %17 : vector<8x1xf32> to vector<8x16xf32>
    %41 = arith.subf %8, %40 : vector<8x16xf32>
    %42 = vector.broadcast %24 : vector<8x1xf32> to vector<8x16xf32>
    %43 = arith.mulf %41, %42 : vector<8x16xf32>
    %c0_15 = arith.constant 0 : index
    %c0_16 = arith.constant 0 : index
    %44 = vector.load %arg6[%c0_15, %c0_16] : memref<1x16xf32, #tpu.memory_space<vmem>>, vector<1x16xf32>
    %45 = vector.shape_cast %44 : vector<1x16xf32> to vector<16xf32>
    %46 = vector.shape_cast %45 : vector<16xf32> to vector<1x16xf32>
    %47 = vector.broadcast %46 : vector<1x16xf32> to vector<8x16xf32>
    %48 = arith.mulf %43, %47 : vector<8x16xf32>
    %c0_17 = arith.constant 0 : index
    %c0_18 = arith.constant 0 : index
    %49 = vector.load %arg7[%c0_17, %c0_18] : memref<1x16xf32, #tpu.memory_space<vmem>>, vector<1x16xf32>
    %50 = vector.shape_cast %49 : vector<1x16xf32> to vector<16xf32>
    %51 = vector.shape_cast %50 : vector<16xf32> to vector<1x16xf32>
    %52 = vector.broadcast %51 : vector<1x16xf32> to vector<8x16xf32>
    %53 = arith.addf %48, %52 : vector<8x16xf32>
    %54 = arith.truncf %53 : vector<8x16xf32> to vector<8x16xbf16>
    %c0_19 = arith.constant 0 : index
    %c0_20 = arith.constant 0 : index
    %55 = vector.load %arg8[%c0_19, %c0_20] : memref<32x32xbf16, #tpu.memory_space<vmem>>, vector<32x32xbf16>
    %cst_21 = arith.constant dense<0.000000e+00> : vector<8x32xf32>
    %56 = tpu.matmul %39, %55, %cst_21 {dimension_numbers = #tpu.dot_dimension_numbers<[1], [0], [0], [1], [0, 0, 1, 1], [], []>} : vector<8x32xbf16>, vector<32x32xbf16>, vector<8x32xf32> -> vector<8x32xf32>
    %c0_22 = arith.constant 0 : index
    %c0_23 = arith.constant 0 : index
    %57 = vector.load %arg11[%c0_22, %c0_23] : memref<16x32xbf16, #tpu.memory_space<vmem>>, vector<16x32xbf16>
    %cst_24 = arith.constant dense<0.000000e+00> : vector<8x32xf32>
    %58 = tpu.matmul %54, %57, %cst_24 {dimension_numbers = #tpu.dot_dimension_numbers<[1], [0], [0], [1], [0, 0, 1, 1], [], []>} : vector<8x16xbf16>, vector<16x32xbf16>, vector<8x32xf32> -> vector<8x32xf32>
    %59 = arith.addf %56, %58 : vector<8x32xf32>
    %c0_25 = arith.constant 0 : index
    %c0_26 = arith.constant 0 : index
    %60 = vector.load %arg14[%c0_25, %c0_26] : memref<1x32xf32, #tpu.memory_space<vmem>>, vector<1x32xf32>
    %61 = vector.shape_cast %60 : vector<1x32xf32> to vector<32xf32>
    %62 = vector.shape_cast %61 : vector<32xf32> to vector<1x32xf32>
    %63 = vector.broadcast %62 : vector<1x32xf32> to vector<8x32xf32>
    %64 = arith.addf %59, %63 : vector<8x32xf32>
    %c0_27 = arith.constant 0 : index
    %c0_28 = arith.constant 0 : index
    %65 = vector.load %arg9[%c0_27, %c0_28] : memref<32x32xbf16, #tpu.memory_space<vmem>>, vector<32x32xbf16>
    %cst_29 = arith.constant dense<0.000000e+00> : vector<8x32xf32>
    %66 = tpu.matmul %39, %65, %cst_29 {dimension_numbers = #tpu.dot_dimension_numbers<[1], [0], [0], [1], [0, 0, 1, 1], [], []>} : vector<8x32xbf16>, vector<32x32xbf16>, vector<8x32xf32> -> vector<8x32xf32>
    %c0_30 = arith.constant 0 : index
    %c0_31 = arith.constant 0 : index
    %67 = vector.load %arg12[%c0_30, %c0_31] : memref<16x32xbf16, #tpu.memory_space<vmem>>, vector<16x32xbf16>
    %cst_32 = arith.constant dense<0.000000e+00> : vector<8x32xf32>
    %68 = tpu.matmul %54, %67, %cst_32 {dimension_numbers = #tpu.dot_dimension_numbers<[1], [0], [0], [1], [0, 0, 1, 1], [], []>} : vector<8x16xbf16>, vector<16x32xbf16>, vector<8x32xf32> -> vector<8x32xf32>
    %69 = arith.addf %66, %68 : vector<8x32xf32>
    %c0_33 = arith.constant 0 : index
    %c0_34 = arith.constant 0 : index
    %70 = vector.load %arg15[%c0_33, %c0_34] : memref<1x32xf32, #tpu.memory_space<vmem>>, vector<1x32xf32>
    %71 = vector.shape_cast %70 : vector<1x32xf32> to vector<32xf32>
    %72 = vector.shape_cast %71 : vector<32xf32> to vector<1x32xf32>
    %73 = vector.broadcast %72 : vector<1x32xf32> to vector<8x32xf32>
    %74 = arith.addf %69, %73 : vector<8x32xf32>
    %c0_35 = arith.constant 0 : index
    %c0_36 = arith.constant 0 : index
    %75 = vector.load %arg10[%c0_35, %c0_36] : memref<32x32xbf16, #tpu.memory_space<vmem>>, vector<32x32xbf16>
    %cst_37 = arith.constant dense<0.000000e+00> : vector<8x32xf32>
    %76 = tpu.matmul %39, %75, %cst_37 {dimension_numbers = #tpu.dot_dimension_numbers<[1], [0], [0], [1], [0, 0, 1, 1], [], []>} : vector<8x32xbf16>, vector<32x32xbf16>, vector<8x32xf32> -> vector<8x32xf32>
    %c0_38 = arith.constant 0 : index
    %c0_39 = arith.constant 0 : index
    %77 = vector.load %arg13[%c0_38, %c0_39] : memref<16x32xbf16, #tpu.memory_space<vmem>>, vector<16x32xbf16>
    %cst_40 = arith.constant dense<0.000000e+00> : vector<8x32xf32>
    %78 = tpu.matmul %54, %77, %cst_40 {dimension_numbers = #tpu.dot_dimension_numbers<[1], [0], [0], [1], [0, 0, 1, 1], [], []>} : vector<8x16xbf16>, vector<16x32xbf16>, vector<8x32xf32> -> vector<8x32xf32>
    %79 = arith.addf %76, %78 : vector<8x32xf32>
    %c0_41 = arith.constant 0 : index
    %c0_42 = arith.constant 0 : index
    %80 = vector.load %arg16[%c0_41, %c0_42] : memref<1x32xf32, #tpu.memory_space<vmem>>, vector<1x32xf32>
    %81 = vector.shape_cast %80 : vector<1x32xf32> to vector<32xf32>
    %82 = vector.shape_cast %81 : vector<32xf32> to vector<1x32xf32>
    %83 = vector.broadcast %82 : vector<1x32xf32> to vector<8x32xf32>
    %84 = arith.addf %79, %83 : vector<8x32xf32>
    %cst_43 = arith.constant 0.353553385 : f32
    %85 = vector.broadcast %cst_43 : f32 to vector<8x32xf32>
    %86 = arith.mulf %64, %85 : vector<8x32xf32>
    %87 = arith.truncf %86 : vector<8x32xf32> to vector<8x32xbf16>
    %c0_44 = arith.constant 0 : index
    %c0_45 = arith.constant 0 : index
    %c0_46 = arith.constant 0 : index
    %88 = vector.load %arg17[%c0_44, %c0_45, %c0_46] : memref<1x8x32xbf16, #tpu.memory_space<vmem>>, vector<1x8x32xbf16>
    %89 = vector.shape_cast %88 : vector<1x8x32xbf16> to vector<8x32xbf16>
    %90 = vector.shape_cast %87 : vector<8x32xbf16> to vector<1x8x32xbf16>
    tpu.vector_store %arg17[%c0_44, %c0_45, %c0_46], %90 {strides = array<i32>} : memref<1x8x32xbf16, #tpu.memory_space<vmem>>, vector<1x8x32xbf16>,
    %91 = arith.truncf %74 : vector<8x32xf32> to vector<8x32xbf16>
    %c0_47 = arith.constant 0 : index
    %c0_48 = arith.constant 0 : index
    %c0_49 = arith.constant 0 : index
    %92 = vector.load %arg18[%c0_47, %c0_48, %c0_49] : memref<1x8x32xbf16, #tpu.memory_space<vmem>>, vector<1x8x32xbf16>
    %93 = vector.shape_cast %92 : vector<1x8x32xbf16> to vector<8x32xbf16>
    %94 = vector.shape_cast %91 : vector<8x32xbf16> to vector<1x8x32xbf16>
    tpu.vector_store %arg18[%c0_47, %c0_48, %c0_49], %94 {strides = array<i32>} : memref<1x8x32xbf16, #tpu.memory_space<vmem>>, vector<1x8x32xbf16>,
    %95 = arith.truncf %84 : vector<8x32xf32> to vector<8x32xbf16>
    %c0_50 = arith.constant 0 : index
    %c0_51 = arith.constant 0 : index
    %c0_52 = arith.constant 0 : index
    %96 = vector.load %arg19[%c0_50, %c0_51, %c0_52] : memref<1x8x32xbf16, #tpu.memory_space<vmem>>, vector<1x8x32xbf16>
    %97 = vector.shape_cast %96 : vector<1x8x32xbf16> to vector<8x32xbf16>
    %98 = vector.shape_cast %95 : vector<8x32xbf16> to vector<1x8x32xbf16>
    tpu.vector_store %arg19[%c0_50, %c0_51, %c0_52], %98 {strides = array<i32>} : memref<1x8x32xbf16, #tpu.memory_space<vmem>>, vector<1x8x32xbf16>,
    return
  }
  func.func @transform_0(%arg0: i32, %arg1: i32) -> (i32, i32, i32) {
    %c0_i32 = arith.constant 0 : i32
    %c0_i32_0 = arith.constant 0 : i32
    return %arg0, %arg1, %c0_i32 : i32, i32, i32
  }
  func.func @transform_1(%arg0: i32, %arg1: i32) -> (i32, i32, i32) {
    %c0_i32 = arith.constant 0 : i32
    %c0_i32_0 = arith.constant 0 : i32
    return %arg0, %arg1, %c0_i32 : i32, i32, i32
  }
  func.func @transform_2(%arg0: i32, %arg1: i32) -> (i32, i32) {
    %c0_i32 = arith.constant 0 : i32
    %c0_i32_0 = arith.constant 0 : i32
    %c0_i32_1 = arith.constant 0 : i32
    return %c0_i32, %c0_i32_0 : i32, i32
  }
  func.func @transform_3(%arg0: i32, %arg1: i32) -> (i32, i32) {
    %c0_i32 = arith.constant 0 : i32
    %c0_i32_0 = arith.constant 0 : i32
    %c0_i32_1 = arith.constant 0 : i32
    return %c0_i32, %c0_i32_0 : i32, i32
  }
  func.func @transform_4(%arg0: i32, %arg1: i32) -> (i32, i32) {
    %c0_i32 = arith.constant 0 : i32
    %c0_i32_0 = arith.constant 0 : i32
    %c0_i32_1 = arith.constant 0 : i32
    return %c0_i32, %c0_i32_0 : i32, i32
  }
  func.func @transform_5(%arg0: i32, %arg1: i32) -> (i32, i32) {
    %c0_i32 = arith.constant 0 : i32
    %c0_i32_0 = arith.constant 0 : i32
    %c0_i32_1 = arith.constant 0 : i32
    return %c0_i32, %c0_i32_0 : i32, i32
  }
  func.func @transform_6(%arg0: i32, %arg1: i32) -> (i32, i32) {
    %c0_i32 = arith.constant 0 : i32
    %c0_i32_0 = arith.constant 0 : i32
    %c0_i32_1 = arith.constant 0 : i32
    return %c0_i32, %c0_i32_0 : i32, i32
  }
  func.func @transform_7(%arg0: i32, %arg1: i32) -> (i32, i32) {
    %c0_i32 = arith.constant 0 : i32
    %c0_i32_0 = arith.constant 0 : i32
    %c0_i32_1 = arith.constant 0 : i32
    return %c0_i32, %c0_i32_0 : i32, i32
  }
  func.func @transform_8(%arg0: i32, %arg1: i32) -> (i32, i32) {
    %c0_i32 = arith.constant 0 : i32
    %c0_i32_0 = arith.constant 0 : i32
    %c0_i32_1 = arith.constant 0 : i32
    return %c0_i32, %c0_i32_0 : i32, i32
  }
  func.func @transform_9(%arg0: i32, %arg1: i32) -> (i32, i32) {
    %c0_i32 = arith.constant 0 : i32
    %c0_i32_0 = arith.constant 0 : i32
    %c0_i32_1 = arith.constant 0 : i32
    return %c0_i32, %c0_i32_0 : i32, i32
  }
  func.func @transform_10(%arg0: i32, %arg1: i32) -> (i32, i32) {
    %c0_i32 = arith.constant 0 : i32
    %c0_i32_0 = arith.constant 0 : i32
    %c0_i32_1 = arith.constant 0 : i32
    return %c0_i32, %c0_i32_0 : i32, i32
  }
  func.func @transform_11(%arg0: i32, %arg1: i32) -> (i32, i32) {
    %c0_i32 = arith.constant 0 : i32
    %c0_i32_0 = arith.constant 0 : i32
    %c0_i32_1 = arith.constant 0 : i32
    return %c0_i32, %c0_i32_0 : i32, i32
  }
  func.func @transform_12(%arg0: i32, %arg1: i32) -> (i32, i32) {
    %c0_i32 = arith.constant 0 : i32
    %c0_i32_0 = arith.constant 0 : i32
    %c0_i32_1 = arith.constant 0 : i32
    return %c0_i32, %c0_i32_0 : i32, i32
  }
  func.func @transform_13(%arg0: i32, %arg1: i32) -> (i32, i32) {
    %c0_i32 = arith.constant 0 : i32
    %c0_i32_0 = arith.constant 0 : i32
    %c0_i32_1 = arith.constant 0 : i32
    return %c0_i32, %c0_i32_0 : i32, i32
  }
  func.func @transform_14(%arg0: i32, %arg1: i32) -> (i32, i32) {
    %c0_i32 = arith.constant 0 : i32
    %c0_i32_0 = arith.constant 0 : i32
    %c0_i32_1 = arith.constant 0 : i32
    return %c0_i32, %c0_i32_0 : i32, i32
  }
  func.func @transform_15(%arg0: i32, %arg1: i32) -> (i32, i32, i32) {
    %c0_i32 = arith.constant 0 : i32
    %c0_i32_0 = arith.constant 0 : i32
    return %arg0, %arg1, %c0_i32 : i32, i32, i32
  }
  func.func @transform_16(%arg0: i32, %arg1: i32) -> (i32, i32, i32) {
    %c0_i32 = arith.constant 0 : i32
    %c0_i32_0 = arith.constant 0 : i32
    return %arg0, %arg1, %c0_i32 : i32, i32, i32
  }
  func.func @transform_17(%arg0: i32, %arg1: i32) -> (i32, i32, i32) {
    %c0_i32 = arith.constant 0 : i32
    %c0_i32_0 = arith.constant 0 : i32
    return %arg0, %arg1, %c0_i32 : i32, i32, i32
  }
}

module attributes {stable_mosaic.version = 11 : i64} {
  func.func @_ln_qkv_kernel(%arg0: i32, %arg1: i32, %arg2: memref<1x8x32xf32, #tpu.memory_space<vmem>>, %arg3: memref<1x8x16xf32, #tpu.memory_space<vmem>>, %arg4: memref<1x32xf32, #tpu.memory_space<vmem>>, %arg5: memref<1x32xf32, #tpu.memory_space<vmem>>, %arg6: memref<1x16xf32, #tpu.memory_space<vmem>>, %arg7: memref<1x16xf32, #tpu.memory_space<vmem>>, %arg8: memref<32x32xbf16, #tpu.memory_space<vmem>>, %arg9: memref<32x32xbf16, #tpu.memory_space<vmem>>, %arg10: memref<32x32xbf16, #tpu.memory_space<vmem>>, %arg11: memref<16x32xbf16, #tpu.memory_space<vmem>>, %arg12: memref<16x32xbf16, #tpu.memory_space<vmem>>, %arg13: memref<16x32xbf16, #tpu.memory_space<vmem>>, %arg14: memref<1x32xf32, #tpu.memory_space<vmem>>, %arg15: memref<1x32xf32, #tpu.memory_space<vmem>>, %arg16: memref<1x32xf32, #tpu.memory_space<vmem>>, %arg17: memref<1x8x32xbf16, #tpu.memory_space<vmem>>, %arg18: memref<1x8x32xbf16, #tpu.memory_space<vmem>>, %arg19: memref<1x8x32xbf16, #tpu.memory_space<vmem>>) attributes {dimension_semantics = [#tpu.dimension_semantics<parallel>, #tpu.dimension_semantics<parallel>], iteration_bounds = array<i64: 2, 1>, scalar_prefetch = 0 : i64, scratch_operands = 0 : i64, tpu.core_type = #tpu.core_type<tc>, window_params = [{transform_indices = @transform_0, window_bounds = array<i64: 1, 8, 32>}, {transform_indices = @transform_1, window_bounds = array<i64: 1, 8, 16>}, {pipeline_mode = #tpu.pipeline_mode<synchronous>, transform_indices = @transform_2, window_bounds = array<i64: 1, 32>}, {pipeline_mode = #tpu.pipeline_mode<synchronous>, transform_indices = @transform_3, window_bounds = array<i64: 1, 32>}, {pipeline_mode = #tpu.pipeline_mode<synchronous>, transform_indices = @transform_4, window_bounds = array<i64: 1, 16>}, {pipeline_mode = #tpu.pipeline_mode<synchronous>, transform_indices = @transform_5, window_bounds = array<i64: 1, 16>}, {pipeline_mode = #tpu.pipeline_mode<synchronous>, transform_indices = @transform_6, window_bounds = array<i64: 32, 32>}, {pipeline_mode = #tpu.pipeline_mode<synchronous>, transform_indices = @transform_7, window_bounds = array<i64: 32, 32>}, {pipeline_mode = #tpu.pipeline_mode<synchronous>, transform_indices = @transform_8, window_bounds = array<i64: 32, 32>}, {pipeline_mode = #tpu.pipeline_mode<synchronous>, transform_indices = @transform_9, window_bounds = array<i64: 16, 32>}, {pipeline_mode = #tpu.pipeline_mode<synchronous>, transform_indices = @transform_10, window_bounds = array<i64: 16, 32>}, {pipeline_mode = #tpu.pipeline_mode<synchronous>, transform_indices = @transform_11, window_bounds = array<i64: 16, 32>}, {pipeline_mode = #tpu.pipeline_mode<synchronous>, transform_indices = @transform_12, window_bounds = array<i64: 1, 32>}, {pipeline_mode = #tpu.pipeline_mode<synchronous>, transform_indices = @transform_13, window_bounds = array<i64: 1, 32>}, {pipeline_mode = #tpu.pipeline_mode<synchronous>, transform_indices = @transform_14, window_bounds = array<i64: 1, 32>}, {transform_indices = @transform_15, window_bounds = array<i64: 1, 8, 32>}, {transform_indices = @transform_16, window_bounds = array<i64: 1, 8, 32>}, {transform_indices = @transform_17, window_bounds = array<i64: 1, 8, 32>}]} {
    %c0 = arith.constant 0 : index
    %c0_0 = arith.constant 0 : index
    %c0_1 = arith.constant 0 : index
    %0 = vector.load %arg2[%c0, %c0_0, %c0_1] : memref<1x8x32xf32, #tpu.memory_space<vmem>>, vector<1x8x32xf32>
    %1 = vector.shape_cast %0 : vector<1x8x32xf32> to vector<8x32xf32>
    %cst = arith.constant dense<0.000000e+00> : vector<8xf32>
    %2 = vector.multi_reduction <add>, %1, %cst [1] : vector<8x32xf32> to vector<8xf32>
    %3 = vector.shape_cast %2 : vector<8xf32> to vector<8x1xf32>
    %4 = arith.mulf %1, %1 : vector<8x32xf32>
    %cst_2 = arith.constant dense<0.000000e+00> : vector<8xf32>
    %5 = vector.multi_reduction <add>, %4, %cst_2 [1] : vector<8x32xf32> to vector<8xf32>
    %6 = vector.shape_cast %5 : vector<8xf32> to vector<8x1xf32>
    %c0_3 = arith.constant 0 : index
    %c0_4 = arith.constant 0 : index
    %c0_5 = arith.constant 0 : index
    %7 = vector.load %arg3[%c0_3, %c0_4, %c0_5] : memref<1x8x16xf32, #tpu.memory_space<vmem>>, vector<1x8x16xf32>
    %8 = vector.shape_cast %7 : vector<1x8x16xf32> to vector<8x16xf32>
    %cst_6 = arith.constant dense<0.000000e+00> : vector<8xf32>
    %9 = vector.multi_reduction <add>, %8, %cst_6 [1] : vector<8x16xf32> to vector<8xf32>
    %10 = vector.shape_cast %9 : vector<8xf32> to vector<8x1xf32>
    %11 = arith.addf %3, %10 : vector<8x1xf32>
    %12 = arith.mulf %8, %8 : vector<8x16xf32>
    %cst_7 = arith.constant dense<0.000000e+00> : vector<8xf32>
    %13 = vector.multi_reduction <add>, %12, %cst_7 [1] : vector<8x16xf32> to vector<8xf32>
    %14 = vector.shape_cast %13 : vector<8xf32> to vector<8x1xf32>
    %15 = arith.addf %6, %14 : vector<8x1xf32>
    %cst_8 = arith.constant 0.020833334 : f32
    %16 = vector.broadcast %cst_8 : f32 to vector<8x1xf32>
    %17 = arith.mulf %11, %16 : vector<8x1xf32>
    %cst_9 = arith.constant 0.020833334 : f32
    %18 = vector.broadcast %cst_9 : f32 to vector<8x1xf32>
    %19 = arith.mulf %15, %18 : vector<8x1xf32>
    %20 = arith.mulf %17, %17 : vector<8x1xf32>
    %21 = arith.subf %19, %20 : vector<8x1xf32>
    %cst_10 = arith.constant 9.99999974E-6 : f32
    %22 = vector.broadcast %cst_10 : f32 to vector<8x1xf32>
    %23 = arith.addf %21, %22 : vector<8x1xf32>
    %24 = math.rsqrt %23 : vector<8x1xf32>
    %25 = vector.broadcast %17 : vector<8x1xf32> to vector<8x32xf32>
    %26 = arith.subf %1, %25 : vector<8x32xf32>
    %27 = vector.broadcast %24 : vector<8x1xf32> to vector<8x32xf32>
    %28 = arith.mulf %26, %27 : vector<8x32xf32>
    %c0_11 = arith.constant 0 : index
    %c0_12 = arith.constant 0 : index
    %29 = vector.load %arg4[%c0_11, %c0_12] : memref<1x32xf32, #tpu.memory_space<vmem>>, vector<1x32xf32>
    %30 = vector.shape_cast %29 : vector<1x32xf32> to vector<32xf32>
    %31 = vector.shape_cast %30 : vector<32xf32> to vector<1x32xf32>
    %32 = vector.broadcast %31 : vector<1x32xf32> to vector<8x32xf32>
    %33 = arith.mulf %28, %32 : vector<8x32xf32>
    %c0_13 = arith.constant 0 : index
    %c0_14 = arith.constant 0 : index
    %34 = vector.load %arg5[%c0_13, %c0_14] : memref<1x32xf32, #tpu.memory_space<vmem>>, vector<1x32xf32>
    %35 = vector.shape_cast %34 : vector<1x32xf32> to vector<32xf32>
    %36 = vector.shape_cast %35 : vector<32xf32> to vector<1x32xf32>
    %37 = vector.broadcast %36 : vector<1x32xf32> to vector<8x32xf32>
    %38 = arith.addf %33, %37 : vector<8x32xf32>
    %39 = arith.truncf %38 : vector<8x32xf32> to vector<8x32xbf16>
    %40 = vector.broadcast %17 : vector<8x1xf32> to vector<8x16xf32>
    %41 = arith.subf %8, %40 : vector<8x16xf32>
    %42 = vector.broadcast %24 : vector<8x1xf32> to vector<8x16xf32>
    %43 = arith.mulf %41, %42 : vector<8x16xf32>
    %c0_15 = arith.constant 0 : index
    %c0_16 = arith.constant 0 : index
    %44 = vector.load %arg6[%c0_15, %c0_16] : memref<1x16xf32, #tpu.memory_space<vmem>>, vector<1x16xf32>
    %45 = vector.shape_cast %44 : vector<1x16xf32> to vector<16xf32>
    %46 = vector.shape_cast %45 : vector<16xf32> to vector<1x16xf32>
    %47 = vector.broadcast %46 : vector<1x16xf32> to vector<8x16xf32>
    %48 = arith.mulf %43, %47 : vector<8x16xf32>
    %c0_17 = arith.constant 0 : index
    %c0_18 = arith.constant 0 : index
    %49 = vector.load %arg7[%c0_17, %c0_18] : memref<1x16xf32, #tpu.memory_space<vmem>>, vector<1x16xf32>
    %50 = vector.shape_cast %49 : vector<1x16xf32> to vector<16xf32>
    %51 = vector.shape_cast %50 : vector<16xf32> to vector<1x16xf32>
    %52 = vector.broadcast %51 : vector<1x16xf32> to vector<8x16xf32>
    %53 = arith.addf %48, %52 : vector<8x16xf32>
    %54 = arith.truncf %53 : vector<8x16xf32> to vector<8x16xbf16>
    %c0_19 = arith.constant 0 : index
    %c0_20 = arith.constant 0 : index
    %55 = vector.load %arg8[%c0_19, %c0_20] : memref<32x32xbf16, #tpu.memory_space<vmem>>, vector<32x32xbf16>
    %cst_21 = arith.constant dense<0.000000e+00> : vector<8x32xf32>
    %56 = tpu.matmul %39, %55, %cst_21 {dimension_numbers = #tpu.dot_dimension_numbers<[1], [0], [0], [1], [0, 0, 1, 1], [], []>} : vector<8x32xbf16>, vector<32x32xbf16>, vector<8x32xf32> -> vector<8x32xf32>
    %c0_22 = arith.constant 0 : index
    %c0_23 = arith.constant 0 : index
    %57 = vector.load %arg11[%c0_22, %c0_23] : memref<16x32xbf16, #tpu.memory_space<vmem>>, vector<16x32xbf16>
    %cst_24 = arith.constant dense<0.000000e+00> : vector<8x32xf32>
    %58 = tpu.matmul %54, %57, %cst_24 {dimension_numbers = #tpu.dot_dimension_numbers<[1], [0], [0], [1], [0, 0, 1, 1], [], []>} : vector<8x16xbf16>, vector<16x32xbf16>, vector<8x32xf32> -> vector<8x32xf32>
    %59 = arith.addf %56, %58 : vector<8x32xf32>
    %c0_25 = arith.constant 0 : index
    %c0_26 = arith.constant 0 : index
    %60 = vector.load %arg14[%c0_25, %c0_26] : memref<1x32xf32, #tpu.memory_space<vmem>>, vector<1x32xf32>
    %61 = vector.shape_cast %60 : vector<1x32xf32> to vector<32xf32>
    %62 = vector.shape_cast %61 : vector<32xf32> to vector<1x32xf32>
    %63 = vector.broadcast %62 : vector<1x32xf32> to vector<8x32xf32>
    %64 = arith.addf %59, %63 : vector<8x32xf32>
    %c0_27 = arith.constant 0 : index
    %c0_28 = arith.constant 0 : index
    %65 = vector.load %arg9[%c0_27, %c0_28] : memref<32x32xbf16, #tpu.memory_space<vmem>>, vector<32x32xbf16>
    %cst_29 = arith.constant dense<0.000000e+00> : vector<8x32xf32>
    %66 = tpu.matmul %39, %65, %cst_29 {dimension_numbers = #tpu.dot_dimension_numbers<[1], [0], [0], [1], [0, 0, 1, 1], [], []>} : vector<8x32xbf16>, vector<32x32xbf16>, vector<8x32xf32> -> vector<8x32xf32>
    %c0_30 = arith.constant 0 : index
    %c0_31 = arith.constant 0 : index
    %67 = vector.load %arg12[%c0_30, %c0_31] : memref<16x32xbf16, #tpu.memory_space<vmem>>, vector<16x32xbf16>
    %cst_32 = arith.constant dense<0.000000e+00> : vector<8x32xf32>
    %68 = tpu.matmul %54, %67, %cst_32 {dimension_numbers = #tpu.dot_dimension_numbers<[1], [0], [0], [1], [0, 0, 1, 1], [], []>} : vector<8x16xbf16>, vector<16x32xbf16>, vector<8x32xf32> -> vector<8x32xf32>
    %69 = arith.addf %66, %68 : vector<8x32xf32>
    %c0_33 = arith.constant 0 : index
    %c0_34 = arith.constant 0 : index
    %70 = vector.load %arg15[%c0_33, %c0_34] : memref<1x32xf32, #tpu.memory_space<vmem>>, vector<1x32xf32>
    %71 = vector.shape_cast %70 : vector<1x32xf32> to vector<32xf32>
    %72 = vector.shape_cast %71 : vector<32xf32> to vector<1x32xf32>
    %73 = vector.broadcast %72 : vector<1x32xf32> to vector<8x32xf32>
    %74 = arith.addf %69, %73 : vector<8x32xf32>
    %c0_35 = arith.constant 0 : index
    %c0_36 = arith.constant 0 : index
    %75 = vector.load %arg10[%c0_35, %c0_36] : memref<32x32xbf16, #tpu.memory_space<vmem>>, vector<32x32xbf16>
    %cst_37 = arith.constant dense<0.000000e+00> : vector<8x32xf32>
    %76 = tpu.matmul %39, %75, %cst_37 {dimension_numbers = #tpu.dot_dimension_numbers<[1], [0], [0], [1], [0, 0, 1, 1], [], []>} : vector<8x32xbf16>, vector<32x32xbf16>, vector<8x32xf32> -> vector<8x32xf32>
    %c0_38 = arith.constant 0 : index
    %c0_39 = arith.constant 0 : index
    %77 = vector.load %arg13[%c0_38, %c0_39] : memref<16x32xbf16, #tpu.memory_space<vmem>>, vector<16x32xbf16>
    %cst_40 = arith.constant dense<0.000000e+00> : vector<8x32xf32>
    %78 = tpu.matmul %54, %77, %cst_40 {dimension_numbers = #tpu.dot_dimension_numbers<[1], [0], [0], [1], [0, 0, 1, 1], [], []>} : vector<8x16xbf16>, vector<16x32xbf16>, vector<8x32xf32> -> vector<8x32xf32>
    %79 = arith.addf %76, %78 : vector<8x32xf32>
    %c0_41 = arith.constant 0 : index
    %c0_42 = arith.constant 0 : index
    %80 = vector.load %arg16[%c0_41, %c0_42] : memref<1x32xf32, #tpu.memory_space<vmem>>, vector<1x32xf32>
    %81 = vector.shape_cast %80 : vector<1x32xf32> to vector<32xf32>
    %82 = vector.shape_cast %81 : vector<32xf32> to vector<1x32xf32>
    %83 = vector.broadcast %82 : vector<1x32xf32> to vector<8x32xf32>
    %84 = arith.addf %79, %83 : vector<8x32xf32>
    %cst_43 = arith.constant 0.353553385 : f32
    %85 = vector.broadcast %cst_43 : f32 to vector<8x32xf32>
    %86 = arith.mulf %64, %85 : vector<8x32xf32>
    %87 = arith.truncf %86 : vector<8x32xf32> to vector<8x32xbf16>
    %c0_44 = arith.constant 0 : index
    %c0_45 = arith.constant 0 : index
    %c0_46 = arith.constant 0 : index
    %88 = vector.load %arg17[%c0_44, %c0_45, %c0_46] : memref<1x8x32xbf16, #tpu.memory_space<vmem>>, vector<1x8x32xbf16>
    %89 = vector.shape_cast %88 : vector<1x8x32xbf16> to vector<8x32xbf16>
    %90 = vector.shape_cast %87 : vector<8x32xbf16> to vector<1x8x32xbf16>
    tpu.vector_store %arg17[%c0_44, %c0_45, %c0_46], %90 {strides = array<i32>} : memref<1x8x32xbf16, #tpu.memory_space<vmem>>, vector<1x8x32xbf16>,
    %91 = arith.truncf %74 : vector<8x32xf32> to vector<8x32xbf16>
    %c0_47 = arith.constant 0 : index
    %c0_48 = arith.constant 0 : index
    %c0_49 = arith.constant 0 : index
    %92 = vector.load %arg18[%c0_47, %c0_48, %c0_49] : memref<1x8x32xbf16, #tpu.memory_space<vmem>>, vector<1x8x32xbf16>
    %93 = vector.shape_cast %92 : vector<1x8x32xbf16> to vector<8x32xbf16>
    %94 = vector.shape_cast %91 : vector<8x32xbf16> to vector<1x8x32xbf16>
    tpu.vector_store %arg18[%c0_47, %c0_48, %c0_49], %94 {strides = array<i32>} : memref<1x8x32xbf16, #tpu.memory_space<vmem>>, vector<1x8x32xbf16>,
    %95 = arith.truncf %84 : vector<8x32xf32> to vector<8x32xbf16>
    %c0_50 = arith.constant 0 : index
    %c0_51 = arith.constant 0 : index
    %c0_52 = arith.constant 0 : index
    %96 = vector.load %arg19[%c0_50, %c0_51, %c0_52] : memref<1x8x32xbf16, #tpu.memory_space<vmem>>, vector<1x8x32xbf16>
    %97 = vector.shape_cast %96 : vector<1x8x32xbf16> to vector<8x32xbf16>
    %98 = vector.shape_cast %95 : vector<8x32xbf16> to vector<1x8x32xbf16>
    tpu.vector_store %arg19[%c0_50, %c0_51, %c0_52], %98 {strides = array<i32>} : memref<1x8x32xbf16, #tpu.memory_space<vmem>>, vector<1x8x32xbf16>,
    return
  }
  func.func @transform_0(%arg0: i32, %arg1: i32) -> (i32, i32, i32) {
    %c0_i32 = arith.constant 0 : i32
    %c0_i32_0 = arith.constant 0 : i32
    return %arg0, %arg1, %c0_i32 : i32, i32, i32
  }
  func.func @transform_1(%arg0: i32, %arg1: i32) -> (i32, i32, i32) {
    %c0_i32 = arith.constant 0 : i32
    %c0_i32_0 = arith.constant 0 : i32
    return %arg0, %arg1, %c0_i32 : i32, i32, i32
  }
  func.func @transform_2(%arg0: i32, %arg1: i32) -> (i32, i32) {
    %c0_i32 = arith.constant 0 : i32
    %c0_i32_0 = arith.constant 0 : i32
    %c0_i32_1 = arith.constant 0 : i32
    return %c0_i32, %c0_i32_0 : i32, i32
  }
  func.func @transform_3(%arg0: i32, %arg1: i32) -> (i32, i32) {
    %c0_i32 = arith.constant 0 : i32
    %c0_i32_0 = arith.constant 0 : i32
    %c0_i32_1 = arith.constant 0 : i32
    return %c0_i32, %c0_i32_0 : i32, i32
  }
  func.func @transform_4(%arg0: i32, %arg1: i32) -> (i32, i32) {
    %c0_i32 = arith.constant 0 : i32
    %c0_i32_0 = arith.constant 0 : i32
    %c0_i32_1 = arith.constant 0 : i32
    return %c0_i32, %c0_i32_0 : i32, i32
  }
  func.func @transform_5(%arg0: i32, %arg1: i32) -> (i32, i32) {
    %c0_i32 = arith.constant 0 : i32
    %c0_i32_0 = arith.constant 0 : i32
    %c0_i32_1 = arith.constant 0 : i32
    return %c0_i32, %c0_i32_0 : i32, i32
  }
  func.func @transform_6(%arg0: i32, %arg1: i32) -> (i32, i32) {
    %c0_i32 = arith.constant 0 : i32
    %c0_i32_0 = arith.constant 0 : i32
    %c0_i32_1 = arith.constant 0 : i32
    return %c0_i32, %c0_i32_0 : i32, i32
  }
  func.func @transform_7(%arg0: i32, %arg1: i32) -> (i32, i32) {
    %c0_i32 = arith.constant 0 : i32
    %c0_i32_0 = arith.constant 0 : i32
    %c0_i32_1 = arith.constant 0 : i32
    return %c0_i32, %c0_i32_0 : i32, i32
  }
  func.func @transform_8(%arg0: i32, %arg1: i32) -> (i32, i32) {
    %c0_i32 = arith.constant 0 : i32
    %c0_i32_0 = arith.constant 0 : i32
    %c0_i32_1 = arith.constant 0 : i32
    return %c0_i32, %c0_i32_0 : i32, i32
  }
  func.func @transform_9(%arg0: i32, %arg1: i32) -> (i32, i32) {
    %c0_i32 = arith.constant 0 : i32
    %c0_i32_0 = arith.constant 0 : i32
    %c0_i32_1 = arith.constant 0 : i32
    return %c0_i32, %c0_i32_0 : i32, i32
  }
  func.func @transform_10(%arg0: i32, %arg1: i32) -> (i32, i32) {
    %c0_i32 = arith.constant 0 : i32
    %c0_i32_0 = arith.constant 0 : i32
    %c0_i32_1 = arith.constant 0 : i32
    return %c0_i32, %c0_i32_0 : i32, i32
  }
  func.func @transform_11(%arg0: i32, %arg1: i32) -> (i32, i32) {
    %c0_i32 = arith.constant 0 : i32
    %c0_i32_0 = arith.constant 0 : i32
    %c0_i32_1 = arith.constant 0 : i32
    return %c0_i32, %c0_i32_0 : i32, i32
  }
  func.func @transform_12(%arg0: i32, %arg1: i32) -> (i32, i32) {
    %c0_i32 = arith.constant 0 : i32
    %c0_i32_0 = arith.constant 0 : i32
    %c0_i32_1 = arith.constant 0 : i32
    return %c0_i32, %c0_i32_0 : i32, i32
  }
  func.func @transform_13(%arg0: i32, %arg1: i32) -> (i32, i32) {
    %c0_i32 = arith.constant 0 : i32
    %c0_i32_0 = arith.constant 0 : i32
    %c0_i32_1 = arith.constant 0 : i32
    return %c0_i32, %c0_i32_0 : i32, i32
  }
  func.func @transform_14(%arg0: i32, %arg1: i32) -> (i32, i32) {
    %c0_i32 = arith.constant 0 : i32
    %c0_i32_0 = arith.constant 0 : i32
    %c0_i32_1 = arith.constant 0 : i32
    return %c0_i32, %c0_i32_0 : i32, i32
  }
  func.func @transform_15(%arg0: i32, %arg1: i32) -> (i32, i32, i32) {
    %c0_i32 = arith.constant 0 : i32
    %c0_i32_0 = arith.constant 0 : i32
    return %arg0, %arg1, %c0_i32 : i32, i32, i32
  }
  func.func @transform_16(%arg0: i32, %arg1: i32) -> (i32, i32, i32) {
    %c0_i32 = arith.constant 0 : i32
    %c0_i32_0 = arith.constant 0 : i32
    return %arg0, %arg1, %c0_i32 : i32, i32, i32
  }
  func.func @transform_17(%arg0: i32, %arg1: i32) -> (i32, i32, i32) {
    %c0_i32 = arith.constant 0 : i32
    %c0_i32_0 = arith.constant 0 : i32
    return %arg0, %arg1, %c0_i32 : i32, i32, i32
  }
}

</mosaic_0001>

<llo_original>
// kernel: tpu_custom_call.1
$region0: #{tpu_custom_call.1}
  #allocation0 [shape = 'u32[]', space=smem, size = 0x4, offset = 0x4, fixed_abs, tag = 'smem constant byte address 0x4 - core index']
  #allocation1 [shape = 'u32[144,128]{1,0:T(1,128)}', space=vmem, size = 0x12000, scoped, tag = 'internal scratch']
  %s0 = inlined_call_operand.hbm [shape: f32[2,8,32], index: 0, kind: input, shape index: {}]
  %s1 = inlined_call_operand.hbm [shape: f32[2,8,16], index: 1, kind: input, shape index: {}]
  %s2 = inlined_call_operand.vmem [shape: f32[1,32], index: 2, kind: input, shape index: {}]
  %s3 = inlined_call_operand.hbm [shape: f32[1,32], index: 3, kind: input, shape index: {}]
  %s4 = inlined_call_operand.hbm [shape: f32[1,16], index: 4, kind: input, shape index: {}]
  %s5 = inlined_call_operand.hbm [shape: f32[1,16], index: 5, kind: input, shape index: {}]
  %s6 = inlined_call_operand.vmem [shape: bf16[32,32], index: 6, kind: input, shape index: {}]
  %s7 = inlined_call_operand.hbm [shape: bf16[32,32], index: 7, kind: input, shape index: {}]
  %s8 = inlined_call_operand.hbm [shape: bf16[32,32], index: 8, kind: input, shape index: {}]
  %s9 = inlined_call_operand.vmem [shape: bf16[16,32], index: 9, kind: input, shape index: {}]
  %s10 = inlined_call_operand.vmem [shape: bf16[16,32], index: 10, kind: input, shape index: {}]
  %s11 = inlined_call_operand.vmem [shape: bf16[16,32], index: 11, kind: input, shape index: {}]
  %s12 = inlined_call_operand.vmem [shape: f32[1,32], index: 12, kind: input, shape index: {}]
  %s13 = inlined_call_operand.vmem [shape: f32[1,32], index: 13, kind: input, shape index: {}]
  %s14 = inlined_call_operand.vmem [shape: f32[1,32], index: 14, kind: input, shape index: {}]
  %s15 = inlined_call_operand.hbm [shape: bf16[2,8,32], index: 15, kind: output, shape index: {0}]
  %s16 = inlined_call_operand.hbm [shape: bf16[2,8,32], index: 16, kind: output, shape index: {1}]
  %s17 = inlined_call_operand.hbm [shape: bf16[2,8,32], index: 17, kind: output, shape index: {2}]
  %18 = xla_tuple %s15, %s16, %s17
  %s19 = sld [smem:[#allocation0]]
  $region137: #{tpu_custom_call.1} parent=0
    _
  %s21 = ssub.s32 1, %s19
  %s22 = scalar_select 0, %s21, %s19
  $region1: #{tpu_custom_call.1} parent=0
    #allocation2 [shape = 'u8[8192]{0}', space=vmem, size = 0x2000, scoped, tag = 'input window, operand 0']
    #allocation3 [shape = 's32[2]{0}', space=sflag, size = 0x8, scoped, tag = 'scoped memory for tpu_custom_call.1']
    #allocation4 [shape = 's32[2]{0}', space=sflag, size = 0x8, scoped, tag = 'scoped memory for tpu_custom_call.1']
    #allocation5 [shape = 'u8[8192]{0}', space=vmem, size = 0x2000, scoped, tag = 'input window, operand 1']
    #allocation6 [shape = 's32[2]{0}', space=sflag, size = 0x8, scoped, tag = 'scoped memory for tpu_custom_call.1']
    #allocation7 [shape = 'u8[512]{0}', space=vmem, size = 0x400, scoped, tag = 'input window, operand 3, single buffered']
    #allocation8 [shape = 'u8[512]{0}', space=vmem, size = 0x400, scoped, tag = 'input window, operand 4, single buffered']
    #allocation9 [shape = 's32[1]{0}', space=sflag, size = 0x4, scoped, tag = 'scoped memory for tpu_custom_call.1']
    #allocation10 [shape = 'u8[512]{0}', space=vmem, size = 0x400, scoped, tag = 'input window, operand 5, single buffered']
    #allocation11 [shape = 'u8[8192]{0}', space=vmem, size = 0x2000, scoped, tag = 'input window, operand 7, single buffered']
    #allocation12 [shape = 's32[1]{0}', space=sflag, size = 0x4, scoped, tag = 'scoped memory for tpu_custom_call.1']
    #allocation13 [shape = 'u8[8192]{0}', space=vmem, size = 0x2000, scoped, tag = 'input window, operand 8, single buffered']
    #allocation14 [shape = 'u8[4096]{0}', space=vmem, size = 0x1000, scoped, tag = 'output window, operand 0']
    #allocation15 [shape = 'u8[4096]{0}', space=vmem, size = 0x1000, scoped, tag = 'output window, operand 1']
    #allocation16 [shape = 's32[2]{0}', space=sflag, size = 0x8, scoped, tag = 'scoped memory for tpu_custom_call.1']
    #allocation17 [shape = 'u8[4096]{0}', space=vmem, size = 0x1000, scoped, tag = 'output window, operand 2']
    %23 = vsyncpa [#allocation3], 0
    %s24 = scalar_lea.sflag [#allocation3], 1
    %25 = vsyncpa %s24, 0
    %26 = vsyncpa [#allocation6], 0
    %s27 = scalar_lea.sflag [#allocation6], 1
    %28 = vsyncpa %s27, 0
    %29 = vsyncpa [#allocation9], 0
    %30 = vsyncpa [#allocation12], 0
    %31 = vsyncpa [#allocation4], 0
    %s32 = scalar_lea.sflag [#allocation4], 1
    %33 = vsyncpa %s32, 0
    %34 = vsyncpa [#allocation16], 0
    %s35 = scalar_lea.sflag [#allocation16], 1
    %36 = vsyncpa %s35, 0
    loop: start=0, step=1, limit=4
    $region2: #{tpu_custom_call.1} parent=1 // loop_pre_header
      _
    $region3: #{tpu_custom_call.1} parent=1 // loop_header
      %s38 = sphi 0, %s42
      %p39 = scmp.ge.s32.totalorder %s38, 4
      %s45 = sphi 0, %s57
      %s46 = sphi 0, %s53
      %s47 = sphi 0, %s45
      %s48 = sphi 0, %s46
      %s49 = sphi 0, %s47
      %s50 = sphi 0, %s48
      %s62 = sphi 0, %s64
      %s65 = sphi 0, %s62
      %s66 = sphi 0, %s65
      %s82 = sphi 0, %s66
      %s90 = sphi 0, %s92
      %s93 = sphi 0, %s90
      %s94 = sphi 0, %s93
      %s110 = sphi 0, %s94
      %s114 = sphi 0, %s114
      %s116 = sphi 0, %s114
      %s117 = sphi 0, %s116
      %s131 = sphi 0, %s117
      %s135 = sphi 0, %s135
      %s137 = sphi 0, %s135
      %s138 = sphi 0, %s137
      %s152 = sphi 0, %s138
      %s156 = sphi 0, %s156
      %s158 = sphi 0, %s156
      %s159 = sphi 0, %s158
      %s173 = sphi 0, %s159
      %s177 = sphi 0, %s177
      %s179 = sphi 0, %s177
      %s180 = sphi 0, %s179
      %s194 = sphi 0, %s180
      %s198 = sphi 0, %s198
      %s200 = sphi 0, %s198
      %s201 = sphi 0, %s200
      %s215 = sphi 0, %s201
      %s219 = sphi 0, %s219
      %s221 = sphi 0, %s219
      %s222 = sphi 0, %s221
      %s236 = sphi 0, %s222
      %s240 = sphi 0, %s240
      %s242 = sphi 0, %s240
      %s243 = sphi 0, %s242
      %s257 = sphi 0, %s243
      %s261 = sphi 0, %s261
      %s263 = sphi 0, %s261
      %s264 = sphi 0, %s263
      %s278 = sphi 0, %s264
      %s282 = sphi 0, %s282
      %s284 = sphi 0, %s282
      %s285 = sphi 0, %s284
      %s299 = sphi 0, %s285
      %s303 = sphi 0, %s303
      %s305 = sphi 0, %s303
      %s306 = sphi 0, %s305
      %s320 = sphi 0, %s306
      %s324 = sphi 0, %s324
      %s326 = sphi 0, %s324
      %s327 = sphi 0, %s326
      %s341 = sphi 0, %s327
      %s345 = sphi 0, %s345
      %s347 = sphi 0, %s345
      %s348 = sphi 0, %s347
      %s362 = sphi 0, %s348
      %s366 = sphi 0, %s366
      %s368 = sphi 0, %s366
      %s369 = sphi 0, %s368
      %s383 = sphi 0, %s369
      %s391 = sphi 0, %s393
      %s394 = sphi 0, %s391
      %s395 = sphi 0, %s394
      %s411 = sphi 0, %s395
      %s419 = sphi 0, %s421
      %s422 = sphi 0, %s419
      %s423 = sphi 0, %s422
      %s439 = sphi 0, %s423
      %s447 = sphi 0, %s449
      %s450 = sphi 0, %s447
      %s451 = sphi 0, %s450
      %s467 = sphi 0, %s451
    $region4: #{tpu_custom_call.1} parent=1 // loop_header_branch
      %41 = sbr.rel (%p39) target = $region8
    $region5: #{tpu_custom_call.1} parent=1 // loop_body
      %s43 = ssub.s32 %s38, 1
      %s44 = ssub.s32 %s38, 2
      %s51 = sadd.s32 1, %s46
      %p52 = scmp.ge.s32.totalorder %s51, 1
      %s53 = scalar_select %p52, 0, %s51
      %s54 = sadd.s32 1, %s45
      %s55 = scalar_select %p52, %s54, %s45
      %p56 = scmp.ge.s32.totalorder %s55, 2
      %s57 = scalar_select %p56, 0, %s55
      %s58 = ssub.s32 %s45, %s57
      %s59 = ssub.s32 %s46, %s53
      %s60 = sor.u32 %s58, %s59
      %p61 = scmp.eq.s32.totalorder %s60, 0
      %s63 = sadd.s32 %s62, 1
      %s64 = scalar_select %p61, %s62, %s63
      %p67 = pneg %p61
      %p68 = scmp.eq.s32.totalorder %s38, 1
      %p69 = por %p67, %p68
      %p70 = scmp.ne.s32.totalorder %s62, %s65
      %p71 = scmp.eq.s32.totalorder %s38, 0
      %p72 = por %p70, %p71
      %p73 = scmp.ne.s32.totalorder %s62, %s65
      %p74 = scmp.eq.s32.totalorder %s43, 1
      %p75 = por %p73, %p74
      %p76 = scmp.ne.s32.totalorder %s65, %s66
      %p77 = scmp.eq.s32.totalorder %s43, 0
      %p78 = por %p76, %p77
      %p79 = scmp.ne.s32.totalorder %s65, %s66
      %p80 = scmp.eq.s32.totalorder %s44, 1
      %p81 = por %p79, %p80
      %p83 = scmp.ne.s32.totalorder %s66, %s82
      %p84 = scmp.eq.s32.totalorder %s44, 0
      %p85 = por %p83, %p84
      %s86 = ssub.s32 %s45, %s57
      %s87 = ssub.s32 %s46, %s53
      %s88 = sor.u32 %s86, %s87
      %p89 = scmp.eq.s32.totalorder %s88, 0
      %s91 = sadd.s32 %s90, 1
      %s92 = scalar_select %p89, %s90, %s91
      %p95 = pneg %p89
      %p96 = scmp.eq.s32.totalorder %s38, 1
      %p97 = por %p95, %p96
      %p98 = scmp.ne.s32.totalorder %s90, %s93
      %p99 = scmp.eq.s32.totalorder %s38, 0
      %p100 = por %p98, %p99
      %p101 = scmp.ne.s32.totalorder %s90, %s93
      %p102 = scmp.eq.s32.totalorder %s43, 1
      %p103 = por %p101, %p102
      %p104 = scmp.ne.s32.totalorder %s93, %s94
      %p105 = scmp.eq.s32.totalorder %s43, 0
      %p106 = por %p104, %p105
      %p107 = scmp.ne.s32.totalorder %s93, %s94
      %p108 = scmp.eq.s32.totalorder %s44, 1
      %p109 = por %p107, %p108
      %p111 = scmp.ne.s32.totalorder %s94, %s110
      %p112 = scmp.eq.s32.totalorder %s44, 0
      %p113 = por %p111, %p112
      %s115 = sadd.s32 %s114, 1
      %p118 = scmp.eq.s32.totalorder %s38, 1
      %p119 = scmp.ne.s32.totalorder %s114, %s116
      %p120 = scmp.eq.s32.totalorder %s38, 0
      %p121 = por %p119, %p120
      %p122 = scmp.ne.s32.totalorder %s114, %s116
      %p123 = scmp.eq.s32.totalorder %s43, 1
      %p124 = por %p122, %p123
      %p125 = scmp.ne.s32.totalorder %s116, %s117
      %p126 = scmp.eq.s32.totalorder %s43, 0
      %p127 = por %p125, %p126
      %p128 = scmp.ne.s32.totalorder %s116, %s117
      %p129 = scmp.eq.s32.totalorder %s44, 1
      %p130 = por %p128, %p129
      %p132 = scmp.ne.s32.totalorder %s117, %s131
      %p133 = scmp.eq.s32.totalorder %s44, 0
      %p134 = por %p132, %p133
      %s136 = sadd.s32 %s135, 1
      %p139 = scmp.eq.s32.totalorder %s38, 1
      %p140 = scmp.ne.s32.totalorder %s135, %s137
      %p141 = scmp.eq.s32.totalorder %s38, 0
      %p142 = por %p140, %p141
      %p143 = scmp.ne.s32.totalorder %s135, %s137
      %p144 = scmp.eq.s32.totalorder %s43, 1
      %p145 = por %p143, %p144
      %p146 = scmp.ne.s32.totalorder %s137, %s138
      %p147 = scmp.eq.s32.totalorder %s43, 0
      %p148 = por %p146, %p147
      %p149 = scmp.ne.s32.totalorder %s137, %s138
      %p150 = scmp.eq.s32.totalorder %s44, 1
      %p151 = por %p149, %p150
      %p153 = scmp.ne.s32.totalorder %s138, %s152
      %p154 = scmp.eq.s32.totalorder %s44, 0
      %p155 = por %p153, %p154
      %s157 = sadd.s32 %s156, 1
      %p160 = scmp.eq.s32.totalorder %s38, 1
      %p161 = scmp.ne.s32.totalorder %s156, %s158
      %p162 = scmp.eq.s32.totalorder %s38, 0
      %p163 = por %p161, %p162
      %p164 = scmp.ne.s32.totalorder %s156, %s158
      %p165 = scmp.eq.s32.totalorder %s43, 1
      %p166 = por %p164, %p165
      %p167 = scmp.ne.s32.totalorder %s158, %s159
      %p168 = scmp.eq.s32.totalorder %s43, 0
      %p169 = por %p167, %p168
      %p170 = scmp.ne.s32.totalorder %s158, %s159
      %p171 = scmp.eq.s32.totalorder %s44, 1
      %p172 = por %p170, %p171
      %p174 = scmp.ne.s32.totalorder %s159, %s173
      %p175 = scmp.eq.s32.totalorder %s44, 0
      %p176 = por %p174, %p175
      %s178 = sadd.s32 %s177, 1
      %p181 = scmp.eq.s32.totalorder %s38, 1
      %p182 = scmp.ne.s32.totalorder %s177, %s179
      %p183 = scmp.eq.s32.totalorder %s38, 0
      %p184 = por %p182, %p183
      %p185 = scmp.ne.s32.totalorder %s177, %s179
      %p186 = scmp.eq.s32.totalorder %s43, 1
      %p187 = por %p185, %p186
      %p188 = scmp.ne.s32.totalorder %s179, %s180
      %p189 = scmp.eq.s32.totalorder %s43, 0
      %p190 = por %p188, %p189
      %p191 = scmp.ne.s32.totalorder %s179, %s180
      %p192 = scmp.eq.s32.totalorder %s44, 1
      %p193 = por %p191, %p192
      %p195 = scmp.ne.s32.totalorder %s180, %s194
      %p196 = scmp.eq.s32.totalorder %s44, 0
      %p197 = por %p195, %p196
      %s199 = sadd.s32 %s198, 1
      %p202 = scmp.eq.s32.totalorder %s38, 1
      %p203 = scmp.ne.s32.totalorder %s198, %s200
      %p204 = scmp.eq.s32.totalorder %s38, 0
      %p205 = por %p203, %p204
      %p206 = scmp.ne.s32.totalorder %s198, %s200
      %p207 = scmp.eq.s32.totalorder %s43, 1
      %p208 = por %p206, %p207
      %p209 = scmp.ne.s32.totalorder %s200, %s201
      %p210 = scmp.eq.s32.totalorder %s43, 0
      %p211 = por %p209, %p210
      %p212 = scmp.ne.s32.totalorder %s200, %s201
      %p213 = scmp.eq.s32.totalorder %s44, 1
      %p214 = por %p212, %p213
      %p216 = scmp.ne.s32.totalorder %s201, %s215
      %p217 = scmp.eq.s32.totalorder %s44, 0
      %p218 = por %p216, %p217
      %s220 = sadd.s32 %s219, 1
      %p223 = scmp.eq.s32.totalorder %s38, 1
      %p224 = scmp.ne.s32.totalorder %s219, %s221
      %p225 = scmp.eq.s32.totalorder %s38, 0
      %p226 = por %p224, %p225
      %p227 = scmp.ne.s32.totalorder %s219, %s221
      %p228 = scmp.eq.s32.totalorder %s43, 1
      %p229 = por %p227, %p228
      %p230 = scmp.ne.s32.totalorder %s221, %s222
      %p231 = scmp.eq.s32.totalorder %s43, 0
      %p232 = por %p230, %p231
      %p233 = scmp.ne.s32.totalorder %s221, %s222
      %p234 = scmp.eq.s32.totalorder %s44, 1
      %p235 = por %p233, %p234
      %p237 = scmp.ne.s32.totalorder %s222, %s236
      %p238 = scmp.eq.s32.totalorder %s44, 0
      %p239 = por %p237, %p238
      %s241 = sadd.s32 %s240, 1
      %p244 = scmp.eq.s32.totalorder %s38, 1
      %p245 = scmp.ne.s32.totalorder %s240, %s242
      %p246 = scmp.eq.s32.totalorder %s38, 0
      %p247 = por %p245, %p246
      %p248 = scmp.ne.s32.totalorder %s240, %s242
      %p249 = scmp.eq.s32.totalorder %s43, 1
      %p250 = por %p248, %p249
      %p251 = scmp.ne.s32.totalorder %s242, %s243
      %p252 = scmp.eq.s32.totalorder %s43, 0
      %p253 = por %p251, %p252
      %p254 = scmp.ne.s32.totalorder %s242, %s243
      %p255 = scmp.eq.s32.totalorder %s44, 1
      %p256 = por %p254, %p255
      %p258 = scmp.ne.s32.totalorder %s243, %s257
      %p259 = scmp.eq.s32.totalorder %s44, 0
      %p260 = por %p258, %p259
      %s262 = sadd.s32 %s261, 1
      %p265 = scmp.eq.s32.totalorder %s38, 1
      %p266 = scmp.ne.s32.totalorder %s261, %s263
      %p267 = scmp.eq.s32.totalorder %s38, 0
      %p268 = por %p266, %p267
      %p269 = scmp.ne.s32.totalorder %s261, %s263
      %p270 = scmp.eq.s32.totalorder %s43, 1
      %p271 = por %p269, %p270
      %p272 = scmp.ne.s32.totalorder %s263, %s264
      %p273 = scmp.eq.s32.totalorder %s43, 0
      %p274 = por %p272, %p273
      %p275 = scmp.ne.s32.totalorder %s263, %s264
      %p276 = scmp.eq.s32.totalorder %s44, 1
      %p277 = por %p275, %p276
      %p279 = scmp.ne.s32.totalorder %s264, %s278
      %p280 = scmp.eq.s32.totalorder %s44, 0
      %p281 = por %p279, %p280
      %s283 = sadd.s32 %s282, 1
      %p286 = scmp.eq.s32.totalorder %s38, 1
      %p287 = scmp.ne.s32.totalorder %s282, %s284
      %p288 = scmp.eq.s32.totalorder %s38, 0
      %p289 = por %p287, %p288
      %p290 = scmp.ne.s32.totalorder %s282, %s284
      %p291 = scmp.eq.s32.totalorder %s43, 1
      %p292 = por %p290, %p291
      %p293 = scmp.ne.s32.totalorder %s284, %s285
      %p294 = scmp.eq.s32.totalorder %s43, 0
      %p295 = por %p293, %p294
      %p296 = scmp.ne.s32.totalorder %s284, %s285
      %p297 = scmp.eq.s32.totalorder %s44, 1
      %p298 = por %p296, %p297
      %p300 = scmp.ne.s32.totalorder %s285, %s299
      %p301 = scmp.eq.s32.totalorder %s44, 0
      %p302 = por %p300, %p301
      %s304 = sadd.s32 %s303, 1
      %p307 = scmp.eq.s32.totalorder %s38, 1
      %p308 = scmp.ne.s32.totalorder %s303, %s305
      %p309 = scmp.eq.s32.totalorder %s38, 0
      %p310 = por %p308, %p309
      %p311 = scmp.ne.s32.totalorder %s303, %s305
      %p312 = scmp.eq.s32.totalorder %s43, 1
      %p313 = por %p311, %p312
      %p314 = scmp.ne.s32.totalorder %s305, %s306
      %p315 = scmp.eq.s32.totalorder %s43, 0
      %p316 = por %p314, %p315
      %p317 = scmp.ne.s32.totalorder %s305, %s306
      %p318 = scmp.eq.s32.totalorder %s44, 1
      %p319 = por %p317, %p318
      %p321 = scmp.ne.s32.totalorder %s306, %s320
      %p322 = scmp.eq.s32.totalorder %s44, 0
      %p323 = por %p321, %p322
      %s325 = sadd.s32 %s324, 1
      %p328 = scmp.eq.s32.totalorder %s38, 1
      %p329 = scmp.ne.s32.totalorder %s324, %s326
      %p330 = scmp.eq.s32.totalorder %s38, 0
      %p331 = por %p329, %p330
      %p332 = scmp.ne.s32.totalorder %s324, %s326
      %p333 = scmp.eq.s32.totalorder %s43, 1
      %p334 = por %p332, %p333
      %p335 = scmp.ne.s32.totalorder %s326, %s327
      %p336 = scmp.eq.s32.totalorder %s43, 0
      %p337 = por %p335, %p336
      %p338 = scmp.ne.s32.totalorder %s326, %s327
      %p339 = scmp.eq.s32.totalorder %s44, 1
      %p340 = por %p338, %p339
      %p342 = scmp.ne.s32.totalorder %s327, %s341
      %p343 = scmp.eq.s32.totalorder %s44, 0
      %p344 = por %p342, %p343
      %s346 = sadd.s32 %s345, 1
      %p349 = scmp.eq.s32.totalorder %s38, 1
      %p350 = scmp.ne.s32.totalorder %s345, %s347
      %p351 = scmp.eq.s32.totalorder %s38, 0
      %p352 = por %p350, %p351
      %p353 = scmp.ne.s32.totalorder %s345, %s347
      %p354 = scmp.eq.s32.totalorder %s43, 1
      %p355 = por %p353, %p354
      %p356 = scmp.ne.s32.totalorder %s347, %s348
      %p357 = scmp.eq.s32.totalorder %s43, 0
      %p358 = por %p356, %p357
      %p359 = scmp.ne.s32.totalorder %s347, %s348
      %p360 = scmp.eq.s32.totalorder %s44, 1
      %p361 = por %p359, %p360
      %p363 = scmp.ne.s32.totalorder %s348, %s362
      %p364 = scmp.eq.s32.totalorder %s44, 0
      %p365 = por %p363, %p364
      %s367 = sadd.s32 %s366, 1
      %p370 = scmp.eq.s32.totalorder %s38, 1
      %p371 = scmp.ne.s32.totalorder %s366, %s368
      %p372 = scmp.eq.s32.totalorder %s38, 0
      %p373 = por %p371, %p372
      %p374 = scmp.ne.s32.totalorder %s366, %s368
      %p375 = scmp.eq.s32.totalorder %s43, 1
      %p376 = por %p374, %p375
      %p377 = scmp.ne.s32.totalorder %s368, %s369
      %p378 = scmp.eq.s32.totalorder %s43, 0
      %p379 = por %p377, %p378
      %p380 = scmp.ne.s32.totalorder %s368, %s369
      %p381 = scmp.eq.s32.totalorder %s44, 1
      %p382 = por %p380, %p381
      %p384 = scmp.ne.s32.totalorder %s369, %s383
      %p385 = scmp.eq.s32.totalorder %s44, 0
      %p386 = por %p384, %p385
      %s387 = ssub.s32 %s45, %s57
      %s388 = ssub.s32 %s46, %s53
      %s389 = sor.u32 %s387, %s388
      %p390 = scmp.eq.s32.totalorder %s389, 0
      %s392 = sadd.s32 %s391, 1
      %s393 = scalar_select %p390, %s391, %s392
      %p396 = pneg %p390
      %p397 = scmp.eq.s32.totalorder %s38, 1
      %p398 = por %p396, %p397
      %p399 = scmp.ne.s32.totalorder %s391, %s394
      %p400 = scmp.eq.s32.totalorder %s38, 0
      %p401 = por %p399, %p400
      %p402 = scmp.ne.s32.totalorder %s391, %s394
      %p403 = scmp.eq.s32.totalorder %s43, 1
      %p404 = por %p402, %p403
      %p405 = scmp.ne.s32.totalorder %s394, %s395
      %p406 = scmp.eq.s32.totalorder %s43, 0
      %p407 = por %p405, %p406
      %p408 = scmp.ne.s32.totalorder %s394, %s395
      %p409 = scmp.eq.s32.totalorder %s44, 1
      %p410 = por %p408, %p409
      %p412 = scmp.ne.s32.totalorder %s395, %s411
      %p413 = scmp.eq.s32.totalorder %s44, 0
      %p414 = por %p412, %p413
      %s415 = ssub.s32 %s45, %s57
      %s416 = ssub.s32 %s46, %s53
      %s417 = sor.u32 %s415, %s416
      %p418 = scmp.eq.s32.totalorder %s417, 0
      %s420 = sadd.s32 %s419, 1
      %s421 = scalar_select %p418, %s419, %s420
      %p424 = pneg %p418
      %p425 = scmp.eq.s32.totalorder %s38, 1
      %p426 = por %p424, %p425
      %p427 = scmp.ne.s32.totalorder %s419, %s422
      %p428 = scmp.eq.s32.totalorder %s38, 0
      %p429 = por %p427, %p428
      %p430 = scmp.ne.s32.totalorder %s419, %s422
      %p431 = scmp.eq.s32.totalorder %s43, 1
      %p432 = por %p430, %p431
      %p433 = scmp.ne.s32.totalorder %s422, %s423
      %p434 = scmp.eq.s32.totalorder %s43, 0
      %p435 = por %p433, %p434
      %p436 = scmp.ne.s32.totalorder %s422, %s423
      %p437 = scmp.eq.s32.totalorder %s44, 1
      %p438 = por %p436, %p437
      %p440 = scmp.ne.s32.totalorder %s423, %s439
      %p441 = scmp.eq.s32.totalorder %s44, 0
      %p442 = por %p440, %p441
      %s443 = ssub.s32 %s45, %s57
      %s444 = ssub.s32 %s46, %s53
      %s445 = sor.u32 %s443, %s444
      %p446 = scmp.eq.s32.totalorder %s445, 0
      %s448 = sadd.s32 %s447, 1
      %s449 = scalar_select %p446, %s447, %s448
      %p452 = pneg %p446
      %p453 = scmp.eq.s32.totalorder %s38, 1
      %p454 = por %p452, %p453
      %p455 = scmp.ne.s32.totalorder %s447, %s450
      %p456 = scmp.eq.s32.totalorder %s38, 0
      %p457 = por %p455, %p456
      %p458 = scmp.ne.s32.totalorder %s447, %s450
      %p459 = scmp.eq.s32.totalorder %s43, 1
      %p460 = por %p458, %p459
      %p461 = scmp.ne.s32.totalorder %s450, %s451
      %p462 = scmp.eq.s32.totalorder %s43, 0
      %p463 = por %p461, %p462
      %p464 = scmp.ne.s32.totalorder %s450, %s451
      %p465 = scmp.eq.s32.totalorder %s44, 1
      %p466 = por %p464, %p465
      %p468 = scmp.ne.s32.totalorder %s451, %s467
      %p469 = scmp.eq.s32.totalorder %s44, 0
      %p470 = por %p468, %p469
      %p471 = scmp.le.s32.totalorder 1, %s38
      %p472 = scmp.lt.s32.totalorder %s38, 3
      %p473 = pnand %p471, %p472
      %p474 = pneg %p473
      // Predicated region
      $region9: #{tpu_custom_call.1} parent=5 // pred_check
        _
      $region10: #{tpu_custom_call.1} parent=5 // pred_check_branch
        %476 = sbr.rel (%p473) target = $region12
      $region11: #{tpu_custom_call.1} parent=5 // pred_region
        %s477 = ssub.s32 %s38, 1
        // Predicated region
        $region13: #{tpu_custom_call.1} parent=11 // pred_check
          %p478 = pneg %p127
        $region14: #{tpu_custom_call.1} parent=11 // pred_check_branch
          %480 = sbr.rel (%p478) target = $region16
        $region15: #{tpu_custom_call.1} parent=11 // pred_region
          _
        $region16: #{tpu_custom_call.1} parent=11 // pred_fallthru
          _
        // Predicated region
        $region17: #{tpu_custom_call.1} parent=11 // pred_check
          %p481 = pneg %p148
        $region18: #{tpu_custom_call.1} parent=11 // pred_check_branch
          %483 = sbr.rel (%p481) target = $region20
        $region19: #{tpu_custom_call.1} parent=11 // pred_region
          %s485 = ssub.s32 16, 16
          %486 = vsyncadd [#allocation6], %s485
          %s488 = sshll.u32 [#allocation7], 4
          %s489 = int_to_ptr.vmem [resolvable:$true] %s488
          %491 = dma.hbm_to_vmem [thread:$0]  %s3, 16, %s489, [#allocation6]
        $region20: #{tpu_custom_call.1} parent=11 // pred_fallthru
          _
        // Predicated region
        $region21: #{tpu_custom_call.1} parent=11 // pred_check
          %p492 = pneg %p169
        $region22: #{tpu_custom_call.1} parent=11 // pred_check_branch
          %494 = sbr.rel (%p492) target = $region24
        $region23: #{tpu_custom_call.1} parent=11 // pred_region
          %s496 = ssub.s32 16, 16
          %497 = vsyncadd [#allocation9], %s496
          %s499 = sshll.u32 [#allocation8], 4
          %s500 = int_to_ptr.vmem [resolvable:$true] %s499
          %502 = dma.hbm_to_vmem [thread:$0]  %s4, 16, %s500, [#allocation9]
        $region24: #{tpu_custom_call.1} parent=11 // pred_fallthru
          _
        // Predicated region
        $region25: #{tpu_custom_call.1} parent=11 // pred_check
          %p503 = pneg %p190
        $region26: #{tpu_custom_call.1} parent=11 // pred_check_branch
          %505 = sbr.rel (%p503) target = $region28
        $region27: #{tpu_custom_call.1} parent=11 // pred_region
          %s507 = ssub.s32 16, 16
          %508 = vsyncadd [#allocation9], %s507
          %s510 = sshll.u32 [#allocation10], 4
          %s511 = int_to_ptr.vmem [resolvable:$true] %s510
          %513 = dma.hbm_to_vmem [thread:$0]  %s5, 16, %s511, [#allocation9]
        $region28: #{tpu_custom_call.1} parent=11 // pred_fallthru
          _
        // Predicated region
        $region29: #{tpu_custom_call.1} parent=11 // pred_check
          %p514 = pneg %p211
        $region30: #{tpu_custom_call.1} parent=11 // pred_check_branch
          %516 = sbr.rel (%p514) target = $region32
        $region31: #{tpu_custom_call.1} parent=11 // pred_region
          _
        $region32: #{tpu_custom_call.1} parent=11 // pred_fallthru
          _
        // Predicated region
        $region33: #{tpu_custom_call.1} parent=11 // pred_check
          %p517 = pneg %p232
        $region34: #{tpu_custom_call.1} parent=11 // pred_check_branch
          %519 = sbr.rel (%p517) target = $region36
        $region35: #{tpu_custom_call.1} parent=11 // pred_region
          %s521 = ssub.s32 256, 256
          %522 = vsyncadd [#allocation12], %s521
          %s523 = sshll.u32 [#allocation11], 4
          %s524 = int_to_ptr.vmem [resolvable:$true] %s523
          %529 = dma.hbm_to_vmem [thread:$0]  %s7, 256, %s524, [#allocation12], 64, 64, 4
        $region36: #{tpu_custom_call.1} parent=11 // pred_fallthru
          _
        // Predicated region
        $region37: #{tpu_custom_call.1} parent=11 // pred_check
          %p530 = pneg %p253
        $region38: #{tpu_custom_call.1} parent=11 // pred_check_branch
          %532 = sbr.rel (%p530) target = $region40
        $region39: #{tpu_custom_call.1} parent=11 // pred_region
          %s534 = ssub.s32 256, 256
          %535 = vsyncadd [#allocation12], %s534
          %s536 = sshll.u32 [#allocation13], 4
          %s537 = int_to_ptr.vmem [resolvable:$true] %s536
          %542 = dma.hbm_to_vmem [thread:$0]  %s8, 256, %s537, [#allocation12], 64, 64, 4
        $region40: #{tpu_custom_call.1} parent=11 // pred_fallthru
          _
        // Predicated region
        $region41: #{tpu_custom_call.1} parent=11 // pred_check
          %p543 = pneg %p274
        $region42: #{tpu_custom_call.1} parent=11 // pred_check_branch
          %545 = sbr.rel (%p543) target = $region44
        $region43: #{tpu_custom_call.1} parent=11 // pred_region
          _
        $region44: #{tpu_custom_call.1} parent=11 // pred_fallthru
          _
        // Predicated region
        $region45: #{tpu_custom_call.1} parent=11 // pred_check
          %p546 = pneg %p295
        $region46: #{tpu_custom_call.1} parent=11 // pred_check_branch
          %548 = sbr.rel (%p546) target = $region48
        $region47: #{tpu_custom_call.1} parent=11 // pred_region
          _
        $region48: #{tpu_custom_call.1} parent=11 // pred_fallthru
          _
        // Predicated region
        $region49: #{tpu_custom_call.1} parent=11 // pred_check
          %p549 = pneg %p316
        $region50: #{tpu_custom_call.1} parent=11 // pred_check_branch
          %551 = sbr.rel (%p549) target = $region52
        $region51: #{tpu_custom_call.1} parent=11 // pred_region
          _
        $region52: #{tpu_custom_call.1} parent=11 // pred_fallthru
          _
        // Predicated region
        $region53: #{tpu_custom_call.1} parent=11 // pred_check
          %p552 = pneg %p337
        $region54: #{tpu_custom_call.1} parent=11 // pred_check_branch
          %554 = sbr.rel (%p552) target = $region56
        $region55: #{tpu_custom_call.1} parent=11 // pred_region
          _
        $region56: #{tpu_custom_call.1} parent=11 // pred_fallthru
          _
        // Predicated region
        $region57: #{tpu_custom_call.1} parent=11 // pred_check
          %p555 = pneg %p358
        $region58: #{tpu_custom_call.1} parent=11 // pred_check_branch
          %557 = sbr.rel (%p555) target = $region60
        $region59: #{tpu_custom_call.1} parent=11 // pred_region
          _
        $region60: #{tpu_custom_call.1} parent=11 // pred_fallthru
          _
        // Predicated region
        $region61: #{tpu_custom_call.1} parent=11 // pred_check
          %p558 = pneg %p379
        $region62: #{tpu_custom_call.1} parent=11 // pred_check_branch
          %560 = sbr.rel (%p558) target = $region64
        $region63: #{tpu_custom_call.1} parent=11 // pred_region
          _
        $region64: #{tpu_custom_call.1} parent=11 // pred_fallthru
          _
      $region12: #{tpu_custom_call.1} parent=5 // pred_fallthru
        _
      %p561 = scmp.lt.s32.totalorder %s38, 2
      // Predicated region
      $region65: #{tpu_custom_call.1} parent=5 // pred_check
        %p562 = pneg %p561
      $region66: #{tpu_custom_call.1} parent=5 // pred_check_branch
        %564 = sbr.rel (%p562) target = $region68
      $region67: #{tpu_custom_call.1} parent=5 // pred_region
        // Predicated region
        $region69: #{tpu_custom_call.1} parent=67 // pred_check
          %p565 = pneg %p72
        $region70: #{tpu_custom_call.1} parent=67 // pred_check_branch
          %567 = sbr.rel (%p565) target = $region72
        $region71: #{tpu_custom_call.1} parent=67 // pred_region
          %s568 = sand.u32 %s62, 1
          %s569 = scalar_lea.sflag [#allocation3], %s568
          %s570 = sand.u32 %s62, 1
          %s571 = smul.addr %s570, 8
          %s572 = scalar_lea.vmem [#allocation2], %s571
          %s574 = ssub.s32 128, 128
          %575 = vsyncadd %s569, %s574
          %s576 = sadd.s32 %s46, %s45
          %s577 = smul.addr %s576, 128
          %s578 = scalar_lea.hbm %s0, %s577
          %s580 = sshll.u32 %s572, 4
          %s581 = int_to_ptr.vmem [resolvable:$true] %s580
          %583 = dma.hbm_to_vmem [thread:$0]  %s578, 128, %s581, %s569
        $region72: #{tpu_custom_call.1} parent=67 // pred_fallthru
          _
        // Predicated region
        $region73: #{tpu_custom_call.1} parent=67 // pred_check
          %p584 = pneg %p100
        $region74: #{tpu_custom_call.1} parent=67 // pred_check_branch
          %586 = sbr.rel (%p584) target = $region76
        $region75: #{tpu_custom_call.1} parent=67 // pred_region
          %s587 = sand.u32 %s38, 1
          %s588 = scalar_lea.sflag [#allocation6], %s587
          %s589 = sand.u32 %s90, 1
          %s590 = smul.addr %s589, 8
          %s591 = scalar_lea.vmem [#allocation5], %s590
          %s593 = ssub.s32 128, 128
          %594 = vsyncadd %s588, %s593
          %s595 = sadd.s32 %s46, %s45
          %s596 = smul.addr %s595, 128
          %s597 = scalar_lea.hbm %s1, %s596
          %s599 = sshll.u32 %s591, 4
          %s600 = int_to_ptr.vmem [resolvable:$true] %s599
          %602 = dma.hbm_to_vmem [thread:$0]  %s597, 128, %s600, %s588
        $region76: #{tpu_custom_call.1} parent=67 // pred_fallthru
          _
      $region68: #{tpu_custom_call.1} parent=5 // pred_fallthru
        _
      %p603 = scmp.le.s32.totalorder 1, %s38
      %p604 = scmp.lt.s32.totalorder %s38, 3
      %p605 = pnand %p603, %p604
      %p606 = pneg %p605
      // Predicated region
      $region77: #{tpu_custom_call.1} parent=5 // pred_check
        _
      $region78: #{tpu_custom_call.1} parent=5 // pred_check_branch
        %608 = sbr.rel (%p605) target = $region80
      $region79: #{tpu_custom_call.1} parent=5 // pred_region
        %s609 = ssub.s32 %s38, 1
        %s610 = sand.u32 %s65, 1
        %s611 = scalar_lea.sflag [#allocation3], %s610
        %s612 = sand.u32 %s65, 1
        %s613 = smul.addr %s612, 8
        %s614 = scalar_lea.vmem [#allocation2], %s613
        // Predicated region
        $region81: #{tpu_custom_call.1} parent=79 // pred_check
          %p615 = pneg %p78
        $region82: #{tpu_custom_call.1} parent=79 // pred_check_branch
          %617 = sbr.rel (%p615) target = $region84
        $region83: #{tpu_custom_call.1} parent=79 // pred_region
          %618 = dma.done %s611, 128
        $region84: #{tpu_custom_call.1} parent=79 // pred_fallthru
          _
        %s619 = sand.u32 %s43, 1
        %s620 = scalar_lea.sflag [#allocation6], %s619
        %s621 = sand.u32 %s93, 1
        %s622 = smul.addr %s621, 8
        %s623 = scalar_lea.vmem [#allocation5], %s622
        // Predicated region
        $region85: #{tpu_custom_call.1} parent=79 // pred_check
          %p624 = pneg %p106
        $region86: #{tpu_custom_call.1} parent=79 // pred_check_branch
          %626 = sbr.rel (%p624) target = $region88
        $region87: #{tpu_custom_call.1} parent=79 // pred_region
          %627 = dma.done %s620, 128
        $region88: #{tpu_custom_call.1} parent=79 // pred_fallthru
          _
        // Predicated region
        $region89: #{tpu_custom_call.1} parent=79 // pred_check
          %p628 = pneg %p148
        $region90: #{tpu_custom_call.1} parent=79 // pred_check_branch
          %630 = sbr.rel (%p628) target = $region92
        $region91: #{tpu_custom_call.1} parent=79 // pred_region
          %631 = dma.done [#allocation6], 16
        $region92: #{tpu_custom_call.1} parent=79 // pred_fallthru
          _
        // Predicated region
        $region93: #{tpu_custom_call.1} parent=79 // pred_check
          %p632 = pneg %p169
        $region94: #{tpu_custom_call.1} parent=79 // pred_check_branch
          %634 = sbr.rel (%p632) target = $region96
        $region95: #{tpu_custom_call.1} parent=79 // pred_region
          %635 = dma.done [#allocation9], 16
        $region96: #{tpu_custom_call.1} parent=79 // pred_fallthru
          _
        // Predicated region
        $region97: #{tpu_custom_call.1} parent=79 // pred_check
          %p636 = pneg %p190
        $region98: #{tpu_custom_call.1} parent=79 // pred_check_branch
          %638 = sbr.rel (%p636) target = $region100
        $region99: #{tpu_custom_call.1} parent=79 // pred_region
          %639 = dma.done [#allocation9], 16
        $region100: #{tpu_custom_call.1} parent=79 // pred_fallthru
          _
        // Predicated region
        $region101: #{tpu_custom_call.1} parent=79 // pred_check
          %p640 = pneg %p232
        $region102: #{tpu_custom_call.1} parent=79 // pred_check_branch
          %642 = sbr.rel (%p640) target = $region104
        $region103: #{tpu_custom_call.1} parent=79 // pred_region
          %643 = dma.done [#allocation12], 256
        $region104: #{tpu_custom_call.1} parent=79 // pred_fallthru
          _
        // Predicated region
        $region105: #{tpu_custom_call.1} parent=79 // pred_check
          %p644 = pneg %p253
        $region106: #{tpu_custom_call.1} parent=79 // pred_check_branch
          %646 = sbr.rel (%p644) target = $region108
        $region107: #{tpu_custom_call.1} parent=79 // pred_region
          %647 = dma.done [#allocation12], 256
        $region108: #{tpu_custom_call.1} parent=79 // pred_fallthru
          _
        %s648 = sand.u32 %s65, 1
        %s649 = scalar_lea.sflag [#allocation3], %s648
        %s650 = sand.u32 %s65, 1
        %s651 = smul.addr %s650, 8
        %s652 = scalar_lea.vmem [#allocation2], %s651
        %p653 = pneg %p78
        %p654 = pneg %p75
        %s655 = sand.u32 %s43, 1
        %s656 = scalar_lea.sflag [#allocation6], %s655
        %s657 = sand.u32 %s93, 1
        %s658 = smul.addr %s657, 8
        %s659 = scalar_lea.vmem [#allocation5], %s658
        %p660 = pneg %p106
        %p661 = pneg %p103
        %p662 = pneg %p127
        %p663 = pneg %p124
        %p664 = pneg %p148
        %p665 = pneg %p145
        %p666 = pneg %p169
        %p667 = pneg %p166
        %p668 = pneg %p190
        %p669 = pneg %p187
        %p670 = pneg %p211
        %p671 = pneg %p208
        %p672 = pneg %p232
        %p673 = pneg %p229
        %p674 = pneg %p253
        %p675 = pneg %p250
        %p676 = pneg %p274
        %p677 = pneg %p271
        %p678 = pneg %p295
        %p679 = pneg %p292
        %p680 = pneg %p316
        %p681 = pneg %p313
        %p682 = pneg %p337
        %p683 = pneg %p334
        %p684 = pneg %p358
        %p685 = pneg %p355
        %p686 = pneg %p379
        %p687 = pneg %p376
        %p688 = pneg %p407
        %p689 = pneg %p404
        %s690 = sand.u32 %s394, 1
        %s691 = scalar_lea.sflag [#allocation4], %s690
        %s692 = sand.u32 %s394, 1
        %s693 = smul.addr %s692, 4
        %s694 = scalar_lea.vmem [#allocation14], %s693
        %p695 = pneg %p435
        %p696 = pneg %p432
        %s697 = sand.u32 %s43, 1
        %s698 = scalar_lea.sflag [#allocation16], %s697
        %s699 = sand.u32 %s422, 1
        %s700 = smul.addr %s699, 4
        %s701 = scalar_lea.vmem [#allocation15], %s700
        %p702 = pneg %p463
        %p703 = pneg %p460
        %s704 = sand.u32 %s43, 1
        %s705 = scalar_lea.sflag [#allocation16], %s704
        %s706 = sand.u32 %s450, 1
        %s707 = smul.addr %s706, 4
        %s708 = scalar_lea.vmem [#allocation17], %s707
        %v710 = vld [vmem:[%s614] sm:$0xff]
        %vm711 = vcmask 261120
        %v712 = vsel %vm711, %v710, 0.0
        %713 = vadd.xlane.f32.xlu0 %v712
        %v714 = vpop.xlane.xlu0 %713
        %v715 = vmul.f32 %v710, %v710
        %v716 = vsel %vm711, %v715, 0.0
        %717 = vadd.xlane.f32.xlu0 %v716
        %v718 = vpop.xlane.xlu0 %717
        %v719 = vld [vmem:[%s623] sm:$0xff]
        %vm720 = vcmask 130048
        %v721 = vsel %vm720, %v719, 0.0
        %722 = vadd.xlane.f32.xlu0 %v721
        %v723 = vpop.xlane.xlu0 %722
        %v724 = vadd.f32 %v714, %v723
        %v725 = vmul.f32 %v719, %v719
        %v726 = vsel %vm720, %v725, 0.0
        %727 = vadd.xlane.f32.xlu0 %v726
        %v728 = vpop.xlane.xlu0 %727
        %v729 = vadd.f32 %v718, %v728
        %v730 = vmul.f32 %v724, 0.020833334
        %v731 = vmul.f32 %v729, 0.020833334
        %v732 = vmul.f32 %v730, %v730
        %v733 = vsub.f32 %v731, %v732
        %v734 = vadd.f32 %v733, 1e-05
        %v735 = vrsqrt.pop %v734
        %v736 = vsub.f32 %v710, %v730
        %v737 = vmul.f32 %v736, %v735
        %v738 = vld [vmem:[%s2] sm:$0x1]
        %v740 = vlaneseq
        %v741 = vshrl.u32 %v740, 7
        %v742 = vsub.s32 0, %v741
        %v743 = vrot.slane %v738, %v742
        %v745 = vmul.f32 %v737, %v743
        %v746 = vld [vmem:[#allocation7] sm:$0x1]
        %v748 = vlaneseq
        %v749 = vshrl.u32 %v748, 7
        %v750 = vsub.s32 0, %v749
        %v751 = vrot.slane %v746, %v750
        %v753 = vadd.f32 %v745, %v751
        %v754 = vpack.c.bf16 %v753, %v753
        %v755 = vsub.f32 %v719, %v730
        %v756 = vmul.f32 %v755, %v735
        %v757 = vld [vmem:[#allocation8] sm:$0x1]
        %v759 = vlaneseq
        %v760 = vshrl.u32 %v759, 7
        %v761 = vsub.s32 0, %v760
        %v762 = vrot.slane %v757, %v761
        %v764 = vmul.f32 %v756, %v762
        %v765 = vld [vmem:[#allocation10] sm:$0x1]
        %v767 = vlaneseq
        %v768 = vshrl.u32 %v767, 7
        %v769 = vsub.s32 0, %v768
        %v770 = vrot.slane %v765, %v769
        %v772 = vadd.f32 %v764, %v770
        %v773 = vpack.c.bf16 %v772, %v772
        %v774 = vld [vmem:[%s6] sm:$0xf]
        %v775 = vld [vmem:[%s6 + $0x4] sm:$0xf]
        %v776 = vld [vmem:[%s6 + $0x8] sm:$0xf]
        %v777 = vld [vmem:[%s6 + $0xc] sm:$0xf]
        %v778 = vld [vmem:[%s9] sm:$0xf]
        %v779 = vld [vmem:[%s9 + $0x4] sm:$0xf]
        %v782 = vunpack.c.l.b16 %v778
        %v783 = vunpack.c.l.b16 %v779
        %v784 = vpack.c.b16 %v783, %v782
        %v787 = vsel %vm720, %v773, 0
        %789 = vmatprep.subr.bf16.mxu0 0
        %790 = vmatpush1.bf16.msra.mxu0 %v784
        %791 = vmatprep.subr.bf16.mxu0 0
        %792 = vmatpush1.bf16.msra.mxu0 0
        %793 = vmatprep.subr.bf16.mxu0 0
        %794 = vmatpush1.bf16.msra.mxu0 0
        %795 = vmatprep.subr.bf16.mxu0 0
        %796 = vmatpush1.bf16.msra.mxu0 0
        %797 = vmatprep.subr.bf16.mxu0 0
        %798 = vmatpush1.bf16.msra.mxu0 0
        %799 = vmatprep.subr.bf16.mxu0 0
        %800 = vmatpush1.bf16.msra.mxu0 0
        %801 = vmatprep.subr.bf16.mxu0 0
        %802 = vmatpush1.bf16.msra.mxu0 0
        %803 = vmatprep.subr.bf16.mxu0 0
        %804 = vmatpush1.bf16.msra.mxu0 0
        %805 = vmatprep.subr.bf16.mxu0 0
        %806 = vmatpush1.bf16.msra.mxu0 0
        %807 = vmatprep.subr.bf16.mxu0 0
        %808 = vmatpush1.bf16.msra.mxu0 0
        %809 = vmatprep.subr.bf16.mxu0 0
        %810 = vmatpush1.bf16.msra.mxu0 0
        %811 = vmatprep.subr.bf16.mxu0 0
        %812 = vmatpush1.bf16.msra.mxu0 0
        %813 = vmatprep.subr.bf16.mxu0 0
        %814 = vmatpush1.bf16.msra.mxu0 0
        %815 = vmatprep.subr.bf16.mxu0 0
        %816 = vmatpush1.bf16.msra.mxu0 0
        %817 = vmatprep.subr.bf16.mxu0 0
        %818 = vmatpush1.bf16.msra.mxu0 0
        %819 = vmatprep.subr.bf16.mxu0 0
        %820 = vmatpush1.bf16.msra.mxu0 0
        %821 = vmatprep.mubr.bf16.mxu0 0
        %822 = vmatmul.mubr.bf16.gmra.mrb[0].mxu0 %v787
        %v823 = vpop.f32.mrb[0].mxu0
        %v824 = vadd.f32 0.0, %v823
        %v825 = vpop.f32.mrb[0].mxu0
        %v826 = vpop.f32.mrb[0].mxu0
        %v827 = vpop.f32.mrb[0].mxu0
        %828 = vdwg.mxu0
        %v833 = vunpack.c.l.b16 %v774
        %v834 = vunpack.c.l.b16 %v775
        %v835 = vunpack.c.l.b16 %v776
        %v836 = vunpack.c.l.b16 %v777
        %v837 = vpack.c.b16 %v834, %v833
        %v838 = vpack.c.b16 %v836, %v835
        %v842 = vsel %vm711, %v754, 0
        %844 = vmatprep.subr.bf16.mxu0 0
        %845 = vmatpush1.bf16.msra.mxu0 %v837
        %846 = vmatprep.subr.bf16.mxu0 0
        %847 = vmatpush1.bf16.msra.mxu0 %v838
        %848 = vmatprep.subr.bf16.mxu0 0
        %849 = vmatpush1.bf16.msra.mxu0 0
        %850 = vmatprep.subr.bf16.mxu0 0
        %851 = vmatpush1.bf16.msra.mxu0 0
        %852 = vmatprep.subr.bf16.mxu0 0
        %853 = vmatpush1.bf16.msra.mxu0 0
        %854 = vmatprep.subr.bf16.mxu0 0
        %855 = vmatpush1.bf16.msra.mxu0 0
        %856 = vmatprep.subr.bf16.mxu0 0
        %857 = vmatpush1.bf16.msra.mxu0 0
        %858 = vmatprep.subr.bf16.mxu0 0
        %859 = vmatpush1.bf16.msra.mxu0 0
        %860 = vmatprep.subr.bf16.mxu0 0
        %861 = vmatpush1.bf16.msra.mxu0 0
        %862 = vmatprep.subr.bf16.mxu0 0
        %863 = vmatpush1.bf16.msra.mxu0 0
        %864 = vmatprep.subr.bf16.mxu0 0
        %865 = vmatpush1.bf16.msra.mxu0 0
        %866 = vmatprep.subr.bf16.mxu0 0
        %867 = vmatpush1.bf16.msra.mxu0 0
        %868 = vmatprep.subr.bf16.mxu0 0
        %869 = vmatpush1.bf16.msra.mxu0 0
        %870 = vmatprep.subr.bf16.mxu0 0
        %871 = vmatpush1.bf16.msra.mxu0 0
        %872 = vmatprep.subr.bf16.mxu0 0
        %873 = vmatpush1.bf16.msra.mxu0 0
        %874 = vmatprep.subr.bf16.mxu0 0
        %875 = vmatpush1.bf16.msra.mxu0 0
        %876 = vmatprep.mubr.bf16.mxu0 0
        %877 = vmatmul.mubr.bf16.gmra.mrb[0].mxu0 %v842
        %v878 = vpop.f32.mrb[0].mxu0
        %v879 = vadd.f32 %v824, %v878
        %v880 = vpop.f32.mrb[0].mxu0
        %v881 = vpop.f32.mrb[0].mxu0
        %v882 = vpop.f32.mrb[0].mxu0
        %883 = vdwg.mxu0
        %v884 = vld [vmem:[%s12] sm:$0x1]
        %v886 = vlaneseq
        %v887 = vshrl.u32 %v886, 7
        %v888 = vsub.s32 0, %v887
        %v889 = vrot.slane %v884, %v888
        %v891 = vadd.f32 %v879, %v889
        %v892 = vld [vmem:[#allocation11] sm:$0xf]
        %v893 = vld [vmem:[#allocation11 + $0x4] sm:$0xf]
        %v894 = vld [vmem:[#allocation11 + $0x8] sm:$0xf]
        %v895 = vld [vmem:[#allocation11 + $0xc] sm:$0xf]
        %v896 = vld [vmem:[%s10] sm:$0xf]
        %v897 = vld [vmem:[%s10 + $0x4] sm:$0xf]
        %v900 = vunpack.c.l.b16 %v896
        %v901 = vunpack.c.l.b16 %v897
        %v902 = vpack.c.b16 %v901, %v900
        %904 = vmatprep.subr.bf16.mxu0 0
        %905 = vmatpush1.bf16.msra.mxu0 %v902
        %906 = vmatprep.subr.bf16.mxu0 0
        %907 = vmatpush1.bf16.msra.mxu0 0
        %908 = vmatprep.subr.bf16.mxu0 0
        %909 = vmatpush1.bf16.msra.mxu0 0
        %910 = vmatprep.subr.bf16.mxu0 0
        %911 = vmatpush1.bf16.msra.mxu0 0
        %912 = vmatprep.subr.bf16.mxu0 0
        %913 = vmatpush1.bf16.msra.mxu0 0
        %914 = vmatprep.subr.bf16.mxu0 0
        %915 = vmatpush1.bf16.msra.mxu0 0
        %916 = vmatprep.subr.bf16.mxu0 0
        %917 = vmatpush1.bf16.msra.mxu0 0
        %918 = vmatprep.subr.bf16.mxu0 0
        %919 = vmatpush1.bf16.msra.mxu0 0
        %920 = vmatprep.subr.bf16.mxu0 0
        %921 = vmatpush1.bf16.msra.mxu0 0
        %922 = vmatprep.subr.bf16.mxu0 0
        %923 = vmatpush1.bf16.msra.mxu0 0
        %924 = vmatprep.subr.bf16.mxu0 0
        %925 = vmatpush1.bf16.msra.mxu0 0
        %926 = vmatprep.subr.bf16.mxu0 0
        %927 = vmatpush1.bf16.msra.mxu0 0
        %928 = vmatprep.subr.bf16.mxu0 0
        %929 = vmatpush1.bf16.msra.mxu0 0
        %930 = vmatprep.subr.bf16.mxu0 0
        %931 = vmatpush1.bf16.msra.mxu0 0
        %932 = vmatprep.subr.bf16.mxu0 0
        %933 = vmatpush1.bf16.msra.mxu0 0
        %934 = vmatprep.subr.bf16.mxu0 0
        %935 = vmatpush1.bf16.msra.mxu0 0
        %936 = vmatprep.mubr.bf16.mxu0 0
        %937 = vmatmul.mubr.bf16.gmra.mrb[0].mxu0 %v787
        %v938 = vpop.f32.mrb[0].mxu0
        %v939 = vadd.f32 0.0, %v938
        %v940 = vpop.f32.mrb[0].mxu0
        %v941 = vpop.f32.mrb[0].mxu0
        %v942 = vpop.f32.mrb[0].mxu0
        %943 = vdwg.mxu0
        %v948 = vunpack.c.l.b16 %v892
        %v949 = vunpack.c.l.b16 %v893
        %v950 = vunpack.c.l.b16 %v894
        %v951 = vunpack.c.l.b16 %v895
        %v952 = vpack.c.b16 %v949, %v948
        %v953 = vpack.c.b16 %v951, %v950
        %956 = vmatprep.subr.bf16.mxu0 0
        %957 = vmatpush1.bf16.msra.mxu0 %v952
        %958 = vmatprep.subr.bf16.mxu0 0
        %959 = vmatpush1.bf16.msra.mxu0 %v953
        %960 = vmatprep.subr.bf16.mxu0 0
        %961 = vmatpush1.bf16.msra.mxu0 0
        %962 = vmatprep.subr.bf16.mxu0 0
        %963 = vmatpush1.bf16.msra.mxu0 0
        %964 = vmatprep.subr.bf16.mxu0 0
        %965 = vmatpush1.bf16.msra.mxu0 0
        %966 = vmatprep.subr.bf16.mxu0 0
        %967 = vmatpush1.bf16.msra.mxu0 0
        %968 = vmatprep.subr.bf16.mxu0 0
        %969 = vmatpush1.bf16.msra.mxu0 0
        %970 = vmatprep.subr.bf16.mxu0 0
        %971 = vmatpush1.bf16.msra.mxu0 0
        %972 = vmatprep.subr.bf16.mxu0 0
        %973 = vmatpush1.bf16.msra.mxu0 0
        %974 = vmatprep.subr.bf16.mxu0 0
        %975 = vmatpush1.bf16.msra.mxu0 0
        %976 = vmatprep.subr.bf16.mxu0 0
        %977 = vmatpush1.bf16.msra.mxu0 0
        %978 = vmatprep.subr.bf16.mxu0 0
        %979 = vmatpush1.bf16.msra.mxu0 0
        %980 = vmatprep.subr.bf16.mxu0 0
        %981 = vmatpush1.bf16.msra.mxu0 0
        %982 = vmatprep.subr.bf16.mxu0 0
        %983 = vmatpush1.bf16.msra.mxu0 0
        %984 = vmatprep.subr.bf16.mxu0 0
        %985 = vmatpush1.bf16.msra.mxu0 0
        %986 = vmatprep.subr.bf16.mxu0 0
        %987 = vmatpush1.bf16.msra.mxu0 0
        %988 = vmatprep.mubr.bf16.mxu0 0
        %989 = vmatmul.mubr.bf16.gmra.mrb[0].mxu0 %v842
        %v990 = vpop.f32.mrb[0].mxu0
        %v991 = vadd.f32 %v939, %v990
        %v992 = vpop.f32.mrb[0].mxu0
        %v993 = vpop.f32.mrb[0].mxu0
        %v994 = vpop.f32.mrb[0].mxu0
        %995 = vdwg.mxu0
        %v996 = vld [vmem:[%s13] sm:$0x1]
        %v998 = vlaneseq
        %v999 = vshrl.u32 %v998, 7
        %v1000 = vsub.s32 0, %v999
        %v1001 = vrot.slane %v996, %v1000
        %v1003 = vadd.f32 %v991, %v1001
        %v1004 = vld [vmem:[#allocation13] sm:$0xf]
        %v1005 = vld [vmem:[#allocation13 + $0x4] sm:$0xf]
        %v1006 = vld [vmem:[#allocation13 + $0x8] sm:$0xf]
        %v1007 = vld [vmem:[#allocation13 + $0xc] sm:$0xf]
        %v1008 = vld [vmem:[%s11] sm:$0xf]
        %v1009 = vld [vmem:[%s11 + $0x4] sm:$0xf]
        %v1012 = vunpack.c.l.b16 %v1008
        %v1013 = vunpack.c.l.b16 %v1009
        %v1014 = vpack.c.b16 %v1013, %v1012
        %1016 = vmatprep.subr.bf16.mxu0 0
        %1017 = vmatpush1.bf16.msra.mxu0 %v1014
        %1018 = vmatprep.subr.bf16.mxu0 0
        %1019 = vmatpush1.bf16.msra.mxu0 0
        %1020 = vmatprep.subr.bf16.mxu0 0
        %1021 = vmatpush1.bf16.msra.mxu0 0
        %1022 = vmatprep.subr.bf16.mxu0 0
        %1023 = vmatpush1.bf16.msra.mxu0 0
        %1024 = vmatprep.subr.bf16.mxu0 0
        %1025 = vmatpush1.bf16.msra.mxu0 0
        %1026 = vmatprep.subr.bf16.mxu0 0
        %1027 = vmatpush1.bf16.msra.mxu0 0
        %1028 = vmatprep.subr.bf16.mxu0 0
        %1029 = vmatpush1.bf16.msra.mxu0 0
        %1030 = vmatprep.subr.bf16.mxu0 0
        %1031 = vmatpush1.bf16.msra.mxu0 0
        %1032 = vmatprep.subr.bf16.mxu0 0
        %1033 = vmatpush1.bf16.msra.mxu0 0
        %1034 = vmatprep.subr.bf16.mxu0 0
        %1035 = vmatpush1.bf16.msra.mxu0 0
        %1036 = vmatprep.subr.bf16.mxu0 0
        %1037 = vmatpush1.bf16.msra.mxu0 0
        %1038 = vmatprep.subr.bf16.mxu0 0
        %1039 = vmatpush1.bf16.msra.mxu0 0
        %1040 = vmatprep.subr.bf16.mxu0 0
        %1041 = vmatpush1.bf16.msra.mxu0 0
        %1042 = vmatprep.subr.bf16.mxu0 0
        %1043 = vmatpush1.bf16.msra.mxu0 0
        %1044 = vmatprep.subr.bf16.mxu0 0
        %1045 = vmatpush1.bf16.msra.mxu0 0
        %1046 = vmatprep.subr.bf16.mxu0 0
        %1047 = vmatpush1.bf16.msra.mxu0 0
        %1048 = vmatprep.mubr.bf16.mxu0 0
        %1049 = vmatmul.mubr.bf16.gmra.mrb[0].mxu0 %v787
        %v1050 = vpop.f32.mrb[0].mxu0
        %v1051 = vadd.f32 0.0, %v1050
        %v1052 = vpop.f32.mrb[0].mxu0
        %v1053 = vpop.f32.mrb[0].mxu0
        %v1054 = vpop.f32.mrb[0].mxu0
        %1055 = vdwg.mxu0
        %v1060 = vunpack.c.l.b16 %v1004
        %v1061 = vunpack.c.l.b16 %v1005
        %v1062 = vunpack.c.l.b16 %v1006
        %v1063 = vunpack.c.l.b16 %v1007
        %v1064 = vpack.c.b16 %v1061, %v1060
        %v1065 = vpack.c.b16 %v1063, %v1062
        %1068 = vmatprep.subr.bf16.mxu0 0
        %1069 = vmatpush1.bf16.msra.mxu0 %v1064
        %1070 = vmatprep.subr.bf16.mxu0 0
        %1071 = vmatpush1.bf16.msra.mxu0 %v1065
        %1072 = vmatprep.subr.bf16.mxu0 0
        %1073 = vmatpush1.bf16.msra.mxu0 0
        %1074 = vmatprep.subr.bf16.mxu0 0
        %1075 = vmatpush1.bf16.msra.mxu0 0
        %1076 = vmatprep.subr.bf16.mxu0 0
        %1077 = vmatpush1.bf16.msra.mxu0 0
        %1078 = vmatprep.subr.bf16.mxu0 0
        %1079 = vmatpush1.bf16.msra.mxu0 0
        %1080 = vmatprep.subr.bf16.mxu0 0
        %1081 = vmatpush1.bf16.msra.mxu0 0
        %1082 = vmatprep.subr.bf16.mxu0 0
        %1083 = vmatpush1.bf16.msra.mxu0 0
        %1084 = vmatprep.subr.bf16.mxu0 0
        %1085 = vmatpush1.bf16.msra.mxu0 0
        %1086 = vmatprep.subr.bf16.mxu0 0
        %1087 = vmatpush1.bf16.msra.mxu0 0
        %1088 = vmatprep.subr.bf16.mxu0 0
        %1089 = vmatpush1.bf16.msra.mxu0 0
        %1090 = vmatprep.subr.bf16.mxu0 0
        %1091 = vmatpush1.bf16.msra.mxu0 0
        %1092 = vmatprep.subr.bf16.mxu0 0
        %1093 = vmatpush1.bf16.msra.mxu0 0
        %1094 = vmatprep.subr.bf16.mxu0 0
        %1095 = vmatpush1.bf16.msra.mxu0 0
        %1096 = vmatprep.subr.bf16.mxu0 0
        %1097 = vmatpush1.bf16.msra.mxu0 0
        %1098 = vmatprep.subr.bf16.mxu0 0
        %1099 = vmatpush1.bf16.msra.mxu0 0
        %1100 = vmatprep.mubr.bf16.mxu0 0
        %1101 = vmatmul.mubr.bf16.gmra.mrb[0].mxu0 %v842
        %v1102 = vpop.f32.mrb[0].mxu0
        %v1103 = vadd.f32 %v1051, %v1102
        %v1104 = vpop.f32.mrb[0].mxu0
        %v1105 = vpop.f32.mrb[0].mxu0
        %v1106 = vpop.f32.mrb[0].mxu0
        %1107 = vdwg.mxu0
        %v1108 = vld [vmem:[%s14] sm:$0x1]
        %v1110 = vlaneseq
        %v1111 = vshrl.u32 %v1110, 7
        %v1112 = vsub.s32 0, %v1111
        %v1113 = vrot.slane %v1108, %v1112
        %v1115 = vadd.f32 %v1103, %v1113
        %v1116 = vmul.f32 %v891, 0.35355338
        %v1117 = vpack.c.bf16 %v1116, %v1116
        %vm1118 = vcmask 257024
        %1119 = vst.msk [vmem:[%s694] sm:$0xf] %vm1118, %v1117
        %v1120 = vpack.c.bf16 %v1003, %v1003
        %1121 = vst.msk [vmem:[%s701] sm:$0xf] %vm1118, %v1120
        %v1122 = vpack.c.bf16 %v1115, %v1115
        %1123 = vst.msk [vmem:[%s708] sm:$0xf] %vm1118, %v1122
        %s1124 = sand.u32 %s394, 1
        %s1125 = scalar_lea.sflag [#allocation4], %s1124
        %s1126 = sand.u32 %s394, 1
        %s1127 = smul.addr %s1126, 4
        %s1128 = scalar_lea.vmem [#allocation14], %s1127
        %s1129 = sand.u32 %s43, 1
        %s1130 = scalar_lea.sflag [#allocation16], %s1129
        %s1131 = sand.u32 %s422, 1
        %s1132 = smul.addr %s1131, 4
        %s1133 = scalar_lea.vmem [#allocation15], %s1132
        %s1134 = sand.u32 %s43, 1
        %s1135 = scalar_lea.sflag [#allocation16], %s1134
        %s1136 = sand.u32 %s450, 1
        %s1137 = smul.addr %s1136, 4
        %s1138 = scalar_lea.vmem [#allocation17], %s1137
        // Predicated region
        $region109: #{tpu_custom_call.1} parent=79 // pred_check
          %p1139 = pneg %p404
        $region110: #{tpu_custom_call.1} parent=79 // pred_check_branch
          %1141 = sbr.rel (%p1139) target = $region112
        $region111: #{tpu_custom_call.1} parent=79 // pred_region
          %s1143 = ssub.s32 64, 64
          %1144 = vsyncadd %s1125, %s1143
          %s1145 = sadd.s32 %s48, %s47
          %s1146 = smul.addr %s1145, 64
          %s1147 = scalar_lea.hbm %s15, %s1146
          %s1149 = sshll.u32 %s1128, 4
          %s1150 = int_to_ptr.vmem [resolvable:$true] %s1149
          %1152 = dma.vmem_to_hbm [thread:$0]  %s1150, 64, %s1147, %s1125
        $region112: #{tpu_custom_call.1} parent=79 // pred_fallthru
          _
        // Predicated region
        $region113: #{tpu_custom_call.1} parent=79 // pred_check
          %p1153 = pneg %p432
        $region114: #{tpu_custom_call.1} parent=79 // pred_check_branch
          %1155 = sbr.rel (%p1153) target = $region116
        $region115: #{tpu_custom_call.1} parent=79 // pred_region
          %s1157 = ssub.s32 64, 64
          %1158 = vsyncadd %s1130, %s1157
          %s1159 = sadd.s32 %s48, %s47
          %s1160 = smul.addr %s1159, 64
          %s1161 = scalar_lea.hbm %s16, %s1160
          %s1163 = sshll.u32 %s1133, 4
          %s1164 = int_to_ptr.vmem [resolvable:$true] %s1163
          %1166 = dma.vmem_to_hbm [thread:$0]  %s1164, 64, %s1161, %s1130
        $region116: #{tpu_custom_call.1} parent=79 // pred_fallthru
          _
        // Predicated region
        $region117: #{tpu_custom_call.1} parent=79 // pred_check
          %p1167 = pneg %p460
        $region118: #{tpu_custom_call.1} parent=79 // pred_check_branch
          %1169 = sbr.rel (%p1167) target = $region120
        $region119: #{tpu_custom_call.1} parent=79 // pred_region
          %s1171 = ssub.s32 64, 64
          %1172 = vsyncadd %s1135, %s1171
          %s1173 = sadd.s32 %s48, %s47
          %s1174 = smul.addr %s1173, 64
          %s1175 = scalar_lea.hbm %s17, %s1174
          %s1177 = sshll.u32 %s1138, 4
          %s1178 = int_to_ptr.vmem [resolvable:$true] %s1177
          %1180 = dma.vmem_to_hbm [thread:$0]  %s1178, 64, %s1175, %s1135
        $region120: #{tpu_custom_call.1} parent=79 // pred_fallthru
          _
      $region80: #{tpu_custom_call.1} parent=5 // pred_fallthru
        _
      %p1181 = scmp.le.s32.totalorder 2, %s38
      // Predicated region
      $region121: #{tpu_custom_call.1} parent=5 // pred_check
        %p1182 = pneg %p1181
      $region122: #{tpu_custom_call.1} parent=5 // pred_check_branch
        %1184 = sbr.rel (%p1182) target = $region124
      $region123: #{tpu_custom_call.1} parent=5 // pred_region
        %s1185 = ssub.s32 %s38, 2
        // Predicated region
        $region125: #{tpu_custom_call.1} parent=123 // pred_check
          %p1186 = pneg %p410
        $region126: #{tpu_custom_call.1} parent=123 // pred_check_branch
          %1188 = sbr.rel (%p1186) target = $region128
        $region127: #{tpu_custom_call.1} parent=123 // pred_region
          %s1189 = sand.u32 %s395, 1
          %s1190 = scalar_lea.sflag [#allocation4], %s1189
          %s1191 = sand.u32 %s395, 1
          %s1192 = smul.addr %s1191, 4
          %s1193 = scalar_lea.vmem [#allocation14], %s1192
          %1194 = dma.done %s1190, 64
        $region128: #{tpu_custom_call.1} parent=123 // pred_fallthru
          _
        // Predicated region
        $region129: #{tpu_custom_call.1} parent=123 // pred_check
          %p1195 = pneg %p438
        $region130: #{tpu_custom_call.1} parent=123 // pred_check_branch
          %1197 = sbr.rel (%p1195) target = $region132
        $region131: #{tpu_custom_call.1} parent=123 // pred_region
          %s1198 = sand.u32 %s44, 1
          %s1199 = scalar_lea.sflag [#allocation16], %s1198
          %s1200 = sand.u32 %s423, 1
          %s1201 = smul.addr %s1200, 4
          %s1202 = scalar_lea.vmem [#allocation15], %s1201
          %1203 = dma.done %s1199, 64
        $region132: #{tpu_custom_call.1} parent=123 // pred_fallthru
          _
        // Predicated region
        $region133: #{tpu_custom_call.1} parent=123 // pred_check
          %p1204 = pneg %p466
        $region134: #{tpu_custom_call.1} parent=123 // pred_check_branch
          %1206 = sbr.rel (%p1204) target = $region136
        $region135: #{tpu_custom_call.1} parent=123 // pred_region
          %s1207 = sand.u32 %s44, 1
          %s1208 = scalar_lea.sflag [#allocation16], %s1207
          %s1209 = sand.u32 %s451, 1
          %s1210 = smul.addr %s1209, 4
          %s1211 = scalar_lea.vmem [#allocation17], %s1210
          %1212 = dma.done %s1208, 64
        $region136: #{tpu_custom_call.1} parent=123 // pred_fallthru
          _
      $region124: #{tpu_custom_call.1} parent=5 // pred_fallthru
        _
    $region6: #{tpu_custom_call.1} parent=1 // loop_footer
      %s42 = sadd.s32 1, %s38
    $region7: #{tpu_custom_call.1} parent=1 // loop_footer_branch
      %37 = sbr.rel target = $region3
    $region8: #{tpu_custom_call.1} parent=1 // loop_exit
      _
    %1213 = vsyncpa [#allocation3], 1
    %s1214 = scalar_lea.sflag [#allocation3], 1
    %1215 = vsyncpa %s1214, 1
    %1216 = vsyncpa [#allocation6], 1
    %s1217 = scalar_lea.sflag [#allocation6], 1
    %1218 = vsyncpa %s1217, 1
    %1219 = vsyncpa [#allocation9], 1
    %1220 = vsyncpa [#allocation12], 1
    %1221 = vsyncpa [#allocation4], 1
    %s1222 = scalar_lea.sflag [#allocation4], 1
    %1223 = vsyncpa %s1222, 1
    %1224 = vsyncpa [#allocation16], 1
    %s1225 = scalar_lea.sflag [#allocation16], 1
    %1226 = vsyncpa %s1225, 1

// kernel: tpu_custom_call.1
$region0: #{tpu_custom_call.1}
  #allocation0 [shape = 'u32[]', space=smem, size = 0x4, offset = 0x4, fixed_abs, tag = 'smem constant byte address 0x4 - core index']
  #allocation1 [shape = 'u32[144,128]{1,0:T(1,128)}', space=vmem, size = 0x12000, scoped, tag = 'internal scratch']
  %s0 = inlined_call_operand.hbm [shape: f32[2,8,32], index: 0, kind: input, shape index: {}]
  %s1 = inlined_call_operand.hbm [shape: f32[2,8,16], index: 1, kind: input, shape index: {}]
  %s2 = inlined_call_operand.vmem [shape: f32[1,32], index: 2, kind: input, shape index: {}]
  %s3 = inlined_call_operand.hbm [shape: f32[1,32], index: 3, kind: input, shape index: {}]
  %s4 = inlined_call_operand.hbm [shape: f32[1,16], index: 4, kind: input, shape index: {}]
  %s5 = inlined_call_operand.hbm [shape: f32[1,16], index: 5, kind: input, shape index: {}]
  %s6 = inlined_call_operand.vmem [shape: bf16[32,32], index: 6, kind: input, shape index: {}]
  %s7 = inlined_call_operand.hbm [shape: bf16[32,32], index: 7, kind: input, shape index: {}]
  %s8 = inlined_call_operand.hbm [shape: bf16[32,32], index: 8, kind: input, shape index: {}]
  %s9 = inlined_call_operand.vmem [shape: bf16[16,32], index: 9, kind: input, shape index: {}]
  %s10 = inlined_call_operand.vmem [shape: bf16[16,32], index: 10, kind: input, shape index: {}]
  %s11 = inlined_call_operand.vmem [shape: bf16[16,32], index: 11, kind: input, shape index: {}]
  %s12 = inlined_call_operand.vmem [shape: f32[1,32], index: 12, kind: input, shape index: {}]
  %s13 = inlined_call_operand.vmem [shape: f32[1,32], index: 13, kind: input, shape index: {}]
  %s14 = inlined_call_operand.vmem [shape: f32[1,32], index: 14, kind: input, shape index: {}]
  %s15 = inlined_call_operand.hbm [shape: bf16[2,8,32], index: 15, kind: output, shape index: {0}]
  %s16 = inlined_call_operand.hbm [shape: bf16[2,8,32], index: 16, kind: output, shape index: {1}]
  %s17 = inlined_call_operand.hbm [shape: bf16[2,8,32], index: 17, kind: output, shape index: {2}]
  %18 = xla_tuple %s15, %s16, %s17
  %s19 = sld [smem:[#allocation0]]
  $region137: #{tpu_custom_call.1} parent=0
    _
  %s21 = ssub.s32 1, %s19
  %s22 = scalar_select 0, %s21, %s19
  $region1: #{tpu_custom_call.1} parent=0
    #allocation2 [shape = 'u8[8192]{0}', space=vmem, size = 0x2000, scoped, tag = 'input window, operand 0']
    #allocation3 [shape = 's32[2]{0}', space=sflag, size = 0x8, scoped, tag = 'scoped memory for tpu_custom_call.1']
    #allocation4 [shape = 's32[2]{0}', space=sflag, size = 0x8, scoped, tag = 'scoped memory for tpu_custom_call.1']
    #allocation5 [shape = 'u8[8192]{0}', space=vmem, size = 0x2000, scoped, tag = 'input window, operand 1']
    #allocation6 [shape = 's32[2]{0}', space=sflag, size = 0x8, scoped, tag = 'scoped memory for tpu_custom_call.1']
    #allocation7 [shape = 'u8[512]{0}', space=vmem, size = 0x400, scoped, tag = 'input window, operand 3, single buffered']
    #allocation8 [shape = 'u8[512]{0}', space=vmem, size = 0x400, scoped, tag = 'input window, operand 4, single buffered']
    #allocation9 [shape = 's32[1]{0}', space=sflag, size = 0x4, scoped, tag = 'scoped memory for tpu_custom_call.1']
    #allocation10 [shape = 'u8[512]{0}', space=vmem, size = 0x400, scoped, tag = 'input window, operand 5, single buffered']
    #allocation11 [shape = 'u8[8192]{0}', space=vmem, size = 0x2000, scoped, tag = 'input window, operand 7, single buffered']
    #allocation12 [shape = 's32[1]{0}', space=sflag, size = 0x4, scoped, tag = 'scoped memory for tpu_custom_call.1']
    #allocation13 [shape = 'u8[8192]{0}', space=vmem, size = 0x2000, scoped, tag = 'input window, operand 8, single buffered']
    #allocation14 [shape = 'u8[4096]{0}', space=vmem, size = 0x1000, scoped, tag = 'output window, operand 0']
    #allocation15 [shape = 'u8[4096]{0}', space=vmem, size = 0x1000, scoped, tag = 'output window, operand 1']
    #allocation16 [shape = 's32[2]{0}', space=sflag, size = 0x8, scoped, tag = 'scoped memory for tpu_custom_call.1']
    #allocation17 [shape = 'u8[4096]{0}', space=vmem, size = 0x1000, scoped, tag = 'output window, operand 2']
    %23 = vsyncpa [#allocation3], 0
    %s24 = scalar_lea.sflag [#allocation3], 1
    %25 = vsyncpa %s24, 0
    %26 = vsyncpa [#allocation6], 0
    %s27 = scalar_lea.sflag [#allocation6], 1
    %28 = vsyncpa %s27, 0
    %29 = vsyncpa [#allocation9], 0
    %30 = vsyncpa [#allocation12], 0
    %31 = vsyncpa [#allocation4], 0
    %s32 = scalar_lea.sflag [#allocation4], 1
    %33 = vsyncpa %s32, 0
    %34 = vsyncpa [#allocation16], 0
    %s35 = scalar_lea.sflag [#allocation16], 1
    %36 = vsyncpa %s35, 0
    loop: start=0, step=1, limit=4
    $region2: #{tpu_custom_call.1} parent=1 // loop_pre_header
      _
    $region3: #{tpu_custom_call.1} parent=1 // loop_header
      %s38 = sphi 0, %s42
      %p39 = scmp.ge.s32.totalorder %s38, 4
      %s45 = sphi 0, %s57
      %s46 = sphi 0, %s53
      %s47 = sphi 0, %s45
      %s48 = sphi 0, %s46
      %s49 = sphi 0, %s47
      %s50 = sphi 0, %s48
      %s62 = sphi 0, %s64
      %s65 = sphi 0, %s62
      %s66 = sphi 0, %s65
      %s82 = sphi 0, %s66
      %s90 = sphi 0, %s92
      %s93 = sphi 0, %s90
      %s94 = sphi 0, %s93
      %s110 = sphi 0, %s94
      %s114 = sphi 0, %s114
      %s116 = sphi 0, %s114
      %s117 = sphi 0, %s116
      %s131 = sphi 0, %s117
      %s135 = sphi 0, %s135
      %s137 = sphi 0, %s135
      %s138 = sphi 0, %s137
      %s152 = sphi 0, %s138
      %s156 = sphi 0, %s156
      %s158 = sphi 0, %s156
      %s159 = sphi 0, %s158
      %s173 = sphi 0, %s159
      %s177 = sphi 0, %s177
      %s179 = sphi 0, %s177
      %s180 = sphi 0, %s179
      %s194 = sphi 0, %s180
      %s198 = sphi 0, %s198
      %s200 = sphi 0, %s198
      %s201 = sphi 0, %s200
      %s215 = sphi 0, %s201
      %s219 = sphi 0, %s219
      %s221 = sphi 0, %s219
      %s222 = sphi 0, %s221
      %s236 = sphi 0, %s222
      %s240 = sphi 0, %s240
      %s242 = sphi 0, %s240
      %s243 = sphi 0, %s242
      %s257 = sphi 0, %s243
      %s261 = sphi 0, %s261
      %s263 = sphi 0, %s261
      %s264 = sphi 0, %s263
      %s278 = sphi 0, %s264
      %s282 = sphi 0, %s282
      %s284 = sphi 0, %s282
      %s285 = sphi 0, %s284
      %s299 = sphi 0, %s285
      %s303 = sphi 0, %s303
      %s305 = sphi 0, %s303
      %s306 = sphi 0, %s305
      %s320 = sphi 0, %s306
      %s324 = sphi 0, %s324
      %s326 = sphi 0, %s324
      %s327 = sphi 0, %s326
      %s341 = sphi 0, %s327
      %s345 = sphi 0, %s345
      %s347 = sphi 0, %s345
      %s348 = sphi 0, %s347
      %s362 = sphi 0, %s348
      %s366 = sphi 0, %s366
      %s368 = sphi 0, %s366
      %s369 = sphi 0, %s368
      %s383 = sphi 0, %s369
      %s391 = sphi 0, %s393
      %s394 = sphi 0, %s391
      %s395 = sphi 0, %s394
      %s411 = sphi 0, %s395
      %s419 = sphi 0, %s421
      %s422 = sphi 0, %s419
      %s423 = sphi 0, %s422
      %s439 = sphi 0, %s423
      %s447 = sphi 0, %s449
      %s450 = sphi 0, %s447
      %s451 = sphi 0, %s450
      %s467 = sphi 0, %s451
    $region4: #{tpu_custom_call.1} parent=1 // loop_header_branch
      %41 = sbr.rel (%p39) target = $region8
    $region5: #{tpu_custom_call.1} parent=1 // loop_body
      %s43 = ssub.s32 %s38, 1
      %s44 = ssub.s32 %s38, 2
      %s51 = sadd.s32 1, %s46
      %p52 = scmp.ge.s32.totalorder %s51, 1
      %s53 = scalar_select %p52, 0, %s51
      %s54 = sadd.s32 1, %s45
      %s55 = scalar_select %p52, %s54, %s45
      %p56 = scmp.ge.s32.totalorder %s55, 2
      %s57 = scalar_select %p56, 0, %s55
      %s58 = ssub.s32 %s45, %s57
      %s59 = ssub.s32 %s46, %s53
      %s60 = sor.u32 %s58, %s59
      %p61 = scmp.eq.s32.totalorder %s60, 0
      %s63 = sadd.s32 %s62, 1
      %s64 = scalar_select %p61, %s62, %s63
      %p67 = pneg %p61
      %p68 = scmp.eq.s32.totalorder %s38, 1
      %p69 = por %p67, %p68
      %p70 = scmp.ne.s32.totalorder %s62, %s65
      %p71 = scmp.eq.s32.totalorder %s38, 0
      %p72 = por %p70, %p71
      %p73 = scmp.ne.s32.totalorder %s62, %s65
      %p74 = scmp.eq.s32.totalorder %s43, 1
      %p75 = por %p73, %p74
      %p76 = scmp.ne.s32.totalorder %s65, %s66
      %p77 = scmp.eq.s32.totalorder %s43, 0
      %p78 = por %p76, %p77
      %p79 = scmp.ne.s32.totalorder %s65, %s66
      %p80 = scmp.eq.s32.totalorder %s44, 1
      %p81 = por %p79, %p80
      %p83 = scmp.ne.s32.totalorder %s66, %s82
      %p84 = scmp.eq.s32.totalorder %s44, 0
      %p85 = por %p83, %p84
      %s86 = ssub.s32 %s45, %s57
      %s87 = ssub.s32 %s46, %s53
      %s88 = sor.u32 %s86, %s87
      %p89 = scmp.eq.s32.totalorder %s88, 0
      %s91 = sadd.s32 %s90, 1
      %s92 = scalar_select %p89, %s90, %s91
      %p95 = pneg %p89
      %p96 = scmp.eq.s32.totalorder %s38, 1
      %p97 = por %p95, %p96
      %p98 = scmp.ne.s32.totalorder %s90, %s93
      %p99 = scmp.eq.s32.totalorder %s38, 0
      %p100 = por %p98, %p99
      %p101 = scmp.ne.s32.totalorder %s90, %s93
      %p102 = scmp.eq.s32.totalorder %s43, 1
      %p103 = por %p101, %p102
      %p104 = scmp.ne.s32.totalorder %s93, %s94
      %p105 = scmp.eq.s32.totalorder %s43, 0
      %p106 = por %p104, %p105
      %p107 = scmp.ne.s32.totalorder %s93, %s94
      %p108 = scmp.eq.s32.totalorder %s44, 1
      %p109 = por %p107, %p108
      %p111 = scmp.ne.s32.totalorder %s94, %s110
      %p112 = scmp.eq.s32.totalorder %s44, 0
      %p113 = por %p111, %p112
      %s115 = sadd.s32 %s114, 1
      %p118 = scmp.eq.s32.totalorder %s38, 1
      %p119 = scmp.ne.s32.totalorder %s114, %s116
      %p120 = scmp.eq.s32.totalorder %s38, 0
      %p121 = por %p119, %p120
      %p122 = scmp.ne.s32.totalorder %s114, %s116
      %p123 = scmp.eq.s32.totalorder %s43, 1
      %p124 = por %p122, %p123
      %p125 = scmp.ne.s32.totalorder %s116, %s117
      %p126 = scmp.eq.s32.totalorder %s43, 0
      %p127 = por %p125, %p126
      %p128 = scmp.ne.s32.totalorder %s116, %s117
      %p129 = scmp.eq.s32.totalorder %s44, 1
      %p130 = por %p128, %p129
      %p132 = scmp.ne.s32.totalorder %s117, %s131
      %p133 = scmp.eq.s32.totalorder %s44, 0
      %p134 = por %p132, %p133
      %s136 = sadd.s32 %s135, 1
      %p139 = scmp.eq.s32.totalorder %s38, 1
      %p140 = scmp.ne.s32.totalorder %s135, %s137
      %p141 = scmp.eq.s32.totalorder %s38, 0
      %p142 = por %p140, %p141
      %p143 = scmp.ne.s32.totalorder %s135, %s137
      %p144 = scmp.eq.s32.totalorder %s43, 1
      %p145 = por %p143, %p144
      %p146 = scmp.ne.s32.totalorder %s137, %s138
      %p147 = scmp.eq.s32.totalorder %s43, 0
      %p148 = por %p146, %p147
      %p149 = scmp.ne.s32.totalorder %s137, %s138
      %p150 = scmp.eq.s32.totalorder %s44, 1
      %p151 = por %p149, %p150
      %p153 = scmp.ne.s32.totalorder %s138, %s152
      %p154 = scmp.eq.s32.totalorder %s44, 0
      %p155 = por %p153, %p154
      %s157 = sadd.s32 %s156, 1
      %p160 = scmp.eq.s32.totalorder %s38, 1
      %p161 = scmp.ne.s32.totalorder %s156, %s158
      %p162 = scmp.eq.s32.totalorder %s38, 0
      %p163 = por %p161, %p162
      %p164 = scmp.ne.s32.totalorder %s156, %s158
      %p165 = scmp.eq.s32.totalorder %s43, 1
      %p166 = por %p164, %p165
      %p167 = scmp.ne.s32.totalorder %s158, %s159
      %p168 = scmp.eq.s32.totalorder %s43, 0
      %p169 = por %p167, %p168
      %p170 = scmp.ne.s32.totalorder %s158, %s159
      %p171 = scmp.eq.s32.totalorder %s44, 1
      %p172 = por %p170, %p171
      %p174 = scmp.ne.s32.totalorder %s159, %s173
      %p175 = scmp.eq.s32.totalorder %s44, 0
      %p176 = por %p174, %p175
      %s178 = sadd.s32 %s177, 1
      %p181 = scmp.eq.s32.totalorder %s38, 1
      %p182 = scmp.ne.s32.totalorder %s177, %s179
      %p183 = scmp.eq.s32.totalorder %s38, 0
      %p184 = por %p182, %p183
      %p185 = scmp.ne.s32.totalorder %s177, %s179
      %p186 = scmp.eq.s32.totalorder %s43, 1
      %p187 = por %p185, %p186
      %p188 = scmp.ne.s32.totalorder %s179, %s180
      %p189 = scmp.eq.s32.totalorder %s43, 0
      %p190 = por %p188, %p189
      %p191 = scmp.ne.s32.totalorder %s179, %s180
      %p192 = scmp.eq.s32.totalorder %s44, 1
      %p193 = por %p191, %p192
      %p195 = scmp.ne.s32.totalorder %s180, %s194
      %p196 = scmp.eq.s32.totalorder %s44, 0
      %p197 = por %p195, %p196
      %s199 = sadd.s32 %s198, 1
      %p202 = scmp.eq.s32.totalorder %s38, 1
      %p203 = scmp.ne.s32.totalorder %s198, %s200
      %p204 = scmp.eq.s32.totalorder %s38, 0
      %p205 = por %p203, %p204
      %p206 = scmp.ne.s32.totalorder %s198, %s200
      %p207 = scmp.eq.s32.totalorder %s43, 1
      %p208 = por %p206, %p207
      %p209 = scmp.ne.s32.totalorder %s200, %s201
      %p210 = scmp.eq.s32.totalorder %s43, 0
      %p211 = por %p209, %p210
      %p212 = scmp.ne.s32.totalorder %s200, %s201
      %p213 = scmp.eq.s32.totalorder %s44, 1
      %p214 = por %p212, %p213
      %p216 = scmp.ne.s32.totalorder %s201, %s215
      %p217 = scmp.eq.s32.totalorder %s44, 0
      %p218 = por %p216, %p217
      %s220 = sadd.s32 %s219, 1
      %p223 = scmp.eq.s32.totalorder %s38, 1
      %p224 = scmp.ne.s32.totalorder %s219, %s221
      %p225 = scmp.eq.s32.totalorder %s38, 0
      %p226 = por %p224, %p225
      %p227 = scmp.ne.s32.totalorder %s219, %s221
      %p228 = scmp.eq.s32.totalorder %s43, 1
      %p229 = por %p227, %p228
      %p230 = scmp.ne.s32.totalorder %s221, %s222
      %p231 = scmp.eq.s32.totalorder %s43, 0
      %p232 = por %p230, %p231
      %p233 = scmp.ne.s32.totalorder %s221, %s222
      %p234 = scmp.eq.s32.totalorder %s44, 1
      %p235 = por %p233, %p234
      %p237 = scmp.ne.s32.totalorder %s222, %s236
      %p238 = scmp.eq.s32.totalorder %s44, 0
      %p239 = por %p237, %p238
      %s241 = sadd.s32 %s240, 1
      %p244 = scmp.eq.s32.totalorder %s38, 1
      %p245 = scmp.ne.s32.totalorder %s240, %s242
      %p246 = scmp.eq.s32.totalorder %s38, 0
      %p247 = por %p245, %p246
      %p248 = scmp.ne.s32.totalorder %s240, %s242
      %p249 = scmp.eq.s32.totalorder %s43, 1
      %p250 = por %p248, %p249
      %p251 = scmp.ne.s32.totalorder %s242, %s243
      %p252 = scmp.eq.s32.totalorder %s43, 0
      %p253 = por %p251, %p252
      %p254 = scmp.ne.s32.totalorder %s242, %s243
      %p255 = scmp.eq.s32.totalorder %s44, 1
      %p256 = por %p254, %p255
      %p258 = scmp.ne.s32.totalorder %s243, %s257
      %p259 = scmp.eq.s32.totalorder %s44, 0
      %p260 = por %p258, %p259
      %s262 = sadd.s32 %s261, 1
      %p265 = scmp.eq.s32.totalorder %s38, 1
      %p266 = scmp.ne.s32.totalorder %s261, %s263
      %p267 = scmp.eq.s32.totalorder %s38, 0
      %p268 = por %p266, %p267
      %p269 = scmp.ne.s32.totalorder %s261, %s263
      %p270 = scmp.eq.s32.totalorder %s43, 1
      %p271 = por %p269, %p270
      %p272 = scmp.ne.s32.totalorder %s263, %s264
      %p273 = scmp.eq.s32.totalorder %s43, 0
      %p274 = por %p272, %p273
      %p275 = scmp.ne.s32.totalorder %s263, %s264
      %p276 = scmp.eq.s32.totalorder %s44, 1
      %p277 = por %p275, %p276
      %p279 = scmp.ne.s32.totalorder %s264, %s278
      %p280 = scmp.eq.s32.totalorder %s44, 0
      %p281 = por %p279, %p280
      %s283 = sadd.s32 %s282, 1
      %p286 = scmp.eq.s32.totalorder %s38, 1
      %p287 = scmp.ne.s32.totalorder %s282, %s284
      %p288 = scmp.eq.s32.totalorder %s38, 0
      %p289 = por %p287, %p288
      %p290 = scmp.ne.s32.totalorder %s282, %s284
      %p291 = scmp.eq.s32.totalorder %s43, 1
      %p292 = por %p290, %p291
      %p293 = scmp.ne.s32.totalorder %s284, %s285
      %p294 = scmp.eq.s32.totalorder %s43, 0
      %p295 = por %p293, %p294
      %p296 = scmp.ne.s32.totalorder %s284, %s285
      %p297 = scmp.eq.s32.totalorder %s44, 1
      %p298 = por %p296, %p297
      %p300 = scmp.ne.s32.totalorder %s285, %s299
      %p301 = scmp.eq.s32.totalorder %s44, 0
      %p302 = por %p300, %p301
      %s304 = sadd.s32 %s303, 1
      %p307 = scmp.eq.s32.totalorder %s38, 1
      %p308 = scmp.ne.s32.totalorder %s303, %s305
      %p309 = scmp.eq.s32.totalorder %s38, 0
      %p310 = por %p308, %p309
      %p311 = scmp.ne.s32.totalorder %s303, %s305
      %p312 = scmp.eq.s32.totalorder %s43, 1
      %p313 = por %p311, %p312
      %p314 = scmp.ne.s32.totalorder %s305, %s306
      %p315 = scmp.eq.s32.totalorder %s43, 0
      %p316 = por %p314, %p315
      %p317 = scmp.ne.s32.totalorder %s305, %s306
      %p318 = scmp.eq.s32.totalorder %s44, 1
      %p319 = por %p317, %p318
      %p321 = scmp.ne.s32.totalorder %s306, %s320
      %p322 = scmp.eq.s32.totalorder %s44, 0
      %p323 = por %p321, %p322
      %s325 = sadd.s32 %s324, 1
      %p328 = scmp.eq.s32.totalorder %s38, 1
      %p329 = scmp.ne.s32.totalorder %s324, %s326
      %p330 = scmp.eq.s32.totalorder %s38, 0
      %p331 = por %p329, %p330
      %p332 = scmp.ne.s32.totalorder %s324, %s326
      %p333 = scmp.eq.s32.totalorder %s43, 1
      %p334 = por %p332, %p333
      %p335 = scmp.ne.s32.totalorder %s326, %s327
      %p336 = scmp.eq.s32.totalorder %s43, 0
      %p337 = por %p335, %p336
      %p338 = scmp.ne.s32.totalorder %s326, %s327
      %p339 = scmp.eq.s32.totalorder %s44, 1
      %p340 = por %p338, %p339
      %p342 = scmp.ne.s32.totalorder %s327, %s341
      %p343 = scmp.eq.s32.totalorder %s44, 0
      %p344 = por %p342, %p343
      %s346 = sadd.s32 %s345, 1
      %p349 = scmp.eq.s32.totalorder %s38, 1
      %p350 = scmp.ne.s32.totalorder %s345, %s347
      %p351 = scmp.eq.s32.totalorder %s38, 0
      %p352 = por %p350, %p351
      %p353 = scmp.ne.s32.totalorder %s345, %s347
      %p354 = scmp.eq.s32.totalorder %s43, 1
      %p355 = por %p353, %p354
      %p356 = scmp.ne.s32.totalorder %s347, %s348
      %p357 = scmp.eq.s32.totalorder %s43, 0
      %p358 = por %p356, %p357
      %p359 = scmp.ne.s32.totalorder %s347, %s348
      %p360 = scmp.eq.s32.totalorder %s44, 1
      %p361 = por %p359, %p360
      %p363 = scmp.ne.s32.totalorder %s348, %s362
      %p364 = scmp.eq.s32.totalorder %s44, 0
      %p365 = por %p363, %p364
      %s367 = sadd.s32 %s366, 1
      %p370 = scmp.eq.s32.totalorder %s38, 1
      %p371 = scmp.ne.s32.totalorder %s366, %s368
      %p372 = scmp.eq.s32.totalorder %s38, 0
      %p373 = por %p371, %p372
      %p374 = scmp.ne.s32.totalorder %s366, %s368
      %p375 = scmp.eq.s32.totalorder %s43, 1
      %p376 = por %p374, %p375
      %p377 = scmp.ne.s32.totalorder %s368, %s369
      %p378 = scmp.eq.s32.totalorder %s43, 0
      %p379 = por %p377, %p378
      %p380 = scmp.ne.s32.totalorder %s368, %s369
      %p381 = scmp.eq.s32.totalorder %s44, 1
      %p382 = por %p380, %p381
      %p384 = scmp.ne.s32.totalorder %s369, %s383
      %p385 = scmp.eq.s32.totalorder %s44, 0
      %p386 = por %p384, %p385
      %s387 = ssub.s32 %s45, %s57
      %s388 = ssub.s32 %s46, %s53
      %s389 = sor.u32 %s387, %s388
      %p390 = scmp.eq.s32.totalorder %s389, 0
      %s392 = sadd.s32 %s391, 1
      %s393 = scalar_select %p390, %s391, %s392
      %p396 = pneg %p390
      %p397 = scmp.eq.s32.totalorder %s38, 1
      %p398 = por %p396, %p397
      %p399 = scmp.ne.s32.totalorder %s391, %s394
      %p400 = scmp.eq.s32.totalorder %s38, 0
      %p401 = por %p399, %p400
      %p402 = scmp.ne.s32.totalorder %s391, %s394
      %p403 = scmp.eq.s32.totalorder %s43, 1
      %p404 = por %p402, %p403
      %p405 = scmp.ne.s32.totalorder %s394, %s395
      %p406 = scmp.eq.s32.totalorder %s43, 0
      %p407 = por %p405, %p406
      %p408 = scmp.ne.s32.totalorder %s394, %s395
      %p409 = scmp.eq.s32.totalorder %s44, 1
      %p410 = por %p408, %p409
      %p412 = scmp.ne.s32.totalorder %s395, %s411
      %p413 = scmp.eq.s32.totalorder %s44, 0
      %p414 = por %p412, %p413
      %s415 = ssub.s32 %s45, %s57
      %s416 = ssub.s32 %s46, %s53
      %s417 = sor.u32 %s415, %s416
      %p418 = scmp.eq.s32.totalorder %s417, 0
      %s420 = sadd.s32 %s419, 1
      %s421 = scalar_select %p418, %s419, %s420
      %p424 = pneg %p418
      %p425 = scmp.eq.s32.totalorder %s38, 1
      %p426 = por %p424, %p425
      %p427 = scmp.ne.s32.totalorder %s419, %s422
      %p428 = scmp.eq.s32.totalorder %s38, 0
      %p429 = por %p427, %p428
      %p430 = scmp.ne.s32.totalorder %s419, %s422
      %p431 = scmp.eq.s32.totalorder %s43, 1
      %p432 = por %p430, %p431
      %p433 = scmp.ne.s32.totalorder %s422, %s423
      %p434 = scmp.eq.s32.totalorder %s43, 0
      %p435 = por %p433, %p434
      %p436 = scmp.ne.s32.totalorder %s422, %s423
      %p437 = scmp.eq.s32.totalorder %s44, 1
      %p438 = por %p436, %p437
      %p440 = scmp.ne.s32.totalorder %s423, %s439
      %p441 = scmp.eq.s32.totalorder %s44, 0
      %p442 = por %p440, %p441
      %s443 = ssub.s32 %s45, %s57
      %s444 = ssub.s32 %s46, %s53
      %s445 = sor.u32 %s443, %s444
      %p446 = scmp.eq.s32.totalorder %s445, 0
      %s448 = sadd.s32 %s447, 1
      %s449 = scalar_select %p446, %s447, %s448
      %p452 = pneg %p446
      %p453 = scmp.eq.s32.totalorder %s38, 1
      %p454 = por %p452, %p453
      %p455 = scmp.ne.s32.totalorder %s447, %s450
      %p456 = scmp.eq.s32.totalorder %s38, 0
      %p457 = por %p455, %p456
      %p458 = scmp.ne.s32.totalorder %s447, %s450
      %p459 = scmp.eq.s32.totalorder %s43, 1
      %p460 = por %p458, %p459
      %p461 = scmp.ne.s32.totalorder %s450, %s451
      %p462 = scmp.eq.s32.totalorder %s43, 0
      %p463 = por %p461, %p462
      %p464 = scmp.ne.s32.totalorder %s450, %s451
      %p465 = scmp.eq.s32.totalorder %s44, 1
      %p466 = por %p464, %p465
      %p468 = scmp.ne.s32.totalorder %s451, %s467
      %p469 = scmp.eq.s32.totalorder %s44, 0
      %p470 = por %p468, %p469
      %p471 = scmp.le.s32.totalorder 1, %s38
      %p472 = scmp.lt.s32.totalorder %s38, 3
      %p473 = pnand %p471, %p472
      %p474 = pneg %p473
      // Predicated region
      $region9: #{tpu_custom_call.1} parent=5 // pred_check
        _
      $region10: #{tpu_custom_call.1} parent=5 // pred_check_branch
        %476 = sbr.rel (%p473) target = $region12
      $region11: #{tpu_custom_call.1} parent=5 // pred_region
        %s477 = ssub.s32 %s38, 1
        // Predicated region
        $region13: #{tpu_custom_call.1} parent=11 // pred_check
          %p478 = pneg %p127
        $region14: #{tpu_custom_call.1} parent=11 // pred_check_branch
          %480 = sbr.rel (%p478) target = $region16
        $region15: #{tpu_custom_call.1} parent=11 // pred_region
          _
        $region16: #{tpu_custom_call.1} parent=11 // pred_fallthru
          _
        // Predicated region
        $region17: #{tpu_custom_call.1} parent=11 // pred_check
          %p481 = pneg %p148
        $region18: #{tpu_custom_call.1} parent=11 // pred_check_branch
          %483 = sbr.rel (%p481) target = $region20
        $region19: #{tpu_custom_call.1} parent=11 // pred_region
          %s485 = ssub.s32 16, 16
          %486 = vsyncadd [#allocation6], %s485
          %s488 = sshll.u32 [#allocation7], 4
          %s489 = int_to_ptr.vmem [resolvable:$true] %s488
          %491 = dma.hbm_to_vmem [thread:$0]  %s3, 16, %s489, [#allocation6]
        $region20: #{tpu_custom_call.1} parent=11 // pred_fallthru
          _
        // Predicated region
        $region21: #{tpu_custom_call.1} parent=11 // pred_check
          %p492 = pneg %p169
        $region22: #{tpu_custom_call.1} parent=11 // pred_check_branch
          %494 = sbr.rel (%p492) target = $region24
        $region23: #{tpu_custom_call.1} parent=11 // pred_region
          %s496 = ssub.s32 16, 16
          %497 = vsyncadd [#allocation9], %s496
          %s499 = sshll.u32 [#allocation8], 4
          %s500 = int_to_ptr.vmem [resolvable:$true] %s499
          %502 = dma.hbm_to_vmem [thread:$0]  %s4, 16, %s500, [#allocation9]
        $region24: #{tpu_custom_call.1} parent=11 // pred_fallthru
          _
        // Predicated region
        $region25: #{tpu_custom_call.1} parent=11 // pred_check
          %p503 = pneg %p190
        $region26: #{tpu_custom_call.1} parent=11 // pred_check_branch
          %505 = sbr.rel (%p503) target = $region28
        $region27: #{tpu_custom_call.1} parent=11 // pred_region
          %s507 = ssub.s32 16, 16
          %508 = vsyncadd [#allocation9], %s507
          %s510 = sshll.u32 [#allocation10], 4
          %s511 = int_to_ptr.vmem [resolvable:$true] %s510
          %513 = dma.hbm_to_vmem [thread:$0]  %s5, 16, %s511, [#allocation9]
        $region28: #{tpu_custom_call.1} parent=11 // pred_fallthru
          _
        // Predicated region
        $region29: #{tpu_custom_call.1} parent=11 // pred_check
          %p514 = pneg %p211
        $region30: #{tpu_custom_call.1} parent=11 // pred_check_branch
          %516 = sbr.rel (%p514) target = $region32
        $region31: #{tpu_custom_call.1} parent=11 // pred_region
          _
        $region32: #{tpu_custom_call.1} parent=11 // pred_fallthru
          _
        // Predicated region
        $region33: #{tpu_custom_call.1} parent=11 // pred_check
          %p517 = pneg %p232
        $region34: #{tpu_custom_call.1} parent=11 // pred_check_branch
          %519 = sbr.rel (%p517) target = $region36
        $region35: #{tpu_custom_call.1} parent=11 // pred_region
          %s521 = ssub.s32 256, 256
          %522 = vsyncadd [#allocation12], %s521
          %s523 = sshll.u32 [#allocation11], 4
          %s524 = int_to_ptr.vmem [resolvable:$true] %s523
          %529 = dma.hbm_to_vmem [thread:$0]  %s7, 256, %s524, [#allocation12], 64, 64, 4
        $region36: #{tpu_custom_call.1} parent=11 // pred_fallthru
          _
        // Predicated region
        $region37: #{tpu_custom_call.1} parent=11 // pred_check
          %p530 = pneg %p253
        $region38: #{tpu_custom_call.1} parent=11 // pred_check_branch
          %532 = sbr.rel (%p530) target = $region40
        $region39: #{tpu_custom_call.1} parent=11 // pred_region
          %s534 = ssub.s32 256, 256
          %535 = vsyncadd [#allocation12], %s534
          %s536 = sshll.u32 [#allocation13], 4
          %s537 = int_to_ptr.vmem [resolvable:$true] %s536
          %542 = dma.hbm_to_vmem [thread:$0]  %s8, 256, %s537, [#allocation12], 64, 64, 4
        $region40: #{tpu_custom_call.1} parent=11 // pred_fallthru
          _
        // Predicated region
        $region41: #{tpu_custom_call.1} parent=11 // pred_check
          %p543 = pneg %p274
        $region42: #{tpu_custom_call.1} parent=11 // pred_check_branch
          %545 = sbr.rel (%p543) target = $region44
        $region43: #{tpu_custom_call.1} parent=11 // pred_region
          _
        $region44: #{tpu_custom_call.1} parent=11 // pred_fallthru
          _
        // Predicated region
        $region45: #{tpu_custom_call.1} parent=11 // pred_check
          %p546 = pneg %p295
        $region46: #{tpu_custom_call.1} parent=11 // pred_check_branch
          %548 = sbr.rel (%p546) target = $region48
        $region47: #{tpu_custom_call.1} parent=11 // pred_region
          _
        $region48: #{tpu_custom_call.1} parent=11 // pred_fallthru
          _
        // Predicated region
        $region49: #{tpu_custom_call.1} parent=11 // pred_check
          %p549 = pneg %p316
        $region50: #{tpu_custom_call.1} parent=11 // pred_check_branch
          %551 = sbr.rel (%p549) target = $region52
        $region51: #{tpu_custom_call.1} parent=11 // pred_region
          _
        $region52: #{tpu_custom_call.1} parent=11 // pred_fallthru
          _
        // Predicated region
        $region53: #{tpu_custom_call.1} parent=11 // pred_check
          %p552 = pneg %p337
        $region54: #{tpu_custom_call.1} parent=11 // pred_check_branch
          %554 = sbr.rel (%p552) target = $region56
        $region55: #{tpu_custom_call.1} parent=11 // pred_region
          _
        $region56: #{tpu_custom_call.1} parent=11 // pred_fallthru
          _
        // Predicated region
        $region57: #{tpu_custom_call.1} parent=11 // pred_check
          %p555 = pneg %p358
        $region58: #{tpu_custom_call.1} parent=11 // pred_check_branch
          %557 = sbr.rel (%p555) target = $region60
        $region59: #{tpu_custom_call.1} parent=11 // pred_region
          _
        $region60: #{tpu_custom_call.1} parent=11 // pred_fallthru
          _
        // Predicated region
        $region61: #{tpu_custom_call.1} parent=11 // pred_check
          %p558 = pneg %p379
        $region62: #{tpu_custom_call.1} parent=11 // pred_check_branch
          %560 = sbr.rel (%p558) target = $region64
        $region63: #{tpu_custom_call.1} parent=11 // pred_region
          _
        $region64: #{tpu_custom_call.1} parent=11 // pred_fallthru
          _
      $region12: #{tpu_custom_call.1} parent=5 // pred_fallthru
        _
      %p561 = scmp.lt.s32.totalorder %s38, 2
      // Predicated region
      $region65: #{tpu_custom_call.1} parent=5 // pred_check
        %p562 = pneg %p561
      $region66: #{tpu_custom_call.1} parent=5 // pred_check_branch
        %564 = sbr.rel (%p562) target = $region68
      $region67: #{tpu_custom_call.1} parent=5 // pred_region
        // Predicated region
        $region69: #{tpu_custom_call.1} parent=67 // pred_check
          %p565 = pneg %p72
        $region70: #{tpu_custom_call.1} parent=67 // pred_check_branch
          %567 = sbr.rel (%p565) target = $region72
        $region71: #{tpu_custom_call.1} parent=67 // pred_region
          %s568 = sand.u32 %s62, 1
          %s569 = scalar_lea.sflag [#allocation3], %s568
          %s570 = sand.u32 %s62, 1
          %s571 = smul.addr %s570, 8
          %s572 = scalar_lea.vmem [#allocation2], %s571
          %s574 = ssub.s32 128, 128
          %575 = vsyncadd %s569, %s574
          %s576 = sadd.s32 %s46, %s45
          %s577 = smul.addr %s576, 128
          %s578 = scalar_lea.hbm %s0, %s577
          %s580 = sshll.u32 %s572, 4
          %s581 = int_to_ptr.vmem [resolvable:$true] %s580
          %583 = dma.hbm_to_vmem [thread:$0]  %s578, 128, %s581, %s569
        $region72: #{tpu_custom_call.1} parent=67 // pred_fallthru
          _
        // Predicated region
        $region73: #{tpu_custom_call.1} parent=67 // pred_check
          %p584 = pneg %p100
        $region74: #{tpu_custom_call.1} parent=67 // pred_check_branch
          %586 = sbr.rel (%p584) target = $region76
        $region75: #{tpu_custom_call.1} parent=67 // pred_region
          %s587 = sand.u32 %s38, 1
          %s588 = scalar_lea.sflag [#allocation6], %s587
          %s589 = sand.u32 %s90, 1
          %s590 = smul.addr %s589, 8
          %s591 = scalar_lea.vmem [#allocation5], %s590
          %s593 = ssub.s32 128, 128
          %594 = vsyncadd %s588, %s593
          %s595 = sadd.s32 %s46, %s45
          %s596 = smul.addr %s595, 128
          %s597 = scalar_lea.hbm %s1, %s596
          %s599 = sshll.u32 %s591, 4
          %s600 = int_to_ptr.vmem [resolvable:$true] %s599
          %602 = dma.hbm_to_vmem [thread:$0]  %s597, 128, %s600, %s588
        $region76: #{tpu_custom_call.1} parent=67 // pred_fallthru
          _
      $region68: #{tpu_custom_call.1} parent=5 // pred_fallthru
        _
      %p603 = scmp.le.s32.totalorder 1, %s38
      %p604 = scmp.lt.s32.totalorder %s38, 3
      %p605 = pnand %p603, %p604
      %p606 = pneg %p605
      // Predicated region
      $region77: #{tpu_custom_call.1} parent=5 // pred_check
        _
      $region78: #{tpu_custom_call.1} parent=5 // pred_check_branch
        %608 = sbr.rel (%p605) target = $region80
      $region79: #{tpu_custom_call.1} parent=5 // pred_region
        %s609 = ssub.s32 %s38, 1
        %s610 = sand.u32 %s65, 1
        %s611 = scalar_lea.sflag [#allocation3], %s610
        %s612 = sand.u32 %s65, 1
        %s613 = smul.addr %s612, 8
        %s614 = scalar_lea.vmem [#allocation2], %s613
        // Predicated region
        $region81: #{tpu_custom_call.1} parent=79 // pred_check
          %p615 = pneg %p78
        $region82: #{tpu_custom_call.1} parent=79 // pred_check_branch
          %617 = sbr.rel (%p615) target = $region84
        $region83: #{tpu_custom_call.1} parent=79 // pred_region
          %618 = dma.done %s611, 128
        $region84: #{tpu_custom_call.1} parent=79 // pred_fallthru
          _
        %s619 = sand.u32 %s43, 1
        %s620 = scalar_lea.sflag [#allocation6], %s619
        %s621 = sand.u32 %s93, 1
        %s622 = smul.addr %s621, 8
        %s623 = scalar_lea.vmem [#allocation5], %s622
        // Predicated region
        $region85: #{tpu_custom_call.1} parent=79 // pred_check
          %p624 = pneg %p106
        $region86: #{tpu_custom_call.1} parent=79 // pred_check_branch
          %626 = sbr.rel (%p624) target = $region88
        $region87: #{tpu_custom_call.1} parent=79 // pred_region
          %627 = dma.done %s620, 128
        $region88: #{tpu_custom_call.1} parent=79 // pred_fallthru
          _
        // Predicated region
        $region89: #{tpu_custom_call.1} parent=79 // pred_check
          %p628 = pneg %p148
        $region90: #{tpu_custom_call.1} parent=79 // pred_check_branch
          %630 = sbr.rel (%p628) target = $region92
        $region91: #{tpu_custom_call.1} parent=79 // pred_region
          %631 = dma.done [#allocation6], 16
        $region92: #{tpu_custom_call.1} parent=79 // pred_fallthru
          _
        // Predicated region
        $region93: #{tpu_custom_call.1} parent=79 // pred_check
          %p632 = pneg %p169
        $region94: #{tpu_custom_call.1} parent=79 // pred_check_branch
          %634 = sbr.rel (%p632) target = $region96
        $region95: #{tpu_custom_call.1} parent=79 // pred_region
          %635 = dma.done [#allocation9], 16
        $region96: #{tpu_custom_call.1} parent=79 // pred_fallthru
          _
        // Predicated region
        $region97: #{tpu_custom_call.1} parent=79 // pred_check
          %p636 = pneg %p190
        $region98: #{tpu_custom_call.1} parent=79 // pred_check_branch
          %638 = sbr.rel (%p636) target = $region100
        $region99: #{tpu_custom_call.1} parent=79 // pred_region
          %639 = dma.done [#allocation9], 16
        $region100: #{tpu_custom_call.1} parent=79 // pred_fallthru
          _
        // Predicated region
        $region101: #{tpu_custom_call.1} parent=79 // pred_check
          %p640 = pneg %p232
        $region102: #{tpu_custom_call.1} parent=79 // pred_check_branch
          %642 = sbr.rel (%p640) target = $region104
        $region103: #{tpu_custom_call.1} parent=79 // pred_region
          %643 = dma.done [#allocation12], 256
        $region104: #{tpu_custom_call.1} parent=79 // pred_fallthru
          _
        // Predicated region
        $region105: #{tpu_custom_call.1} parent=79 // pred_check
          %p644 = pneg %p253
        $region106: #{tpu_custom_call.1} parent=79 // pred_check_branch
          %646 = sbr.rel (%p644) target = $region108
        $region107: #{tpu_custom_call.1} parent=79 // pred_region
          %647 = dma.done [#allocation12], 256
        $region108: #{tpu_custom_call.1} parent=79 // pred_fallthru
          _
        %s648 = sand.u32 %s65, 1
        %s649 = scalar_lea.sflag [#allocation3], %s648
        %s650 = sand.u32 %s65, 1
        %s651 = smul.addr %s650, 8
        %s652 = scalar_lea.vmem [#allocation2], %s651
        %p653 = pneg %p78
        %p654 = pneg %p75
        %s655 = sand.u32 %s43, 1
        %s656 = scalar_lea.sflag [#allocation6], %s655
        %s657 = sand.u32 %s93, 1
        %s658 = smul.addr %s657, 8
        %s659 = scalar_lea.vmem [#allocation5], %s658
        %p660 = pneg %p106
        %p661 = pneg %p103
        %p662 = pneg %p127
        %p663 = pneg %p124
        %p664 = pneg %p148
        %p665 = pneg %p145
        %p666 = pneg %p169
        %p667 = pneg %p166
        %p668 = pneg %p190
        %p669 = pneg %p187
        %p670 = pneg %p211
        %p671 = pneg %p208
        %p672 = pneg %p232
        %p673 = pneg %p229
        %p674 = pneg %p253
        %p675 = pneg %p250
        %p676 = pneg %p274
        %p677 = pneg %p271
        %p678 = pneg %p295
        %p679 = pneg %p292
        %p680 = pneg %p316
        %p681 = pneg %p313
        %p682 = pneg %p337
        %p683 = pneg %p334
        %p684 = pneg %p358
        %p685 = pneg %p355
        %p686 = pneg %p379
        %p687 = pneg %p376
        %p688 = pneg %p407
        %p689 = pneg %p404
        %s690 = sand.u32 %s394, 1
        %s691 = scalar_lea.sflag [#allocation4], %s690
        %s692 = sand.u32 %s394, 1
        %s693 = smul.addr %s692, 4
        %s694 = scalar_lea.vmem [#allocation14], %s693
        %p695 = pneg %p435
        %p696 = pneg %p432
        %s697 = sand.u32 %s43, 1
        %s698 = scalar_lea.sflag [#allocation16], %s697
        %s699 = sand.u32 %s422, 1
        %s700 = smul.addr %s699, 4
        %s701 = scalar_lea.vmem [#allocation15], %s700
        %p702 = pneg %p463
        %p703 = pneg %p460
        %s704 = sand.u32 %s43, 1
        %s705 = scalar_lea.sflag [#allocation16], %s704
        %s706 = sand.u32 %s450, 1
        %s707 = smul.addr %s706, 4
        %s708 = scalar_lea.vmem [#allocation17], %s707
        %v710 = vld [vmem:[%s614] sm:$0xff]
        %vm711 = vcmask 261120
        %v712 = vsel %vm711, %v710, 0.0
        %713 = vadd.xlane.f32.xlu0 %v712
        %v714 = vpop.xlane.xlu0 %713
        %v715 = vmul.f32 %v710, %v710
        %v716 = vsel %vm711, %v715, 0.0
        %717 = vadd.xlane.f32.xlu0 %v716
        %v718 = vpop.xlane.xlu0 %717
        %v719 = vld [vmem:[%s623] sm:$0xff]
        %vm720 = vcmask 130048
        %v721 = vsel %vm720, %v719, 0.0
        %722 = vadd.xlane.f32.xlu0 %v721
        %v723 = vpop.xlane.xlu0 %722
        %v724 = vadd.f32 %v714, %v723
        %v725 = vmul.f32 %v719, %v719
        %v726 = vsel %vm720, %v725, 0.0
        %727 = vadd.xlane.f32.xlu0 %v726
        %v728 = vpop.xlane.xlu0 %727
        %v729 = vadd.f32 %v718, %v728
        %v730 = vmul.f32 %v724, 0.020833334
        %v731 = vmul.f32 %v729, 0.020833334
        %v732 = vmul.f32 %v730, %v730
        %v733 = vsub.f32 %v731, %v732
        %v734 = vadd.f32 %v733, 1e-05
        %v735 = vrsqrt.pop %v734
        %v736 = vsub.f32 %v710, %v730
        %v737 = vmul.f32 %v736, %v735
        %v738 = vld [vmem:[%s2] sm:$0x1]
        %v740 = vlaneseq
        %v741 = vshrl.u32 %v740, 7
        %v742 = vsub.s32 0, %v741
        %v743 = vrot.slane %v738, %v742
        %v745 = vmul.f32 %v737, %v743
        %v746 = vld [vmem:[#allocation7] sm:$0x1]
        %v748 = vlaneseq
        %v749 = vshrl.u32 %v748, 7
        %v750 = vsub.s32 0, %v749
        %v751 = vrot.slane %v746, %v750
        %v753 = vadd.f32 %v745, %v751
        %v754 = vpack.c.bf16 %v753, %v753
        %v755 = vsub.f32 %v719, %v730
        %v756 = vmul.f32 %v755, %v735
        %v757 = vld [vmem:[#allocation8] sm:$0x1]
        %v759 = vlaneseq
        %v760 = vshrl.u32 %v759, 7
        %v761 = vsub.s32 0, %v760
        %v762 = vrot.slane %v757, %v761
        %v764 = vmul.f32 %v756, %v762
        %v765 = vld [vmem:[#allocation10] sm:$0x1]
        %v767 = vlaneseq
        %v768 = vshrl.u32 %v767, 7
        %v769 = vsub.s32 0, %v768
        %v770 = vrot.slane %v765, %v769
        %v772 = vadd.f32 %v764, %v770
        %v773 = vpack.c.bf16 %v772, %v772
        %v774 = vld [vmem:[%s6] sm:$0xf]
        %v775 = vld [vmem:[%s6 + $0x4] sm:$0xf]
        %v776 = vld [vmem:[%s6 + $0x8] sm:$0xf]
        %v777 = vld [vmem:[%s6 + $0xc] sm:$0xf]
        %v778 = vld [vmem:[%s9] sm:$0xf]
        %v779 = vld [vmem:[%s9 + $0x4] sm:$0xf]
        %v782 = vunpack.c.l.b16 %v778
        %v783 = vunpack.c.l.b16 %v779
        %v784 = vpack.c.b16 %v783, %v782
        %v787 = vsel %vm720, %v773, 0
        %789 = vmatprep.subr.bf16.mxu0 0
        %790 = vmatpush1.bf16.msra.mxu0 %v784
        %791 = vmatprep.subr.bf16.mxu0 0
        %792 = vmatpush1.bf16.msra.mxu0 0
        %793 = vmatprep.subr.bf16.mxu0 0
        %794 = vmatpush1.bf16.msra.mxu0 0
        %795 = vmatprep.subr.bf16.mxu0 0
        %796 = vmatpush1.bf16.msra.mxu0 0
        %797 = vmatprep.subr.bf16.mxu0 0
        %798 = vmatpush1.bf16.msra.mxu0 0
        %799 = vmatprep.subr.bf16.mxu0 0
        %800 = vmatpush1.bf16.msra.mxu0 0
        %801 = vmatprep.subr.bf16.mxu0 0
        %802 = vmatpush1.bf16.msra.mxu0 0
        %803 = vmatprep.subr.bf16.mxu0 0
        %804 = vmatpush1.bf16.msra.mxu0 0
        %805 = vmatprep.subr.bf16.mxu0 0
        %806 = vmatpush1.bf16.msra.mxu0 0
        %807 = vmatprep.subr.bf16.mxu0 0
        %808 = vmatpush1.bf16.msra.mxu0 0
        %809 = vmatprep.subr.bf16.mxu0 0
        %810 = vmatpush1.bf16.msra.mxu0 0
        %811 = vmatprep.subr.bf16.mxu0 0
        %812 = vmatpush1.bf16.msra.mxu0 0
        %813 = vmatprep.subr.bf16.mxu0 0
        %814 = vmatpush1.bf16.msra.mxu0 0
        %815 = vmatprep.subr.bf16.mxu0 0
        %816 = vmatpush1.bf16.msra.mxu0 0
        %817 = vmatprep.subr.bf16.mxu0 0
        %818 = vmatpush1.bf16.msra.mxu0 0
        %819 = vmatprep.subr.bf16.mxu0 0
        %820 = vmatpush1.bf16.msra.mxu0 0
        %821 = vmatprep.mubr.bf16.mxu0 0
        %822 = vmatmul.mubr.bf16.gmra.mrb[0].mxu0 %v787
        %v823 = vpop.f32.mrb[0].mxu0
        %v824 = vadd.f32 0.0, %v823
        %v825 = vpop.f32.mrb[0].mxu0
        %v826 = vpop.f32.mrb[0].mxu0
        %v827 = vpop.f32.mrb[0].mxu0
        %828 = vdwg.mxu0
        %v833 = vunpack.c.l.b16 %v774
        %v834 = vunpack.c.l.b16 %v775
        %v835 = vunpack.c.l.b16 %v776
        %v836 = vunpack.c.l.b16 %v777
        %v837 = vpack.c.b16 %v834, %v833
        %v838 = vpack.c.b16 %v836, %v835
        %v842 = vsel %vm711, %v754, 0
        %844 = vmatprep.subr.bf16.mxu0 0
        %845 = vmatpush1.bf16.msra.mxu0 %v837
        %846 = vmatprep.subr.bf16.mxu0 0
        %847 = vmatpush1.bf16.msra.mxu0 %v838
        %848 = vmatprep.subr.bf16.mxu0 0
        %849 = vmatpush1.bf16.msra.mxu0 0
        %850 = vmatprep.subr.bf16.mxu0 0
        %851 = vmatpush1.bf16.msra.mxu0 0
        %852 = vmatprep.subr.bf16.mxu0 0
        %853 = vmatpush1.bf16.msra.mxu0 0
        %854 = vmatprep.subr.bf16.mxu0 0
        %855 = vmatpush1.bf16.msra.mxu0 0
        %856 = vmatprep.subr.bf16.mxu0 0
        %857 = vmatpush1.bf16.msra.mxu0 0
        %858 = vmatprep.subr.bf16.mxu0 0
        %859 = vmatpush1.bf16.msra.mxu0 0
        %860 = vmatprep.subr.bf16.mxu0 0
        %861 = vmatpush1.bf16.msra.mxu0 0
        %862 = vmatprep.subr.bf16.mxu0 0
        %863 = vmatpush1.bf16.msra.mxu0 0
        %864 = vmatprep.subr.bf16.mxu0 0
        %865 = vmatpush1.bf16.msra.mxu0 0
        %866 = vmatprep.subr.bf16.mxu0 0
        %867 = vmatpush1.bf16.msra.mxu0 0
        %868 = vmatprep.subr.bf16.mxu0 0
        %869 = vmatpush1.bf16.msra.mxu0 0
        %870 = vmatprep.subr.bf16.mxu0 0
        %871 = vmatpush1.bf16.msra.mxu0 0
        %872 = vmatprep.subr.bf16.mxu0 0
        %873 = vmatpush1.bf16.msra.mxu0 0
        %874 = vmatprep.subr.bf16.mxu0 0
        %875 = vmatpush1.bf16.msra.mxu0 0
        %876 = vmatprep.mubr.bf16.mxu0 0
        %877 = vmatmul.mubr.bf16.gmra.mrb[0].mxu0 %v842
        %v878 = vpop.f32.mrb[0].mxu0
        %v879 = vadd.f32 %v824, %v878
        %v880 = vpop.f32.mrb[0].mxu0
        %v881 = vpop.f32.mrb[0].mxu0
        %v882 = vpop.f32.mrb[0].mxu0
        %883 = vdwg.mxu0
        %v884 = vld [vmem:[%s12] sm:$0x1]
        %v886 = vlaneseq
        %v887 = vshrl.u32 %v886, 7
        %v888 = vsub.s32 0, %v887
        %v889 = vrot.slane %v884, %v888
        %v891 = vadd.f32 %v879, %v889
        %v892 = vld [vmem:[#allocation11] sm:$0xf]
        %v893 = vld [vmem:[#allocation11 + $0x4] sm:$0xf]
        %v894 = vld [vmem:[#allocation11 + $0x8] sm:$0xf]
        %v895 = vld [vmem:[#allocation11 + $0xc] sm:$0xf]
        %v896 = vld [vmem:[%s10] sm:$0xf]
        %v897 = vld [vmem:[%s10 + $0x4] sm:$0xf]
        %v900 = vunpack.c.l.b16 %v896
        %v901 = vunpack.c.l.b16 %v897
        %v902 = vpack.c.b16 %v901, %v900
        %904 = vmatprep.subr.bf16.mxu0 0
        %905 = vmatpush1.bf16.msra.mxu0 %v902
        %906 = vmatprep.subr.bf16.mxu0 0
        %907 = vmatpush1.bf16.msra.mxu0 0
        %908 = vmatprep.subr.bf16.mxu0 0
        %909 = vmatpush1.bf16.msra.mxu0 0
        %910 = vmatprep.subr.bf16.mxu0 0
        %911 = vmatpush1.bf16.msra.mxu0 0
        %912 = vmatprep.subr.bf16.mxu0 0
        %913 = vmatpush1.bf16.msra.mxu0 0
        %914 = vmatprep.subr.bf16.mxu0 0
        %915 = vmatpush1.bf16.msra.mxu0 0
        %916 = vmatprep.subr.bf16.mxu0 0
        %917 = vmatpush1.bf16.msra.mxu0 0
        %918 = vmatprep.subr.bf16.mxu0 0
        %919 = vmatpush1.bf16.msra.mxu0 0
        %920 = vmatprep.subr.bf16.mxu0 0
        %921 = vmatpush1.bf16.msra.mxu0 0
        %922 = vmatprep.subr.bf16.mxu0 0
        %923 = vmatpush1.bf16.msra.mxu0 0
        %924 = vmatprep.subr.bf16.mxu0 0
        %925 = vmatpush1.bf16.msra.mxu0 0
        %926 = vmatprep.subr.bf16.mxu0 0
        %927 = vmatpush1.bf16.msra.mxu0 0
        %928 = vmatprep.subr.bf16.mxu0 0
        %929 = vmatpush1.bf16.msra.mxu0 0
        %930 = vmatprep.subr.bf16.mxu0 0
        %931 = vmatpush1.bf16.msra.mxu0 0
        %932 = vmatprep.subr.bf16.mxu0 0
        %933 = vmatpush1.bf16.msra.mxu0 0
        %934 = vmatprep.subr.bf16.mxu0 0
        %935 = vmatpush1.bf16.msra.mxu0 0
        %936 = vmatprep.mubr.bf16.mxu0 0
        %937 = vmatmul.mubr.bf16.gmra.mrb[0].mxu0 %v787
        %v938 = vpop.f32.mrb[0].mxu0
        %v939 = vadd.f32 0.0, %v938
        %v940 = vpop.f32.mrb[0].mxu0
        %v941 = vpop.f32.mrb[0].mxu0
        %v942 = vpop.f32.mrb[0].mxu0
        %943 = vdwg.mxu0
        %v948 = vunpack.c.l.b16 %v892
        %v949 = vunpack.c.l.b16 %v893
        %v950 = vunpack.c.l.b16 %v894
        %v951 = vunpack.c.l.b16 %v895
        %v952 = vpack.c.b16 %v949, %v948
        %v953 = vpack.c.b16 %v951, %v950
        %956 = vmatprep.subr.bf16.mxu0 0
        %957 = vmatpush1.bf16.msra.mxu0 %v952
        %958 = vmatprep.subr.bf16.mxu0 0
        %959 = vmatpush1.bf16.msra.mxu0 %v953
        %960 = vmatprep.subr.bf16.mxu0 0
        %961 = vmatpush1.bf16.msra.mxu0 0
        %962 = vmatprep.subr.bf16.mxu0 0
        %963 = vmatpush1.bf16.msra.mxu0 0
        %964 = vmatprep.subr.bf16.mxu0 0
        %965 = vmatpush1.bf16.msra.mxu0 0
        %966 = vmatprep.subr.bf16.mxu0 0
        %967 = vmatpush1.bf16.msra.mxu0 0
        %968 = vmatprep.subr.bf16.mxu0 0
        %969 = vmatpush1.bf16.msra.mxu0 0
        %970 = vmatprep.subr.bf16.mxu0 0
        %971 = vmatpush1.bf16.msra.mxu0 0
        %972 = vmatprep.subr.bf16.mxu0 0
        %973 = vmatpush1.bf16.msra.mxu0 0
        %974 = vmatprep.subr.bf16.mxu0 0
        %975 = vmatpush1.bf16.msra.mxu0 0
        %976 = vmatprep.subr.bf16.mxu0 0
        %977 = vmatpush1.bf16.msra.mxu0 0
        %978 = vmatprep.subr.bf16.mxu0 0
        %979 = vmatpush1.bf16.msra.mxu0 0
        %980 = vmatprep.subr.bf16.mxu0 0
        %981 = vmatpush1.bf16.msra.mxu0 0
        %982 = vmatprep.subr.bf16.mxu0 0
        %983 = vmatpush1.bf16.msra.mxu0 0
        %984 = vmatprep.subr.bf16.mxu0 0
        %985 = vmatpush1.bf16.msra.mxu0 0
        %986 = vmatprep.subr.bf16.mxu0 0
        %987 = vmatpush1.bf16.msra.mxu0 0
        %988 = vmatprep.mubr.bf16.mxu0 0
        %989 = vmatmul.mubr.bf16.gmra.mrb[0].mxu0 %v842
        %v990 = vpop.f32.mrb[0].mxu0
        %v991 = vadd.f32 %v939, %v990
        %v992 = vpop.f32.mrb[0].mxu0
        %v993 = vpop.f32.mrb[0].mxu0
        %v994 = vpop.f32.mrb[0].mxu0
        %995 = vdwg.mxu0
        %v996 = vld [vmem:[%s13] sm:$0x1]
        %v998 = vlaneseq
        %v999 = vshrl.u32 %v998, 7
        %v1000 = vsub.s32 0, %v999
        %v1001 = vrot.slane %v996, %v1000
        %v1003 = vadd.f32 %v991, %v1001
        %v1004 = vld [vmem:[#allocation13] sm:$0xf]
        %v1005 = vld [vmem:[#allocation13 + $0x4] sm:$0xf]
        %v1006 = vld [vmem:[#allocation13 + $0x8] sm:$0xf]
        %v1007 = vld [vmem:[#allocation13 + $0xc] sm:$0xf]
        %v1008 = vld [vmem:[%s11] sm:$0xf]
        %v1009 = vld [vmem:[%s11 + $0x4] sm:$0xf]
        %v1012 = vunpack.c.l.b16 %v1008
        %v1013 = vunpack.c.l.b16 %v1009
        %v1014 = vpack.c.b16 %v1013, %v1012
        %1016 = vmatprep.subr.bf16.mxu0 0
        %1017 = vmatpush1.bf16.msra.mxu0 %v1014
        %1018 = vmatprep.subr.bf16.mxu0 0
        %1019 = vmatpush1.bf16.msra.mxu0 0
        %1020 = vmatprep.subr.bf16.mxu0 0
        %1021 = vmatpush1.bf16.msra.mxu0 0
        %1022 = vmatprep.subr.bf16.mxu0 0
        %1023 = vmatpush1.bf16.msra.mxu0 0
        %1024 = vmatprep.subr.bf16.mxu0 0
        %1025 = vmatpush1.bf16.msra.mxu0 0
        %1026 = vmatprep.subr.bf16.mxu0 0
        %1027 = vmatpush1.bf16.msra.mxu0 0
        %1028 = vmatprep.subr.bf16.mxu0 0
        %1029 = vmatpush1.bf16.msra.mxu0 0
        %1030 = vmatprep.subr.bf16.mxu0 0
        %1031 = vmatpush1.bf16.msra.mxu0 0
        %1032 = vmatprep.subr.bf16.mxu0 0
        %1033 = vmatpush1.bf16.msra.mxu0 0
        %1034 = vmatprep.subr.bf16.mxu0 0
        %1035 = vmatpush1.bf16.msra.mxu0 0
        %1036 = vmatprep.subr.bf16.mxu0 0
        %1037 = vmatpush1.bf16.msra.mxu0 0
        %1038 = vmatprep.subr.bf16.mxu0 0
        %1039 = vmatpush1.bf16.msra.mxu0 0
        %1040 = vmatprep.subr.bf16.mxu0 0
        %1041 = vmatpush1.bf16.msra.mxu0 0
        %1042 = vmatprep.subr.bf16.mxu0 0
        %1043 = vmatpush1.bf16.msra.mxu0 0
        %1044 = vmatprep.subr.bf16.mxu0 0
        %1045 = vmatpush1.bf16.msra.mxu0 0
        %1046 = vmatprep.subr.bf16.mxu0 0
        %1047 = vmatpush1.bf16.msra.mxu0 0
        %1048 = vmatprep.mubr.bf16.mxu0 0
        %1049 = vmatmul.mubr.bf16.gmra.mrb[0].mxu0 %v787
        %v1050 = vpop.f32.mrb[0].mxu0
        %v1051 = vadd.f32 0.0, %v1050
        %v1052 = vpop.f32.mrb[0].mxu0
        %v1053 = vpop.f32.mrb[0].mxu0
        %v1054 = vpop.f32.mrb[0].mxu0
        %1055 = vdwg.mxu0
        %v1060 = vunpack.c.l.b16 %v1004
        %v1061 = vunpack.c.l.b16 %v1005
        %v1062 = vunpack.c.l.b16 %v1006
        %v1063 = vunpack.c.l.b16 %v1007
        %v1064 = vpack.c.b16 %v1061, %v1060
        %v1065 = vpack.c.b16 %v1063, %v1062
        %1068 = vmatprep.subr.bf16.mxu0 0
        %1069 = vmatpush1.bf16.msra.mxu0 %v1064
        %1070 = vmatprep.subr.bf16.mxu0 0
        %1071 = vmatpush1.bf16.msra.mxu0 %v1065
        %1072 = vmatprep.subr.bf16.mxu0 0
        %1073 = vmatpush1.bf16.msra.mxu0 0
        %1074 = vmatprep.subr.bf16.mxu0 0
        %1075 = vmatpush1.bf16.msra.mxu0 0
        %1076 = vmatprep.subr.bf16.mxu0 0
        %1077 = vmatpush1.bf16.msra.mxu0 0
        %1078 = vmatprep.subr.bf16.mxu0 0
        %1079 = vmatpush1.bf16.msra.mxu0 0
        %1080 = vmatprep.subr.bf16.mxu0 0
        %1081 = vmatpush1.bf16.msra.mxu0 0
        %1082 = vmatprep.subr.bf16.mxu0 0
        %1083 = vmatpush1.bf16.msra.mxu0 0
        %1084 = vmatprep.subr.bf16.mxu0 0
        %1085 = vmatpush1.bf16.msra.mxu0 0
        %1086 = vmatprep.subr.bf16.mxu0 0
        %1087 = vmatpush1.bf16.msra.mxu0 0
        %1088 = vmatprep.subr.bf16.mxu0 0
        %1089 = vmatpush1.bf16.msra.mxu0 0
        %1090 = vmatprep.subr.bf16.mxu0 0
        %1091 = vmatpush1.bf16.msra.mxu0 0
        %1092 = vmatprep.subr.bf16.mxu0 0
        %1093 = vmatpush1.bf16.msra.mxu0 0
        %1094 = vmatprep.subr.bf16.mxu0 0
        %1095 = vmatpush1.bf16.msra.mxu0 0
        %1096 = vmatprep.subr.bf16.mxu0 0
        %1097 = vmatpush1.bf16.msra.mxu0 0
        %1098 = vmatprep.subr.bf16.mxu0 0
        %1099 = vmatpush1.bf16.msra.mxu0 0
        %1100 = vmatprep.mubr.bf16.mxu0 0
        %1101 = vmatmul.mubr.bf16.gmra.mrb[0].mxu0 %v842
        %v1102 = vpop.f32.mrb[0].mxu0
        %v1103 = vadd.f32 %v1051, %v1102
        %v1104 = vpop.f32.mrb[0].mxu0
        %v1105 = vpop.f32.mrb[0].mxu0
        %v1106 = vpop.f32.mrb[0].mxu0
        %1107 = vdwg.mxu0
        %v1108 = vld [vmem:[%s14] sm:$0x1]
        %v1110 = vlaneseq
        %v1111 = vshrl.u32 %v1110, 7
        %v1112 = vsub.s32 0, %v1111
        %v1113 = vrot.slane %v1108, %v1112
        %v1115 = vadd.f32 %v1103, %v1113
        %v1116 = vmul.f32 %v891, 0.35355338
        %v1117 = vpack.c.bf16 %v1116, %v1116
        %vm1118 = vcmask 257024
        %1119 = vst.msk [vmem:[%s694] sm:$0xf] %vm1118, %v1117
        %v1120 = vpack.c.bf16 %v1003, %v1003
        %1121 = vst.msk [vmem:[%s701] sm:$0xf] %vm1118, %v1120
        %v1122 = vpack.c.bf16 %v1115, %v1115
        %1123 = vst.msk [vmem:[%s708] sm:$0xf] %vm1118, %v1122
        %s1124 = sand.u32 %s394, 1
        %s1125 = scalar_lea.sflag [#allocation4], %s1124
        %s1126 = sand.u32 %s394, 1
        %s1127 = smul.addr %s1126, 4
        %s1128 = scalar_lea.vmem [#allocation14], %s1127
        %s1129 = sand.u32 %s43, 1
        %s1130 = scalar_lea.sflag [#allocation16], %s1129
        %s1131 = sand.u32 %s422, 1
        %s1132 = smul.addr %s1131, 4
        %s1133 = scalar_lea.vmem [#allocation15], %s1132
        %s1134 = sand.u32 %s43, 1
        %s1135 = scalar_lea.sflag [#allocation16], %s1134
        %s1136 = sand.u32 %s450, 1
        %s1137 = smul.addr %s1136, 4
        %s1138 = scalar_lea.vmem [#allocation17], %s1137
        // Predicated region
        $region109: #{tpu_custom_call.1} parent=79 // pred_check
          %p1139 = pneg %p404
        $region110: #{tpu_custom_call.1} parent=79 // pred_check_branch
          %1141 = sbr.rel (%p1139) target = $region112
        $region111: #{tpu_custom_call.1} parent=79 // pred_region
          %s1143 = ssub.s32 64, 64
          %1144 = vsyncadd %s1125, %s1143
          %s1145 = sadd.s32 %s48, %s47
          %s1146 = smul.addr %s1145, 64
          %s1147 = scalar_lea.hbm %s15, %s1146
          %s1149 = sshll.u32 %s1128, 4
          %s1150 = int_to_ptr.vmem [resolvable:$true] %s1149
          %1152 = dma.vmem_to_hbm [thread:$0]  %s1150, 64, %s1147, %s1125
        $region112: #{tpu_custom_call.1} parent=79 // pred_fallthru
          _
        // Predicated region
        $region113: #{tpu_custom_call.1} parent=79 // pred_check
          %p1153 = pneg %p432
        $region114: #{tpu_custom_call.1} parent=79 // pred_check_branch
          %1155 = sbr.rel (%p1153) target = $region116
        $region115: #{tpu_custom_call.1} parent=79 // pred_region
          %s1157 = ssub.s32 64, 64
          %1158 = vsyncadd %s1130, %s1157
          %s1159 = sadd.s32 %s48, %s47
          %s1160 = smul.addr %s1159, 64
          %s1161 = scalar_lea.hbm %s16, %s1160
          %s1163 = sshll.u32 %s1133, 4
          %s1164 = int_to_ptr.vmem [resolvable:$true] %s1163
          %1166 = dma.vmem_to_hbm [thread:$0]  %s1164, 64, %s1161, %s1130
        $region116: #{tpu_custom_call.1} parent=79 // pred_fallthru
          _
        // Predicated region
        $region117: #{tpu_custom_call.1} parent=79 // pred_check
          %p1167 = pneg %p460
        $region118: #{tpu_custom_call.1} parent=79 // pred_check_branch
          %1169 = sbr.rel (%p1167) target = $region120
        $region119: #{tpu_custom_call.1} parent=79 // pred_region
          %s1171 = ssub.s32 64, 64
          %1172 = vsyncadd %s1135, %s1171
          %s1173 = sadd.s32 %s48, %s47
          %s1174 = smul.addr %s1173, 64
          %s1175 = scalar_lea.hbm %s17, %s1174
          %s1177 = sshll.u32 %s1138, 4
          %s1178 = int_to_ptr.vmem [resolvable:$true] %s1177
          %1180 = dma.vmem_to_hbm [thread:$0]  %s1178, 64, %s1175, %s1135
        $region120: #{tpu_custom_call.1} parent=79 // pred_fallthru
          _
      $region80: #{tpu_custom_call.1} parent=5 // pred_fallthru
        _
      %p1181 = scmp.le.s32.totalorder 2, %s38
      // Predicated region
      $region121: #{tpu_custom_call.1} parent=5 // pred_check
        %p1182 = pneg %p1181
      $region122: #{tpu_custom_call.1} parent=5 // pred_check_branch
        %1184 = sbr.rel (%p1182) target = $region124
      $region123: #{tpu_custom_call.1} parent=5 // pred_region
        %s1185 = ssub.s32 %s38, 2
        // Predicated region
        $region125: #{tpu_custom_call.1} parent=123 // pred_check
          %p1186 = pneg %p410
        $region126: #{tpu_custom_call.1} parent=123 // pred_check_branch
          %1188 = sbr.rel (%p1186) target = $region128
        $region127: #{tpu_custom_call.1} parent=123 // pred_region
          %s1189 = sand.u32 %s395, 1
          %s1190 = scalar_lea.sflag [#allocation4], %s1189
          %s1191 = sand.u32 %s395, 1
          %s1192 = smul.addr %s1191, 4
          %s1193 = scalar_lea.vmem [#allocation14], %s1192
          %1194 = dma.done %s1190, 64
        $region128: #{tpu_custom_call.1} parent=123 // pred_fallthru
          _
        // Predicated region
        $region129: #{tpu_custom_call.1} parent=123 // pred_check
          %p1195 = pneg %p438
        $region130: #{tpu_custom_call.1} parent=123 // pred_check_branch
          %1197 = sbr.rel (%p1195) target = $region132
        $region131: #{tpu_custom_call.1} parent=123 // pred_region
          %s1198 = sand.u32 %s44, 1
          %s1199 = scalar_lea.sflag [#allocation16], %s1198
          %s1200 = sand.u32 %s423, 1
          %s1201 = smul.addr %s1200, 4
          %s1202 = scalar_lea.vmem [#allocation15], %s1201
          %1203 = dma.done %s1199, 64
        $region132: #{tpu_custom_call.1} parent=123 // pred_fallthru
          _
        // Predicated region
        $region133: #{tpu_custom_call.1} parent=123 // pred_check
          %p1204 = pneg %p466
        $region134: #{tpu_custom_call.1} parent=123 // pred_check_branch
          %1206 = sbr.rel (%p1204) target = $region136
        $region135: #{tpu_custom_call.1} parent=123 // pred_region
          %s1207 = sand.u32 %s44, 1
          %s1208 = scalar_lea.sflag [#allocation16], %s1207
          %s1209 = sand.u32 %s451, 1
          %s1210 = smul.addr %s1209, 4
          %s1211 = scalar_lea.vmem [#allocation17], %s1210
          %1212 = dma.done %s1208, 64
        $region136: #{tpu_custom_call.1} parent=123 // pred_fallthru
          _
      $region124: #{tpu_custom_call.1} parent=5 // pred_fallthru
        _
    $region6: #{tpu_custom_call.1} parent=1 // loop_footer
      %s42 = sadd.s32 1, %s38
    $region7: #{tpu_custom_call.1} parent=1 // loop_footer_branch
      %37 = sbr.rel target = $region3
    $region8: #{tpu_custom_call.1} parent=1 // loop_exit
      _
    %1213 = vsyncpa [#allocation3], 1
    %s1214 = scalar_lea.sflag [#allocation3], 1
    %1215 = vsyncpa %s1214, 1
    %1216 = vsyncpa [#allocation6], 1
    %s1217 = scalar_lea.sflag [#allocation6], 1
    %1218 = vsyncpa %s1217, 1
    %1219 = vsyncpa [#allocation9], 1
    %1220 = vsyncpa [#allocation12], 1
    %1221 = vsyncpa [#allocation4], 1
    %s1222 = scalar_lea.sflag [#allocation4], 1
    %1223 = vsyncpa %s1222, 1
    %1224 = vsyncpa [#allocation16], 1
    %s1225 = scalar_lea.sflag [#allocation16], 1
    %1226 = vsyncpa %s1225, 1

</llo_original>
